<compile_context>
chip_gen: v7x
topology: tpu7x:2x2x1
jax: 0.10.0
libtpu: 0.0.40
codegen_flags: <defaults>
</compile_context>

<pallas_src>
import functools

import jax
import jax.numpy as jnp
from jax.experimental import pallas as pl
from jax.experimental.pallas import tpu as pltpu


# ----------------------------------------------------------------------------
# helpers
# ----------------------------------------------------------------------------
def _round_up(x, m):
    return (x + m - 1) // m * m


def _pad_to(a, shape):
    return jnp.pad(a, [(0, t - s) for s, t in zip(a.shape, shape)])


def _vmem_limit_bytes():
    cap = None
    try:
        cap = getattr(pltpu.get_tpu_info(), "vmem_capacity_bytes", None)
    except Exception:
        cap = None
    if not cap:
        cap = 64 * 1024 * 1024      # conservative fallback (v7x physical)
    return int(cap) * 3 // 4        # leave headroom for Mosaic-internal scratch


# ----------------------------------------------------------------------------
# fused InvertedResidual kernel
# ----------------------------------------------------------------------------
def _ir_kernel(*refs, stride, th_out, height, width, has_expand, use_shortcut):
    if has_expand:
        (x_ref, we_ref, be_ref, wdw_ref, bdw_ref, wp_ref, bp_ref,
         o_ref, ex_ref) = refs
    else:
        (x_ref, wdw_ref, bdw_ref, wp_ref, bp_ref, o_ref, ex_ref) = refs
        we_ref = be_ref = None

    r = pl.program_id(1)
    th_in = (th_out - 1) * stride + 3
    wo = o_ref.shape[2]
    wp_cols = x_ref.shape[2]                     # width + 2 (spatial halo)
    hid = ex_ref.shape[-1]
    row0 = r * (th_out * stride)                 # first padded input row of tile

    # --- expand 1x1 conv + BN + ReLU6 (result stays in VMEM scratch) --------
    xb = x_ref[0, pl.ds(row0, th_in), :, :]      # (th_in, W+2, cin_p) bf16
    if has_expand:
        ex = jnp.dot(xb.reshape(th_in * wp_cols, xb.shape[-1]), we_ref[...],
                     preferred_element_type=jnp.float32)
        ex = jnp.clip(ex + be_ref[...], 0.0, 6.0).reshape(th_in, wp_cols, hid)
        # Zero the spatial-padding halo: the depthwise conv pads the *expanded*
        # tensor with zeros, so relu6(bias) must not leak into padded taps.
        rows = row0 + jax.lax.broadcasted_iota(jnp.int32, (th_in, wp_cols, 1), 0)
        cols = jax.lax.broadcasted_iota(jnp.int32, (th_in, wp_cols, 1), 1)
        valid = ((rows >= 1) & (rows <= height)
                 & (cols >= 1) & (cols <= width))
        ex_ref[...] = jnp.where(valid, ex, 0.0)
    else:
        ex_ref[...] = xb.astype(jnp.float32)     # already zero at padded taps

    # --- depthwise 3x3 conv + BN + ReLU6 (strided taps read from VMEM) ------
    acc = jnp.zeros((th_out, wo, hid), jnp.float32)
    for kh in range(3):
        for kw in range(3):
            if stride == 1:
                tap = ex_ref[kh:kh + th_out, kw:kw + wo, :]
            else:
                tap = ex_ref[pl.ds(kh, th_out, stride=stride),
                             pl.ds(kw, wo, stride=stride), :]
            acc = acc + tap * wdw_ref[kh * 3 + kw]
    dw = jnp.clip(acc + bdw_ref[0], 0.0, 6.0).astype(jnp.bfloat16)

    # --- linear 1x1 projection + BN (+ fused residual add) ------------------
    out = jnp.dot(dw.reshape(th_out * wo, hid), wp_ref[...],
                  preferred_element_type=jnp.float32) + bp_ref[...]
    if use_shortcut:
        res = x_ref[0, pl.ds(1 + r * th_out, th_out), 1:1 + width, :]
        out = out + res.reshape(th_out * wo, res.shape[-1]).astype(jnp.float32)
    o_ref[0] = out.reshape(th_out, wo, out.shape[-1]).astype(o_ref.dtype)


def inverted_residual_forward(params, x_nchw, *, row_tile=8,
                              out_dtype=jnp.float32):
    """Forward pass of one InvertedResidual block. x: (N, Cin, H, W) NCHW."""
    n, c, height, width = x_nchw.shape
    assert c == params['in_channel']
    s = params['stride']
    cin_p, hid_p, cout_p = params['cin_p'], params['hid_p'], params['cout_p']

    ho = (height + 2 - 3) // s + 1
    wo = (width + 2 - 3) // s + 1
    th_out = max(1, min(row_tile, ho))
    n_row_tiles = pl.cdiv(ho, th_out)
    th_in = (th_out - 1) * s + 3
    hp = (n_row_tiles - 1) * th_out * s + th_in   # padded rows needed

    # NCHW -> NHWC (channels on the 128-lane axis), bf16, pad channels + halo.
    x = jnp.transpose(x_nchw, (0, 2, 3, 1)).astype(jnp.bfloat16)
    x = jnp.pad(x, ((0, 0), (1, hp - height - 1), (1, 1), (0, cin_p - c)))

    has_expand = params['expand_ratio'] != 1
    use_shortcut = params['use_shortcut']

    kernel = functools.partial(_ir_kernel, stride=s, th_out=th_out,
                               height=height, width=width,
                               has_expand=has_expand, use_shortcut=use_shortcut)

    # Input image: block index depends only on the batch coordinate -> the
    # whole (padded) image is fetched into VMEM once per image, not per tile.
    in_specs = [pl.BlockSpec((1, hp, width + 2, cin_p), lambda b, r: (b, 0, 0, 0))]
    args = [x]
    if has_expand:
        in_specs += [pl.BlockSpec((cin_p, hid_p), lambda b, r: (0, 0)),
                     pl.BlockSpec((1, hid_p), lambda b, r: (0, 0))]
        args += [params['we'], params['be']]
    in_specs += [pl.BlockSpec((9, 1, hid_p), lambda b, r: (0, 0, 0)),
                 pl.BlockSpec((1, 1, hid_p), lambda b, r: (0, 0, 0)),
                 pl.BlockSpec((hid_p, cout_p), lambda b, r: (0, 0)),
                 pl.BlockSpec((1, cout_p), lambda b, r: (0, 0))]
    args += [params['wdw'], params['bdw'], params['wp'], params['bp']]

    out = pl.pallas_call(
        kernel,
        out_shape=jax.ShapeDtypeStruct((n, ho, wo, cout_p), out_dtype),
        grid=(n, n_row_tiles),
        in_specs=in_specs,
        out_specs=pl.BlockSpec((1, th_out, wo, cout_p), lambda b, r: (b, r, 0, 0)),
        scratch_shapes=[pltpu.VMEM((th_in, width + 2, hid_p), jnp.float32)],
        compiler_params=pltpu.CompilerParams(
            dimension_semantics=("parallel", "arbitrary"),
            vmem_limit_bytes=_vmem_limit_bytes()),
    )(*args)

    out = out[..., :params['out_channel']]        # strip lane padding
    return jnp.transpose(out, (0, 3, 1, 2))       # back to NCHW


# ----------------------------------------------------------------------------
# deterministic parameter construction (BN folded, channels padded to 128)
# ----------------------------------------------------------------------------
def _bn_fold(key, cout):
    k1, k2, k3, k4 = jax.random.split(key, 4)
    gamma = 1.0 + 0.1 * jax.random.normal(k1, (cout,), jnp.float32)
    beta = 0.1 * jax.random.normal(k2, (cout,), jnp.float32)
    mean = 0.1 * jax.random.normal(k3, (cout,), jnp.float32)
    var = 1.0 + 0.1 * jax.random.uniform(k4, (cout,), jnp.float32)
    scale = gamma / jnp.sqrt(var + 1e-5)
    bias = beta - mean * scale
    return scale, bias


def init_inverted_residual(key, in_channel, out_channel, stride, expand_ratio,
                           lane=128):
    hidden = in_channel * expand_ratio
    cin_p = _round_up(in_channel, lane)
    hid_p = _round_up(hidden, lane)
    cout_p = _round_up(out_channel, lane)
    p = dict(in_channel=in_channel, out_channel=out_channel, stride=stride,
             expand_ratio=expand_ratio, cin_p=cin_p, hid_p=hid_p, cout_p=cout_p,
             use_shortcut=(stride == 1 and in_channel == out_channel))
    if expand_ratio != 1:
        key, kw_, kb_ = jax.random.split(key, 3)
        w = jax.random.normal(kw_, (in_channel, hidden), jnp.float32)
        w = w / jnp.sqrt(in_channel)
        scale, bias = _bn_fold(kb_, hidden)
        p['we'] = _pad_to((w * scale[None, :]).astype(jnp.bfloat16), (cin_p, hid_p))
        p['be'] = _pad_to(bias, (hid_p,)).reshape(1, hid_p)
    key, kw_, kb_ = jax.random.split(key, 3)
    w = jax.random.normal(kw_, (9, hidden), jnp.float32) / 3.0
    scale, bias = _bn_fold(kb_, hidden)
    p['wdw'] = _pad_to(w * scale[None, :], (9, hid_p)).reshape(9, 1, hid_p)
    p['bdw'] = _pad_to(bias, (hid_p,)).reshape(1, 1, hid_p)
    key, kw_, kb_ = jax.random.split(key, 3)
    w = jax.random.normal(kw_, (hidden, out_channel), jnp.float32)
    w = w / jnp.sqrt(hidden)
    scale, bias = _bn_fold(kb_, out_channel)
    p['wp'] = _pad_to((w * scale[None, :]).astype(jnp.bfloat16), (hid_p, cout_p))
    p['bp'] = _pad_to(bias, (cout_p,)).reshape(1, cout_p)
    return p


# ----------------------------------------------------------------------------
# pure-JAX reference (same bf16-cast weights/activations, f32 math)
# ----------------------------------------------------------------------------
def reference_forward(params, x_nchw):
    s = params['stride']
    n, c, height, width = x_nchw.shape
    hi = jax.lax.Precision.HIGHEST
    x = jnp.transpose(x_nchw, (0, 2, 3, 1)).astype(jnp.bfloat16).astype(jnp.float32)
    x = jnp.pad(x, ((0, 0), (0, 0), (0, 0), (0, params['cin_p'] - c)))
    if params['expand_ratio'] != 1:
        y = jnp.einsum('nhwc,cd->nhwd', x, params['we'].astype(jnp.float32),
                       precision=hi)
        y = jnp.clip(y + params['be'], 0.0, 6.0)
    else:
        y = x
    yp = jnp.pad(y, ((0, 0), (1, 1), (1, 1), (0, 0)))
    ho = (height + 2 - 3) // s + 1
    wo = (width + 2 - 3) // s + 1
    acc = jnp.zeros((n, ho, wo, y.shape[-1]), jnp.float32)
    wdw = params['wdw'].astype(jnp.float32)
    for kh in range(3):
        for kw in range(3):
            tap = yp[:, kh:kh + s * (ho - 1) + 1:s,
                     kw:kw + s * (wo - 1) + 1:s, :]
            acc = acc + tap * wdw[kh * 3 + kw, 0]
    dw = jnp.clip(acc + params['bdw'][0], 0.0, 6.0)
    dw = dw.astype(jnp.bfloat16).astype(jnp.float32)   # match in-kernel MXU feed
    out = jnp.einsum('nhwc,cd->nhwd', dw, params['wp'].astype(jnp.float32),
                     precision=hi) + params['bp']
    if params['use_shortcut']:
        out = out + x
    out = out[..., :params['out_channel']]
    return jnp.transpose(out, (0, 3, 1, 2))


# ----------------------------------------------------------------------------
# main
# ----------------------------------------------------------------------------
if __name__ == "__main__":
    root = jax.random.PRNGKey(0)
    kparams, kx = jax.random.split(root)
    x = jax.random.normal(kx, (2, 32, 16, 16), jnp.float32)   # NCHW like PyTorch

    configs = [
        dict(in_channel=32, out_channel=32, stride=1, expand_ratio=6),  # shortcut
        dict(in_channel=32, out_channel=64, stride=2, expand_ratio=6),  # downsample
        dict(in_channel=32, out_channel=16, stride=1, expand_ratio=1),  # no expand
    ]
    for cfg in configs:
        kparams, sub = jax.random.split(kparams)
        params = init_inverted_residual(sub, **cfg)
        fwd = jax.jit(functools.partial(inverted_residual_forward, params))
        y = fwd(x)
        jax.block_until_ready(y)
        y_ref = reference_forward(params, x)
        assert y.shape == y_ref.shape, (y.shape, y_ref.shape)
        assert bool(jnp.all(jnp.isfinite(y)))
        err = float(jnp.max(jnp.abs(y - y_ref)))
        assert err < 5e-2, (cfg, err)

    print("KERNEL_OK")
</pallas_src>

<mosaic_0001>
module attributes {stable_mosaic.version = 11 : i64} {
  func.func @_ir_kernel(%arg0: i32, %arg1: i32, %arg2: memref<1x18x18x128xbf16, #tpu.memory_space<vmem>>, %arg3: memref<128x256xbf16, #tpu.memory_space<vmem>>, %arg4: memref<1x256xf32, #tpu.memory_space<vmem>>, %arg5: memref<9x1x256xf32, #tpu.memory_space<vmem>>, %arg6: memref<1x1x256xf32, #tpu.memory_space<vmem>>, %arg7: memref<256x128xbf16, #tpu.memory_space<vmem>>, %arg8: memref<1x128xf32, #tpu.memory_space<vmem>>, %arg9: memref<1x8x16x128xf32, #tpu.memory_space<vmem>>, %arg10: memref<10x18x256xf32, #tpu.memory_space<vmem>>) attributes {dimension_semantics = [#tpu.dimension_semantics<parallel>, #tpu.dimension_semantics<arbitrary>], iteration_bounds = array<i64: 2, 2>, scalar_prefetch = 0 : i64, scratch_operands = 1 : i64, tpu.core_type = #tpu.core_type<tc>, window_params = [{transform_indices = @transform_0, window_bounds = array<i64: 1, 18, 18, 128>}, {pipeline_mode = #tpu.pipeline_mode<synchronous>, transform_indices = @transform_1, window_bounds = array<i64: 128, 256>}, {pipeline_mode = #tpu.pipeline_mode<synchronous>, transform_indices = @transform_2, window_bounds = array<i64: 1, 256>}, {pipeline_mode = #tpu.pipeline_mode<synchronous>, transform_indices = @transform_3, window_bounds = array<i64: 9, 1, 256>}, {pipeline_mode = #tpu.pipeline_mode<synchronous>, transform_indices = @transform_4, window_bounds = array<i64: 1, 1, 256>}, {pipeline_mode = #tpu.pipeline_mode<synchronous>, transform_indices = @transform_5, window_bounds = array<i64: 256, 128>}, {pipeline_mode = #tpu.pipeline_mode<synchronous>, transform_indices = @transform_6, window_bounds = array<i64: 1, 128>}, {transform_indices = @transform_7, window_bounds = array<i64: 1, 8, 16, 128>}]} {
    %c8_i32 = arith.constant 8 : i32
    %0 = arith.muli %arg1, %c8_i32 : i32
    %c0 = arith.constant 0 : index
    %1 = arith.index_cast %0 : i32 to index
    %c0_0 = arith.constant 0 : index
    %c0_1 = arith.constant 0 : index
    %2 = vector.load %arg2[%c0, %1, %c0_0, %c0_1] : memref<1x18x18x128xbf16, #tpu.memory_space<vmem>>, vector<1x10x18x128xbf16>
    %3 = vector.shape_cast %2 : vector<1x10x18x128xbf16> to vector<10x18x128xbf16>
    %4 = vector.shape_cast %3 : vector<10x18x128xbf16> to vector<180x128xbf16>
    %c0_2 = arith.constant 0 : index
    %c0_3 = arith.constant 0 : index
    %5 = vector.load %arg3[%c0_2, %c0_3] : memref<128x256xbf16, #tpu.memory_space<vmem>>, vector<128x256xbf16>
    %cst = arith.constant dense<0.000000e+00> : vector<180x256xf32>
    %6 = tpu.matmul %4, %5, %cst {dimension_numbers = #tpu.dot_dimension_numbers<[1], [0], [0], [1], [0, 0, 1, 1], [], []>} : vector<180x128xbf16>, vector<128x256xbf16>, vector<180x256xf32> -> vector<180x256xf32>
    %c0_4 = arith.constant 0 : index
    %c0_5 = arith.constant 0 : index
    %7 = vector.load %arg4[%c0_4, %c0_5] : memref<1x256xf32, #tpu.memory_space<vmem>>, vector<1x256xf32>
    %8 = vector.broadcast %7 : vector<1x256xf32> to vector<180x256xf32>
    %9 = arith.addf %6, %8 : vector<180x256xf32>
    %cst_6 = arith.constant 0.000000e+00 : f32
    %cst_7 = arith.constant 6.000000e+00 : f32
    %10 = vector.broadcast %cst_6 : f32 to vector<180x256xf32>
    %11 = arith.maximumf %10, %9 : vector<180x256xf32>
    %12 = vector.broadcast %cst_7 : f32 to vector<180x256xf32>
    %13 = arith.minimumf %12, %11 : vector<180x256xf32>
    %14 = vector.shape_cast %13 : vector<180x256xf32> to vector<10x18x256xf32>
    %15 = tpu.iota {dimensions = array<i32: 0>} : vector<10x18x1xi32>
    %16 = vector.broadcast %0 : i32 to vector<10x18x1xi32>
    %17 = arith.addi %16, %15 : vector<10x18x1xi32>
    %18 = tpu.iota {dimensions = array<i32: 1>} : vector<10x18x1xi32>
    %c1_i32 = arith.constant 1 : i32
    %19 = vector.broadcast %c1_i32 : i32 to vector<10x18x1xi32>
    %20 = arith.cmpi sge, %17, %19 : vector<10x18x1xi32>
    %c16_i32 = arith.constant 16 : i32
    %21 = vector.broadcast %c16_i32 : i32 to vector<10x18x1xi32>
    %22 = arith.cmpi sle, %17, %21 : vector<10x18x1xi32>
    %23 = arith.andi %20, %22 : vector<10x18x1xi1>
    %c1_i32_8 = arith.constant 1 : i32
    %24 = vector.broadcast %c1_i32_8 : i32 to vector<10x18x1xi32>
    %25 = arith.cmpi sge, %18, %24 : vector<10x18x1xi32>
    %26 = arith.andi %23, %25 : vector<10x18x1xi1>
    %c16_i32_9 = arith.constant 16 : i32
    %27 = vector.broadcast %c16_i32_9 : i32 to vector<10x18x1xi32>
    %28 = arith.cmpi sle, %18, %27 : vector<10x18x1xi32>
    %29 = arith.andi %26, %28 : vector<10x18x1xi1>
    %cst_10 = arith.constant 0.000000e+00 : f32
    %30 = vector.shape_cast %29 : vector<10x18x1xi1> to vector<10x18x1xi1>
    %31 = vector.broadcast %30 : vector<10x18x1xi1> to vector<10x18x256xi1>
    %32 = vector.broadcast %cst_10 : f32 to vector<10x18x256xf32>
    %33 = arith.select %31, %14, %32 : vector<10x18x256xi1>, vector<10x18x256xf32>
    %c0_11 = arith.constant 0 : index
    %c0_12 = arith.constant 0 : index
    %c0_13 = arith.constant 0 : index
    %34 = vector.load %arg10[%c0_11, %c0_12, %c0_13] : memref<10x18x256xf32, #tpu.memory_space<vmem>>, vector<10x18x256xf32>
    tpu.vector_store %arg10[%c0_11, %c0_12, %c0_13], %33 {strides = array<i32>} : memref<10x18x256xf32, #tpu.memory_space<vmem>>, vector<10x18x256xf32>,
    %cst_14 = arith.constant 0.000000e+00 : f32
    %35 = vector.broadcast %cst_14 : f32 to vector<8x16x256xf32>
    %c0_15 = arith.constant 0 : index
    %c0_16 = arith.constant 0 : index
    %c0_17 = arith.constant 0 : index
    %36 = vector.load %arg10[%c0_15, %c0_16, %c0_17] : memref<10x18x256xf32, #tpu.memory_space<vmem>>, vector<8x16x256xf32>
    %c0_18 = arith.constant 0 : index
    %c0_19 = arith.constant 0 : index
    %c0_20 = arith.constant 0 : index
    %37 = vector.load %arg5[%c0_18, %c0_19, %c0_20] : memref<9x1x256xf32, #tpu.memory_space<vmem>>, vector<1x1x256xf32>
    %38 = vector.shape_cast %37 : vector<1x1x256xf32> to vector<1x256xf32>
    %39 = vector.shape_cast %38 : vector<1x256xf32> to vector<1x1x256xf32>
    %40 = vector.broadcast %39 : vector<1x1x256xf32> to vector<8x16x256xf32>
    %41 = arith.mulf %36, %40 : vector<8x16x256xf32>
    %42 = arith.addf %35, %41 : vector<8x16x256xf32>
    %c0_21 = arith.constant 0 : index
    %c1 = arith.constant 1 : index
    %c0_22 = arith.constant 0 : index
    %43 = vector.load %arg10[%c0_21, %c1, %c0_22] : memref<10x18x256xf32, #tpu.memory_space<vmem>>, vector<8x16x256xf32>
    %c1_23 = arith.constant 1 : index
    %c0_24 = arith.constant 0 : index
    %c0_25 = arith.constant 0 : index
    %44 = vector.load %arg5[%c1_23, %c0_24, %c0_25] : memref<9x1x256xf32, #tpu.memory_space<vmem>>, vector<1x1x256xf32>
    %45 = vector.shape_cast %44 : vector<1x1x256xf32> to vector<1x256xf32>
    %46 = vector.shape_cast %45 : vector<1x256xf32> to vector<1x1x256xf32>
    %47 = vector.broadcast %46 : vector<1x1x256xf32> to vector<8x16x256xf32>
    %48 = arith.mulf %43, %47 : vector<8x16x256xf32>
    %49 = arith.addf %42, %48 : vector<8x16x256xf32>
    %c0_26 = arith.constant 0 : index
    %c2 = arith.constant 2 : index
    %c0_27 = arith.constant 0 : index
    %50 = vector.load %arg10[%c0_26, %c2, %c0_27] : memref<10x18x256xf32, #tpu.memory_space<vmem>>, vector<8x16x256xf32>
    %c2_28 = arith.constant 2 : index
    %c0_29 = arith.constant 0 : index
    %c0_30 = arith.constant 0 : index
    %51 = vector.load %arg5[%c2_28, %c0_29, %c0_30] : memref<9x1x256xf32, #tpu.memory_space<vmem>>, vector<1x1x256xf32>
    %52 = vector.shape_cast %51 : vector<1x1x256xf32> to vector<1x256xf32>
    %53 = vector.shape_cast %52 : vector<1x256xf32> to vector<1x1x256xf32>
    %54 = vector.broadcast %53 : vector<1x1x256xf32> to vector<8x16x256xf32>
    %55 = arith.mulf %50, %54 : vector<8x16x256xf32>
    %56 = arith.addf %49, %55 : vector<8x16x256xf32>
    %c1_31 = arith.constant 1 : index
    %c0_32 = arith.constant 0 : index
    %c0_33 = arith.constant 0 : index
    %57 = vector.load %arg10[%c1_31, %c0_32, %c0_33] : memref<10x18x256xf32, #tpu.memory_space<vmem>>, vector<8x16x256xf32>
    %c3 = arith.constant 3 : index
    %c0_34 = arith.constant 0 : index
    %c0_35 = arith.constant 0 : index
    %58 = vector.load %arg5[%c3, %c0_34, %c0_35] : memref<9x1x256xf32, #tpu.memory_space<vmem>>, vector<1x1x256xf32>
    %59 = vector.shape_cast %58 : vector<1x1x256xf32> to vector<1x256xf32>
    %60 = vector.shape_cast %59 : vector<1x256xf32> to vector<1x1x256xf32>
    %61 = vector.broadcast %60 : vector<1x1x256xf32> to vector<8x16x256xf32>
    %62 = arith.mulf %57, %61 : vector<8x16x256xf32>
    %63 = arith.addf %56, %62 : vector<8x16x256xf32>
    %c1_36 = arith.constant 1 : index
    %c1_37 = arith.constant 1 : index
    %c0_38 = arith.constant 0 : index
    %64 = vector.load %arg10[%c1_36, %c1_37, %c0_38] : memref<10x18x256xf32, #tpu.memory_space<vmem>>, vector<8x16x256xf32>
    %c4 = arith.constant 4 : index
    %c0_39 = arith.constant 0 : index
    %c0_40 = arith.constant 0 : index
    %65 = vector.load %arg5[%c4, %c0_39, %c0_40] : memref<9x1x256xf32, #tpu.memory_space<vmem>>, vector<1x1x256xf32>
    %66 = vector.shape_cast %65 : vector<1x1x256xf32> to vector<1x256xf32>
    %67 = vector.shape_cast %66 : vector<1x256xf32> to vector<1x1x256xf32>
    %68 = vector.broadcast %67 : vector<1x1x256xf32> to vector<8x16x256xf32>
    %69 = arith.mulf %64, %68 : vector<8x16x256xf32>
    %70 = arith.addf %63, %69 : vector<8x16x256xf32>
    %c1_41 = arith.constant 1 : index
    %c2_42 = arith.constant 2 : index
    %c0_43 = arith.constant 0 : index
    %71 = vector.load %arg10[%c1_41, %c2_42, %c0_43] : memref<10x18x256xf32, #tpu.memory_space<vmem>>, vector<8x16x256xf32>
    %c5 = arith.constant 5 : index
    %c0_44 = arith.constant 0 : index
    %c0_45 = arith.constant 0 : index
    %72 = vector.load %arg5[%c5, %c0_44, %c0_45] : memref<9x1x256xf32, #tpu.memory_space<vmem>>, vector<1x1x256xf32>
    %73 = vector.shape_cast %72 : vector<1x1x256xf32> to vector<1x256xf32>
    %74 = vector.shape_cast %73 : vector<1x256xf32> to vector<1x1x256xf32>
    %75 = vector.broadcast %74 : vector<1x1x256xf32> to vector<8x16x256xf32>
    %76 = arith.mulf %71, %75 : vector<8x16x256xf32>
    %77 = arith.addf %70, %76 : vector<8x16x256xf32>
    %c2_46 = arith.constant 2 : index
    %c0_47 = arith.constant 0 : index
    %c0_48 = arith.constant 0 : index
    %78 = vector.load %arg10[%c2_46, %c0_47, %c0_48] : memref<10x18x256xf32, #tpu.memory_space<vmem>>, vector<8x16x256xf32>
    %c6 = arith.constant 6 : index
    %c0_49 = arith.constant 0 : index
    %c0_50 = arith.constant 0 : index
    %79 = vector.load %arg5[%c6, %c0_49, %c0_50] : memref<9x1x256xf32, #tpu.memory_space<vmem>>, vector<1x1x256xf32>
    %80 = vector.shape_cast %79 : vector<1x1x256xf32> to vector<1x256xf32>
    %81 = vector.shape_cast %80 : vector<1x256xf32> to vector<1x1x256xf32>
    %82 = vector.broadcast %81 : vector<1x1x256xf32> to vector<8x16x256xf32>
    %83 = arith.mulf %78, %82 : vector<8x16x256xf32>
    %84 = arith.addf %77, %83 : vector<8x16x256xf32>
    %c2_51 = arith.constant 2 : index
    %c1_52 = arith.constant 1 : index
    %c0_53 = arith.constant 0 : index
    %85 = vector.load %arg10[%c2_51, %c1_52, %c0_53] : memref<10x18x256xf32, #tpu.memory_space<vmem>>, vector<8x16x256xf32>
    %c7 = arith.constant 7 : index
    %c0_54 = arith.constant 0 : index
    %c0_55 = arith.constant 0 : index
    %86 = vector.load %arg5[%c7, %c0_54, %c0_55] : memref<9x1x256xf32, #tpu.memory_space<vmem>>, vector<1x1x256xf32>
    %87 = vector.shape_cast %86 : vector<1x1x256xf32> to vector<1x256xf32>
    %88 = vector.shape_cast %87 : vector<1x256xf32> to vector<1x1x256xf32>
    %89 = vector.broadcast %88 : vector<1x1x256xf32> to vector<8x16x256xf32>
    %90 = arith.mulf %85, %89 : vector<8x16x256xf32>
    %91 = arith.addf %84, %90 : vector<8x16x256xf32>
    %c2_56 = arith.constant 2 : index
    %c2_57 = arith.constant 2 : index
    %c0_58 = arith.constant 0 : index
    %92 = vector.load %arg10[%c2_56, %c2_57, %c0_58] : memref<10x18x256xf32, #tpu.memory_space<vmem>>, vector<8x16x256xf32>
    %c8 = arith.constant 8 : index
    %c0_59 = arith.constant 0 : index
    %c0_60 = arith.constant 0 : index
    %93 = vector.load %arg5[%c8, %c0_59, %c0_60] : memref<9x1x256xf32, #tpu.memory_space<vmem>>, vector<1x1x256xf32>
    %94 = vector.shape_cast %93 : vector<1x1x256xf32> to vector<1x256xf32>
    %95 = vector.shape_cast %94 : vector<1x256xf32> to vector<1x1x256xf32>
    %96 = vector.broadcast %95 : vector<1x1x256xf32> to vector<8x16x256xf32>
    %97 = arith.mulf %92, %96 : vector<8x16x256xf32>
    %98 = arith.addf %91, %97 : vector<8x16x256xf32>
    %c0_61 = arith.constant 0 : index
    %c0_62 = arith.constant 0 : index
    %c0_63 = arith.constant 0 : index
    %99 = vector.load %arg6[%c0_61, %c0_62, %c0_63] : memref<1x1x256xf32, #tpu.memory_space<vmem>>, vector<1x1x256xf32>
    %100 = vector.shape_cast %99 : vector<1x1x256xf32> to vector<1x256xf32>
    %101 = vector.shape_cast %100 : vector<1x256xf32> to vector<1x1x256xf32>
    %102 = vector.broadcast %101 : vector<1x1x256xf32> to vector<8x16x256xf32>
    %103 = arith.addf %98, %102 : vector<8x16x256xf32>
    %cst_64 = arith.constant 0.000000e+00 : f32
    %cst_65 = arith.constant 6.000000e+00 : f32
    %104 = vector.broadcast %cst_64 : f32 to vector<8x16x256xf32>
    %105 = arith.maximumf %104, %103 : vector<8x16x256xf32>
    %106 = vector.broadcast %cst_65 : f32 to vector<8x16x256xf32>
    %107 = arith.minimumf %106, %105 : vector<8x16x256xf32>
    %108 = arith.truncf %107 : vector<8x16x256xf32> to vector<8x16x256xbf16>
    %109 = vector.shape_cast %108 : vector<8x16x256xbf16> to vector<128x256xbf16>
    %c0_66 = arith.constant 0 : index
    %c0_67 = arith.constant 0 : index
    %110 = vector.load %arg7[%c0_66, %c0_67] : memref<256x128xbf16, #tpu.memory_space<vmem>>, vector<256x128xbf16>
    %cst_68 = arith.constant dense<0.000000e+00> : vector<128x128xf32>
    %111 = tpu.matmul %109, %110, %cst_68 {dimension_numbers = #tpu.dot_dimension_numbers<[1], [0], [0], [1], [0, 0, 1, 1], [], []>} : vector<128x256xbf16>, vector<256x128xbf16>, vector<128x128xf32> -> vector<128x128xf32>
    %c0_69 = arith.constant 0 : index
    %c0_70 = arith.constant 0 : index
    %112 = vector.load %arg8[%c0_69, %c0_70] : memref<1x128xf32, #tpu.memory_space<vmem>>, vector<1x128xf32>
    %113 = vector.broadcast %112 : vector<1x128xf32> to vector<128x128xf32>
    %114 = arith.addf %111, %113 : vector<128x128xf32>
    %c8_i32_71 = arith.constant 8 : i32
    %115 = arith.muli %arg1, %c8_i32_71 : i32
    %c1_i32_72 = arith.constant 1 : i32
    %116 = arith.addi %c1_i32_72, %115 : i32
    %c0_73 = arith.constant 0 : index
    %117 = arith.index_cast %116 : i32 to index
    %c1_74 = arith.constant 1 : index
    %c0_75 = arith.constant 0 : index
    %118 = vector.load %arg2[%c0_73, %117, %c1_74, %c0_75] : memref<1x18x18x128xbf16, #tpu.memory_space<vmem>>, vector<1x8x16x128xbf16>
    %119 = vector.shape_cast %118 : vector<1x8x16x128xbf16> to vector<8x16x128xbf16>
    %120 = vector.shape_cast %119 : vector<8x16x128xbf16> to vector<128x128xbf16>
    %121 = arith.extf %120 : vector<128x128xbf16> to vector<128x128xf32>
    %122 = arith.addf %114, %121 : vector<128x128xf32>
    %123 = vector.shape_cast %122 : vector<128x128xf32> to vector<8x16x128xf32>
    %c0_76 = arith.constant 0 : index
    %c0_77 = arith.constant 0 : index
    %c0_78 = arith.constant 0 : index
    %c0_79 = arith.constant 0 : index
    %124 = vector.load %arg9[%c0_76, %c0_77, %c0_78, %c0_79] : memref<1x8x16x128xf32, #tpu.memory_space<vmem>>, vector<1x8x16x128xf32>
    %125 = vector.shape_cast %124 : vector<1x8x16x128xf32> to vector<8x16x128xf32>
    %126 = vector.shape_cast %123 : vector<8x16x128xf32> to vector<1x8x16x128xf32>
    tpu.vector_store %arg9[%c0_76, %c0_77, %c0_78, %c0_79], %126 {strides = array<i32>} : memref<1x8x16x128xf32, #tpu.memory_space<vmem>>, vector<1x8x16x128xf32>,
    return
  }
  func.func @transform_0(%arg0: i32, %arg1: i32) -> (i32, i32, i32, i32) {
    %c0_i32 = arith.constant 0 : i32
    %c0_i32_0 = arith.constant 0 : i32
    %c0_i32_1 = arith.constant 0 : i32
    %c0_i32_2 = arith.constant 0 : i32
    return %arg0, %c0_i32, %c0_i32_0, %c0_i32_1 : i32, i32, i32, i32
  }
  func.func @transform_1(%arg0: i32, %arg1: i32) -> (i32, i32) {
    %c0_i32 = arith.constant 0 : i32
    %c0_i32_0 = arith.constant 0 : i32
    %c0_i32_1 = arith.constant 0 : i32
    return %c0_i32, %c0_i32_0 : i32, i32
  }
  func.func @transform_2(%arg0: i32, %arg1: i32) -> (i32, i32) {
    %c0_i32 = arith.constant 0 : i32
    %c0_i32_0 = arith.constant 0 : i32
    %c0_i32_1 = arith.constant 0 : i32
    return %c0_i32, %c0_i32_0 : i32, i32
  }
  func.func @transform_3(%arg0: i32, %arg1: i32) -> (i32, i32, i32) {
    %c0_i32 = arith.constant 0 : i32
    %c0_i32_0 = arith.constant 0 : i32
    %c0_i32_1 = arith.constant 0 : i32
    %c0_i32_2 = arith.constant 0 : i32
    return %c0_i32, %c0_i32_0, %c0_i32_1 : i32, i32, i32
  }
  func.func @transform_4(%arg0: i32, %arg1: i32) -> (i32, i32, i32) {
    %c0_i32 = arith.constant 0 : i32
    %c0_i32_0 = arith.constant 0 : i32
    %c0_i32_1 = arith.constant 0 : i32
    %c0_i32_2 = arith.constant 0 : i32
    return %c0_i32, %c0_i32_0, %c0_i32_1 : i32, i32, i32
  }
  func.func @transform_5(%arg0: i32, %arg1: i32) -> (i32, i32) {
    %c0_i32 = arith.constant 0 : i32
    %c0_i32_0 = arith.constant 0 : i32
    %c0_i32_1 = arith.constant 0 : i32
    return %c0_i32, %c0_i32_0 : i32, i32
  }
  func.func @transform_6(%arg0: i32, %arg1: i32) -> (i32, i32) {
    %c0_i32 = arith.constant 0 : i32
    %c0_i32_0 = arith.constant 0 : i32
    %c0_i32_1 = arith.constant 0 : i32
    return %c0_i32, %c0_i32_0 : i32, i32
  }
  func.func @transform_7(%arg0: i32, %arg1: i32) -> (i32, i32, i32, i32) {
    %c0_i32 = arith.constant 0 : i32
    %c0_i32_0 = arith.constant 0 : i32
    %c0_i32_1 = arith.constant 0 : i32
    return %arg0, %arg1, %c0_i32, %c0_i32_0 : i32, i32, i32, i32
  }
}

</mosaic_0001>

<llo_original>
// kernel: inverted_residual_forward.1
$region0: #{inverted_residual_forward.1}
  #allocation0 [shape = 'u32[]', space=smem, size = 0x4, offset = 0x4, fixed_abs, tag = 'smem constant byte address 0x4 - core index']
  #allocation1 [shape = 'u32[144,128]{1,0:T(1,128)}', space=vmem, size = 0x12000, scoped, tag = 'internal scratch']
  #allocation2 [shape = 'f32[10,18,256]{2,1,0:T(8,128)}', space=vmem, size = 0x3c000, scoped, tag = 'scratch operand']
  %s0 = inlined_call_operand.vmem [shape: bf16[2,18,18,128], index: 0, kind: input, shape index: {}]
  %s1 = inlined_call_operand.vmem [shape: bf16[128,256], index: 1, kind: input, shape index: {}]
  %s2 = inlined_call_operand.vmem [shape: f32[1,256], index: 2, kind: input, shape index: {}]
  %s3 = inlined_call_operand.vmem [shape: f32[9,1,256], index: 3, kind: input, shape index: {}]
  %s4 = inlined_call_operand.vmem [shape: f32[1,1,256], index: 4, kind: input, shape index: {}]
  %s5 = inlined_call_operand.vmem [shape: bf16[256,128], index: 5, kind: input, shape index: {}]
  %s6 = inlined_call_operand.vmem [shape: f32[1,128], index: 6, kind: input, shape index: {}]
  %s7 = inlined_call_operand.vmem [shape: f32[2,16,16,128], index: 7, kind: output, shape index: {}]
  %s8 = sld [smem:[#allocation0]]
  $region61: #{inverted_residual_forward.1} parent=0
    _
  %s10 = ssub.s32 1, %s8
  %s11 = scalar_select 0, %s10, %s8
  loop: start=0, step=1, limit=6
  $region2: #{inverted_residual_forward.1} parent=0 // loop_pre_header
    _
  $region3: #{inverted_residual_forward.1} parent=0 // loop_header
    %s13 = sphi 0, %s17
    %p14 = scmp.ge.s32.totalorder %s13, 6
    %s20 = sphi 0, %s32
    %s21 = sphi 0, %s28
    %s22 = sphi 0, %s20
    %s23 = sphi 0, %s21
    %s24 = sphi 0, %s22
    %s25 = sphi 0, %s23
    %s35 = sphi 0, %s37
    %s38 = sphi 0, %s35
    %s39 = sphi 0, %s38
    %s55 = sphi 0, %s39
    %s59 = sphi 0, %s59
    %s61 = sphi 0, %s59
    %s62 = sphi 0, %s61
    %s76 = sphi 0, %s62
    %s80 = sphi 0, %s80
    %s82 = sphi 0, %s80
    %s83 = sphi 0, %s82
    %s97 = sphi 0, %s83
    %s101 = sphi 0, %s101
    %s103 = sphi 0, %s101
    %s104 = sphi 0, %s103
    %s118 = sphi 0, %s104
    %s122 = sphi 0, %s122
    %s124 = sphi 0, %s122
    %s125 = sphi 0, %s124
    %s139 = sphi 0, %s125
    %s143 = sphi 0, %s143
    %s145 = sphi 0, %s143
    %s146 = sphi 0, %s145
    %s160 = sphi 0, %s146
    %s164 = sphi 0, %s164
    %s166 = sphi 0, %s164
    %s167 = sphi 0, %s166
    %s181 = sphi 0, %s167
    %s189 = sphi 0, %s191
    %s192 = sphi 0, %s189
    %s193 = sphi 0, %s192
    %s209 = sphi 0, %s193
  $region4: #{inverted_residual_forward.1} parent=0 // loop_header_branch
    %16 = sbr.rel (%p14) target = $region8
  $region5: #{inverted_residual_forward.1} parent=0 // loop_body
    %s18 = ssub.s32 %s13, 1
    %s19 = ssub.s32 %s13, 2
    %s26 = sadd.s32 1, %s21
    %p27 = scmp.ge.s32.totalorder %s26, 2
    %s28 = scalar_select %p27, 0, %s26
    %s29 = sadd.s32 1, %s20
    %s30 = scalar_select %p27, %s29, %s20
    %p31 = scmp.ge.s32.totalorder %s30, 2
    %s32 = scalar_select %p31, 0, %s30
    %s33 = ssub.s32 %s20, %s32
    %p34 = scmp.eq.s32.totalorder %s33, 0
    %s36 = sadd.s32 %s35, 1
    %s37 = scalar_select %p34, %s35, %s36
    %p40 = pneg %p34
    %p41 = scmp.eq.s32.totalorder %s13, 3
    %p42 = por %p40, %p41
    %p43 = scmp.ne.s32.totalorder %s35, %s38
    %p44 = scmp.eq.s32.totalorder %s13, 0
    %p45 = por %p43, %p44
    %p46 = scmp.ne.s32.totalorder %s35, %s38
    %p47 = scmp.eq.s32.totalorder %s18, 3
    %p48 = por %p46, %p47
    %p49 = scmp.ne.s32.totalorder %s38, %s39
    %p50 = scmp.eq.s32.totalorder %s18, 0
    %p51 = por %p49, %p50
    %p52 = scmp.ne.s32.totalorder %s38, %s39
    %p53 = scmp.eq.s32.totalorder %s19, 3
    %p54 = por %p52, %p53
    %p56 = scmp.ne.s32.totalorder %s39, %s55
    %p57 = scmp.eq.s32.totalorder %s19, 0
    %p58 = por %p56, %p57
    %s60 = sadd.s32 %s59, 1
    %p63 = scmp.eq.s32.totalorder %s13, 3
    %p64 = scmp.ne.s32.totalorder %s59, %s61
    %p65 = scmp.eq.s32.totalorder %s13, 0
    %p66 = por %p64, %p65
    %p67 = scmp.ne.s32.totalorder %s59, %s61
    %p68 = scmp.eq.s32.totalorder %s18, 3
    %p69 = por %p67, %p68
    %p70 = scmp.ne.s32.totalorder %s61, %s62
    %p71 = scmp.eq.s32.totalorder %s18, 0
    %p72 = por %p70, %p71
    %p73 = scmp.ne.s32.totalorder %s61, %s62
    %p74 = scmp.eq.s32.totalorder %s19, 3
    %p75 = por %p73, %p74
    %p77 = scmp.ne.s32.totalorder %s62, %s76
    %p78 = scmp.eq.s32.totalorder %s19, 0
    %p79 = por %p77, %p78
    %s81 = sadd.s32 %s80, 1
    %p84 = scmp.eq.s32.totalorder %s13, 3
    %p85 = scmp.ne.s32.totalorder %s80, %s82
    %p86 = scmp.eq.s32.totalorder %s13, 0
    %p87 = por %p85, %p86
    %p88 = scmp.ne.s32.totalorder %s80, %s82
    %p89 = scmp.eq.s32.totalorder %s18, 3
    %p90 = por %p88, %p89
    %p91 = scmp.ne.s32.totalorder %s82, %s83
    %p92 = scmp.eq.s32.totalorder %s18, 0
    %p93 = por %p91, %p92
    %p94 = scmp.ne.s32.totalorder %s82, %s83
    %p95 = scmp.eq.s32.totalorder %s19, 3
    %p96 = por %p94, %p95
    %p98 = scmp.ne.s32.totalorder %s83, %s97
    %p99 = scmp.eq.s32.totalorder %s19, 0
    %p100 = por %p98, %p99
    %s102 = sadd.s32 %s101, 1
    %p105 = scmp.eq.s32.totalorder %s13, 3
    %p106 = scmp.ne.s32.totalorder %s101, %s103
    %p107 = scmp.eq.s32.totalorder %s13, 0
    %p108 = por %p106, %p107
    %p109 = scmp.ne.s32.totalorder %s101, %s103
    %p110 = scmp.eq.s32.totalorder %s18, 3
    %p111 = por %p109, %p110
    %p112 = scmp.ne.s32.totalorder %s103, %s104
    %p113 = scmp.eq.s32.totalorder %s18, 0
    %p114 = por %p112, %p113
    %p115 = scmp.ne.s32.totalorder %s103, %s104
    %p116 = scmp.eq.s32.totalorder %s19, 3
    %p117 = por %p115, %p116
    %p119 = scmp.ne.s32.totalorder %s104, %s118
    %p120 = scmp.eq.s32.totalorder %s19, 0
    %p121 = por %p119, %p120
    %s123 = sadd.s32 %s122, 1
    %p126 = scmp.eq.s32.totalorder %s13, 3
    %p127 = scmp.ne.s32.totalorder %s122, %s124
    %p128 = scmp.eq.s32.totalorder %s13, 0
    %p129 = por %p127, %p128
    %p130 = scmp.ne.s32.totalorder %s122, %s124
    %p131 = scmp.eq.s32.totalorder %s18, 3
    %p132 = por %p130, %p131
    %p133 = scmp.ne.s32.totalorder %s124, %s125
    %p134 = scmp.eq.s32.totalorder %s18, 0
    %p135 = por %p133, %p134
    %p136 = scmp.ne.s32.totalorder %s124, %s125
    %p137 = scmp.eq.s32.totalorder %s19, 3
    %p138 = por %p136, %p137
    %p140 = scmp.ne.s32.totalorder %s125, %s139
    %p141 = scmp.eq.s32.totalorder %s19, 0
    %p142 = por %p140, %p141
    %s144 = sadd.s32 %s143, 1
    %p147 = scmp.eq.s32.totalorder %s13, 3
    %p148 = scmp.ne.s32.totalorder %s143, %s145
    %p149 = scmp.eq.s32.totalorder %s13, 0
    %p150 = por %p148, %p149
    %p151 = scmp.ne.s32.totalorder %s143, %s145
    %p152 = scmp.eq.s32.totalorder %s18, 3
    %p153 = por %p151, %p152
    %p154 = scmp.ne.s32.totalorder %s145, %s146
    %p155 = scmp.eq.s32.totalorder %s18, 0
    %p156 = por %p154, %p155
    %p157 = scmp.ne.s32.totalorder %s145, %s146
    %p158 = scmp.eq.s32.totalorder %s19, 3
    %p159 = por %p157, %p158
    %p161 = scmp.ne.s32.totalorder %s146, %s160
    %p162 = scmp.eq.s32.totalorder %s19, 0
    %p163 = por %p161, %p162
    %s165 = sadd.s32 %s164, 1
    %p168 = scmp.eq.s32.totalorder %s13, 3
    %p169 = scmp.ne.s32.totalorder %s164, %s166
    %p170 = scmp.eq.s32.totalorder %s13, 0
    %p171 = por %p169, %p170
    %p172 = scmp.ne.s32.totalorder %s164, %s166
    %p173 = scmp.eq.s32.totalorder %s18, 3
    %p174 = por %p172, %p173
    %p175 = scmp.ne.s32.totalorder %s166, %s167
    %p176 = scmp.eq.s32.totalorder %s18, 0
    %p177 = por %p175, %p176
    %p178 = scmp.ne.s32.totalorder %s166, %s167
    %p179 = scmp.eq.s32.totalorder %s19, 3
    %p180 = por %p178, %p179
    %p182 = scmp.ne.s32.totalorder %s167, %s181
    %p183 = scmp.eq.s32.totalorder %s19, 0
    %p184 = por %p182, %p183
    %s185 = ssub.s32 %s20, %s32
    %s186 = ssub.s32 %s21, %s28
    %s187 = sor.u32 %s185, %s186
    %p188 = scmp.eq.s32.totalorder %s187, 0
    %s190 = sadd.s32 %s189, 1
    %s191 = scalar_select %p188, %s189, %s190
    %p194 = pneg %p188
    %p195 = scmp.eq.s32.totalorder %s13, 3
    %p196 = por %p194, %p195
    %p197 = scmp.ne.s32.totalorder %s189, %s192
    %p198 = scmp.eq.s32.totalorder %s13, 0
    %p199 = por %p197, %p198
    %p200 = scmp.ne.s32.totalorder %s189, %s192
    %p201 = scmp.eq.s32.totalorder %s18, 3
    %p202 = por %p200, %p201
    %p203 = scmp.ne.s32.totalorder %s192, %s193
    %p204 = scmp.eq.s32.totalorder %s18, 0
    %p205 = por %p203, %p204
    %p206 = scmp.ne.s32.totalorder %s192, %s193
    %p207 = scmp.eq.s32.totalorder %s19, 3
    %p208 = por %p206, %p207
    %p210 = scmp.ne.s32.totalorder %s193, %s209
    %p211 = scmp.eq.s32.totalorder %s19, 0
    %p212 = por %p210, %p211
    %p213 = scmp.le.s32.totalorder 1, %s13
    %p214 = scmp.lt.s32.totalorder %s13, 5
    %p215 = pnand %p213, %p214
    %p216 = pneg %p215
    // Predicated region
    $region9: #{inverted_residual_forward.1} parent=5 // pred_check
      _
    $region10: #{inverted_residual_forward.1} parent=5 // pred_check_branch
      %218 = sbr.rel (%p215) target = $region12
    $region11: #{inverted_residual_forward.1} parent=5 // pred_region
      %s219 = ssub.s32 %s13, 1
      // Predicated region
      $region13: #{inverted_residual_forward.1} parent=11 // pred_check
        %p220 = pneg %p72
      $region14: #{inverted_residual_forward.1} parent=11 // pred_check_branch
        %222 = sbr.rel (%p220) target = $region16
      $region15: #{inverted_residual_forward.1} parent=11 // pred_region
        _
      $region16: #{inverted_residual_forward.1} parent=11 // pred_fallthru
        _
      // Predicated region
      $region17: #{inverted_residual_forward.1} parent=11 // pred_check
        %p223 = pneg %p93
      $region18: #{inverted_residual_forward.1} parent=11 // pred_check_branch
        %225 = sbr.rel (%p223) target = $region20
      $region19: #{inverted_residual_forward.1} parent=11 // pred_region
        _
      $region20: #{inverted_residual_forward.1} parent=11 // pred_fallthru
        _
      // Predicated region
      $region21: #{inverted_residual_forward.1} parent=11 // pred_check
        %p226 = pneg %p114
      $region22: #{inverted_residual_forward.1} parent=11 // pred_check_branch
        %228 = sbr.rel (%p226) target = $region24
      $region23: #{inverted_residual_forward.1} parent=11 // pred_region
        _
      $region24: #{inverted_residual_forward.1} parent=11 // pred_fallthru
        _
      // Predicated region
      $region25: #{inverted_residual_forward.1} parent=11 // pred_check
        %p229 = pneg %p135
      $region26: #{inverted_residual_forward.1} parent=11 // pred_check_branch
        %231 = sbr.rel (%p229) target = $region28
      $region27: #{inverted_residual_forward.1} parent=11 // pred_region
        _
      $region28: #{inverted_residual_forward.1} parent=11 // pred_fallthru
        _
      // Predicated region
      $region29: #{inverted_residual_forward.1} parent=11 // pred_check
        %p232 = pneg %p156
      $region30: #{inverted_residual_forward.1} parent=11 // pred_check_branch
        %234 = sbr.rel (%p232) target = $region32
      $region31: #{inverted_residual_forward.1} parent=11 // pred_region
        _
      $region32: #{inverted_residual_forward.1} parent=11 // pred_fallthru
        _
      // Predicated region
      $region33: #{inverted_residual_forward.1} parent=11 // pred_check
        %p235 = pneg %p177
      $region34: #{inverted_residual_forward.1} parent=11 // pred_check_branch
        %237 = sbr.rel (%p235) target = $region36
      $region35: #{inverted_residual_forward.1} parent=11 // pred_region
        _
      $region36: #{inverted_residual_forward.1} parent=11 // pred_fallthru
        _
    $region12: #{inverted_residual_forward.1} parent=5 // pred_fallthru
      _
    %p238 = scmp.lt.s32.totalorder %s13, 4
    // Predicated region
    $region37: #{inverted_residual_forward.1} parent=5 // pred_check
      %p239 = pneg %p238
    $region38: #{inverted_residual_forward.1} parent=5 // pred_check_branch
      %241 = sbr.rel (%p239) target = $region40
    $region39: #{inverted_residual_forward.1} parent=5 // pred_region
      // Predicated region
      $region41: #{inverted_residual_forward.1} parent=39 // pred_check
        %p242 = pneg %p45
      $region42: #{inverted_residual_forward.1} parent=39 // pred_check_branch
        %244 = sbr.rel (%p242) target = $region44
      $region43: #{inverted_residual_forward.1} parent=39 // pred_region
        %p245 = scmp.lt.s32.totalorder %s20, 1
        %s246 = scalar_select %p245, %s20, 1
        %s247 = smul.addr %s246, 54
        %s248 = smul.addr %s247, 4
        %s249 = scalar_lea.vmem %s0, %s248
      $region44: #{inverted_residual_forward.1} parent=39 // pred_fallthru
        _
    $region40: #{inverted_residual_forward.1} parent=5 // pred_fallthru
      _
    %p250 = scmp.le.s32.totalorder 1, %s13
    %p251 = scmp.lt.s32.totalorder %s13, 5
    %p252 = pnand %p250, %p251
    %p253 = pneg %p252
    // Predicated region
    $region45: #{inverted_residual_forward.1} parent=5 // pred_check
      _
    $region46: #{inverted_residual_forward.1} parent=5 // pred_check_branch
      %255 = sbr.rel (%p252) target = $region48
    $region47: #{inverted_residual_forward.1} parent=5 // pred_region
      %s256 = ssub.s32 %s13, 1
      %p257 = scmp.lt.s32.totalorder %s22, 1
      %s258 = scalar_select %p257, %s22, 1
      %s259 = smul.addr %s258, 54
      %s260 = smul.addr %s259, 4
      %s261 = scalar_lea.vmem %s0, %s260
      %p262 = pneg %p51
      %p263 = pneg %p48
      %p264 = pneg %p72
      %p265 = pneg %p69
      %p266 = pneg %p93
      %p267 = pneg %p90
      %p268 = pneg %p114
      %p269 = pneg %p111
      %p270 = pneg %p135
      %p271 = pneg %p132
      %p272 = pneg %p156
      %p273 = pneg %p153
      %p274 = pneg %p177
      %p275 = pneg %p174
      %p276 = pneg %p205
      %p277 = pneg %p202
      %s278 = smul.u32 8, %s23
      %p279 = scmp.lt.s32.totalorder %s22, 1
      %s280 = scalar_select %p279, %s22, 1
      %p281 = scmp.lt.s32.totalorder %s278, 15
      %s282 = scalar_select %p281, %s278, 15
      %s283 = smul.addr %s282, 2
      %s284 = smul.addr %s280, 32
      %s285 = sadd.s32 %s283, %s284
      %s286 = smul.addr %s285, 8
      %s287 = scalar_lea.vmem %s7, %s286
      %p288 = scmp.lt.s32.totalorder %s22, 1
      %s289 = scalar_select %p288, %s22, 1
      %s290 = smul.addr %s289, 54
      %s291 = smul.addr %s290, 4
      %s292 = scalar_lea.vmem %s0, %s291
      %s293 = smul.u32 8, %s23
      %p294 = scmp.lt.s32.totalorder %s22, 1
      %s295 = scalar_select %p294, %s22, 1
      %p296 = scmp.lt.s32.totalorder %s293, 15
      %s297 = scalar_select %p296, %s293, 15
      %s298 = smul.addr %s297, 2
      %s299 = smul.addr %s295, 32
      %s300 = sadd.s32 %s298, %s299
      %s301 = smul.addr %s300, 8
      %s302 = scalar_lea.vmem %s7, %s301
      %s303 = smul.u32 8, %s23
      %s305 = smul.u32 %s23, 8
      %s306 = smul.u32 %s305, 3
      %s307 = smul.addr %s306, 4
      %s308 = scalar_lea.vmem %s292, %s307
      %v309 = vld [vmem:[%s308] sm:$0xf]
      %v310 = vld [vmem:[%s308 + $0x4] sm:$0xf]
      %v311 = vld [vmem:[%s308 + $0x8] sm:$0x1]
      %v312 = vld [vmem:[%s308 + $0xc] sm:$0xf]
      %v313 = vld [vmem:[%s308 + $0x10] sm:$0xf]
      %v314 = vld [vmem:[%s308 + $0x14] sm:$0x1]
      %v315 = vld [vmem:[%s308 + $0x18] sm:$0xf]
      %v316 = vld [vmem:[%s308 + $0x1c] sm:$0xf]
      %v317 = vld [vmem:[%s308 + $0x20] sm:$0x1]
      %v318 = vld [vmem:[%s308 + $0x24] sm:$0xf]
      %v319 = vld [vmem:[%s308 + $0x28] sm:$0xf]
      %v320 = vld [vmem:[%s308 + $0x2c] sm:$0x1]
      %v321 = vld [vmem:[%s308 + $0x30] sm:$0xf]
      %v322 = vld [vmem:[%s308 + $0x34] sm:$0xf]
      %v323 = vld [vmem:[%s308 + $0x38] sm:$0x1]
      %v324 = vld [vmem:[%s308 + $0x3c] sm:$0xf]
      %v325 = vld [vmem:[%s308 + $0x40] sm:$0xf]
      %v326 = vld [vmem:[%s308 + $0x44] sm:$0x1]
      %v327 = vld [vmem:[%s308 + $0x48] sm:$0xf]
      %v328 = vld [vmem:[%s308 + $0x4c] sm:$0xf]
      %v329 = vld [vmem:[%s308 + $0x50] sm:$0x1]
      %v330 = vld [vmem:[%s308 + $0x54] sm:$0xf]
      %v331 = vld [vmem:[%s308 + $0x58] sm:$0xf]
      %v332 = vld [vmem:[%s308 + $0x5c] sm:$0x1]
      %v333 = vld [vmem:[%s308 + $0x60] sm:$0xf]
      %v334 = vld [vmem:[%s308 + $0x64] sm:$0xf]
      %v335 = vld [vmem:[%s308 + $0x68] sm:$0x1]
      %v336 = vld [vmem:[%s308 + $0x6c] sm:$0xf]
      %v337 = vld [vmem:[%s308 + $0x70] sm:$0xf]
      %v338 = vld [vmem:[%s308 + $0x74] sm:$0x1]
      %v370 = vunpack.c.l.s4 1966171168
      %v371 = vunpack.c.0.s8 %v370
      %v372 = vlaneseq
      %v373 = vshrl.u32 %v372, 7
      %v374 = vsub.s32 %v371, %v373
      %v375 = vrot.slane %v309, %v374
      %v376 = vcombine.high %v375, %v375
      %v378 = vunpack.c.l.s4 1966171168
      %v379 = vunpack.c.0.s8 %v378
      %v380 = vlaneseq
      %v381 = vshrl.u32 %v380, 7
      %v382 = vsub.s32 %v379, %v381
      %v383 = vrot.slane %v375, %v382
      %v385 = vunpack.c.l.s4 1966171168
      %v386 = vunpack.c.0.s8 %v385
      %v387 = vlaneseq
      %v388 = vshrl.u32 %v387, 7
      %v389 = vsub.s32 %v386, %v388
      %v390 = vrot.slane %v376, %v389
      %v391 = vcombine.high %v383, %v383
      %v392 = vcombine.high %v390, %v390
      %v394 = vunpack.c.l.s4 1966171168
      %v395 = vunpack.c.0.s8 %v394
      %v396 = vlaneseq
      %v397 = vshrl.u32 %v396, 7
      %v398 = vsub.s32 %v395, %v397
      %v399 = vrot.slane %v310, %v398
      %v400 = vcombine.high %v399, %v399
      %v402 = vunpack.c.l.s4 1966171168
      %v403 = vunpack.c.0.s8 %v402
      %v404 = vlaneseq
      %v405 = vshrl.u32 %v404, 7
      %v406 = vsub.s32 %v403, %v405
      %v407 = vrot.slane %v399, %v406
      %v409 = vunpack.c.l.s4 1966171168
      %v410 = vunpack.c.0.s8 %v409
      %v411 = vlaneseq
      %v412 = vshrl.u32 %v411, 7
      %v413 = vsub.s32 %v410, %v412
      %v414 = vrot.slane %v400, %v413
      %v415 = vcombine.high %v407, %v407
      %v416 = vcombine.high %v414, %v414
      %v418 = vunpack.c.l.s4 1966171168
      %v419 = vunpack.c.0.s8 %v418
      %v420 = vlaneseq
      %v421 = vshrl.u32 %v420, 7
      %v422 = vsub.s32 %v419, %v421
      %v423 = vrot.slane %v311, %v422
      %v425 = vunpack.c.l.s4 1966171168
      %v426 = vunpack.c.0.s8 %v425
      %v427 = vlaneseq
      %v428 = vshrl.u32 %v427, 7
      %v429 = vsub.s32 %v426, %v428
      %v430 = vrot.slane %v423, %v429
      %v432 = vunpack.c.l.s4 1966171168
      %v433 = vunpack.c.0.s8 %v432
      %v434 = vlaneseq
      %v435 = vshrl.u32 %v434, 7
      %v436 = vsub.s32 %v433, %v435
      %v437 = vrot.slane %v312, %v436
      %v438 = vcombine.high %v437, %v437
      %v440 = vunpack.c.l.s4 1966171168
      %v441 = vunpack.c.0.s8 %v440
      %v442 = vlaneseq
      %v443 = vshrl.u32 %v442, 7
      %v444 = vsub.s32 %v441, %v443
      %v445 = vrot.slane %v437, %v444
      %v447 = vunpack.c.l.s4 1966171168
      %v448 = vunpack.c.0.s8 %v447
      %v449 = vlaneseq
      %v450 = vshrl.u32 %v449, 7
      %v451 = vsub.s32 %v448, %v450
      %v452 = vrot.slane %v438, %v451
      %v453 = vcombine.high %v445, %v445
      %v454 = vcombine.high %v452, %v452
      %v456 = vunpack.c.l.s4 1966171168
      %v457 = vunpack.c.0.s8 %v456
      %v458 = vlaneseq
      %v459 = vshrl.u32 %v458, 7
      %v460 = vsub.s32 %v457, %v459
      %v461 = vrot.slane %v313, %v460
      %v462 = vcombine.high %v461, %v461
      %v464 = vunpack.c.l.s4 1966171168
      %v465 = vunpack.c.0.s8 %v464
      %v466 = vlaneseq
      %v467 = vshrl.u32 %v466, 7
      %v468 = vsub.s32 %v465, %v467
      %v469 = vrot.slane %v461, %v468
      %v471 = vunpack.c.l.s4 1966171168
      %v472 = vunpack.c.0.s8 %v471
      %v473 = vlaneseq
      %v474 = vshrl.u32 %v473, 7
      %v475 = vsub.s32 %v472, %v474
      %v476 = vrot.slane %v462, %v475
      %v477 = vcombine.high %v469, %v469
      %v478 = vcombine.high %v476, %v476
      %v480 = vunpack.c.l.s4 1966171168
      %v481 = vunpack.c.0.s8 %v480
      %v482 = vlaneseq
      %v483 = vshrl.u32 %v482, 7
      %v484 = vsub.s32 %v481, %v483
      %v485 = vrot.slane %v314, %v484
      %v487 = vunpack.c.l.s4 1966171168
      %v488 = vunpack.c.0.s8 %v487
      %v489 = vlaneseq
      %v490 = vshrl.u32 %v489, 7
      %v491 = vsub.s32 %v488, %v490
      %v492 = vrot.slane %v485, %v491
      %v494 = vunpack.c.l.s4 1966171168
      %v495 = vunpack.c.0.s8 %v494
      %v496 = vlaneseq
      %v497 = vshrl.u32 %v496, 7
      %v498 = vsub.s32 %v495, %v497
      %v499 = vrot.slane %v315, %v498
      %v500 = vcombine.high %v499, %v499
      %v502 = vunpack.c.l.s4 1966171168
      %v503 = vunpack.c.0.s8 %v502
      %v504 = vlaneseq
      %v505 = vshrl.u32 %v504, 7
      %v506 = vsub.s32 %v503, %v505
      %v507 = vrot.slane %v499, %v506
      %v509 = vunpack.c.l.s4 1966171168
      %v510 = vunpack.c.0.s8 %v509
      %v511 = vlaneseq
      %v512 = vshrl.u32 %v511, 7
      %v513 = vsub.s32 %v510, %v512
      %v514 = vrot.slane %v500, %v513
      %v515 = vcombine.high %v507, %v507
      %v516 = vcombine.high %v514, %v514
      %v518 = vunpack.c.l.s4 1966171168
      %v519 = vunpack.c.0.s8 %v518
      %v520 = vlaneseq
      %v521 = vshrl.u32 %v520, 7
      %v522 = vsub.s32 %v519, %v521
      %v523 = vrot.slane %v316, %v522
      %v524 = vcombine.high %v523, %v523
      %v526 = vunpack.c.l.s4 1966171168
      %v527 = vunpack.c.0.s8 %v526
      %v528 = vlaneseq
      %v529 = vshrl.u32 %v528, 7
      %v530 = vsub.s32 %v527, %v529
      %v531 = vrot.slane %v523, %v530
      %v533 = vunpack.c.l.s4 1966171168
      %v534 = vunpack.c.0.s8 %v533
      %v535 = vlaneseq
      %v536 = vshrl.u32 %v535, 7
      %v537 = vsub.s32 %v534, %v536
      %v538 = vrot.slane %v524, %v537
      %v539 = vcombine.high %v531, %v531
      %v540 = vcombine.high %v538, %v538
      %v542 = vunpack.c.l.s4 1966171168
      %v543 = vunpack.c.0.s8 %v542
      %v544 = vlaneseq
      %v545 = vshrl.u32 %v544, 7
      %v546 = vsub.s32 %v543, %v545
      %v547 = vrot.slane %v317, %v546
      %v549 = vunpack.c.l.s4 1966171168
      %v550 = vunpack.c.0.s8 %v549
      %v551 = vlaneseq
      %v552 = vshrl.u32 %v551, 7
      %v553 = vsub.s32 %v550, %v552
      %v554 = vrot.slane %v547, %v553
      %v556 = vunpack.c.l.s4 1966171168
      %v557 = vunpack.c.0.s8 %v556
      %v558 = vlaneseq
      %v559 = vshrl.u32 %v558, 7
      %v560 = vsub.s32 %v557, %v559
      %v561 = vrot.slane %v318, %v560
      %v562 = vcombine.high %v561, %v561
      %v564 = vunpack.c.l.s4 1966171168
      %v565 = vunpack.c.0.s8 %v564
      %v566 = vlaneseq
      %v567 = vshrl.u32 %v566, 7
      %v568 = vsub.s32 %v565, %v567
      %v569 = vrot.slane %v561, %v568
      %v571 = vunpack.c.l.s4 1966171168
      %v572 = vunpack.c.0.s8 %v571
      %v573 = vlaneseq
      %v574 = vshrl.u32 %v573, 7
      %v575 = vsub.s32 %v572, %v574
      %v576 = vrot.slane %v562, %v575
      %v577 = vcombine.high %v569, %v569
      %v578 = vcombine.high %v576, %v576
      %v580 = vunpack.c.l.s4 1966171168
      %v581 = vunpack.c.0.s8 %v580
      %v582 = vlaneseq
      %v583 = vshrl.u32 %v582, 7
      %v584 = vsub.s32 %v581, %v583
      %v585 = vrot.slane %v319, %v584
      %v586 = vcombine.high %v585, %v585
      %v588 = vunpack.c.l.s4 1966171168
      %v589 = vunpack.c.0.s8 %v588
      %v590 = vlaneseq
      %v591 = vshrl.u32 %v590, 7
      %v592 = vsub.s32 %v589, %v591
      %v593 = vrot.slane %v585, %v592
      %v595 = vunpack.c.l.s4 1966171168
      %v596 = vunpack.c.0.s8 %v595
      %v597 = vlaneseq
      %v598 = vshrl.u32 %v597, 7
      %v599 = vsub.s32 %v596, %v598
      %v600 = vrot.slane %v586, %v599
      %v601 = vcombine.high %v593, %v593
      %v602 = vcombine.high %v600, %v600
      %v604 = vunpack.c.l.s4 1966171168
      %v605 = vunpack.c.0.s8 %v604
      %v606 = vlaneseq
      %v607 = vshrl.u32 %v606, 7
      %v608 = vsub.s32 %v605, %v607
      %v609 = vrot.slane %v320, %v608
      %v611 = vunpack.c.l.s4 1966171168
      %v612 = vunpack.c.0.s8 %v611
      %v613 = vlaneseq
      %v614 = vshrl.u32 %v613, 7
      %v615 = vsub.s32 %v612, %v614
      %v616 = vrot.slane %v609, %v615
      %v618 = vunpack.c.l.s4 1966171168
      %v619 = vunpack.c.0.s8 %v618
      %v620 = vlaneseq
      %v621 = vshrl.u32 %v620, 7
      %v622 = vsub.s32 %v619, %v621
      %v623 = vrot.slane %v321, %v622
      %v624 = vcombine.high %v623, %v623
      %v626 = vunpack.c.l.s4 1966171168
      %v627 = vunpack.c.0.s8 %v626
      %v628 = vlaneseq
      %v629 = vshrl.u32 %v628, 7
      %v630 = vsub.s32 %v627, %v629
      %v631 = vrot.slane %v623, %v630
      %v633 = vunpack.c.l.s4 1966171168
      %v634 = vunpack.c.0.s8 %v633
      %v635 = vlaneseq
      %v636 = vshrl.u32 %v635, 7
      %v637 = vsub.s32 %v634, %v636
      %v638 = vrot.slane %v624, %v637
      %v639 = vcombine.high %v631, %v631
      %v640 = vcombine.high %v638, %v638
      %v642 = vunpack.c.l.s4 1966171168
      %v643 = vunpack.c.0.s8 %v642
      %v644 = vlaneseq
      %v645 = vshrl.u32 %v644, 7
      %v646 = vsub.s32 %v643, %v645
      %v647 = vrot.slane %v322, %v646
      %v648 = vcombine.high %v647, %v647
      %v650 = vunpack.c.l.s4 1966171168
      %v651 = vunpack.c.0.s8 %v650
      %v652 = vlaneseq
      %v653 = vshrl.u32 %v652, 7
      %v654 = vsub.s32 %v651, %v653
      %v655 = vrot.slane %v647, %v654
      %v657 = vunpack.c.l.s4 1966171168
      %v658 = vunpack.c.0.s8 %v657
      %v659 = vlaneseq
      %v660 = vshrl.u32 %v659, 7
      %v661 = vsub.s32 %v658, %v660
      %v662 = vrot.slane %v648, %v661
      %v663 = vcombine.high %v655, %v655
      %v664 = vcombine.high %v662, %v662
      %v666 = vunpack.c.l.s4 1966171168
      %v667 = vunpack.c.0.s8 %v666
      %v668 = vlaneseq
      %v669 = vshrl.u32 %v668, 7
      %v670 = vsub.s32 %v667, %v669
      %v671 = vrot.slane %v323, %v670
      %v673 = vunpack.c.l.s4 1966171168
      %v674 = vunpack.c.0.s8 %v673
      %v675 = vlaneseq
      %v676 = vshrl.u32 %v675, 7
      %v677 = vsub.s32 %v674, %v676
      %v678 = vrot.slane %v671, %v677
      %v680 = vunpack.c.l.s4 1966171168
      %v681 = vunpack.c.0.s8 %v680
      %v682 = vlaneseq
      %v683 = vshrl.u32 %v682, 7
      %v684 = vsub.s32 %v681, %v683
      %v685 = vrot.slane %v324, %v684
      %v686 = vcombine.high %v685, %v685
      %v688 = vunpack.c.l.s4 1966171168
      %v689 = vunpack.c.0.s8 %v688
      %v690 = vlaneseq
      %v691 = vshrl.u32 %v690, 7
      %v692 = vsub.s32 %v689, %v691
      %v693 = vrot.slane %v685, %v692
      %v695 = vunpack.c.l.s4 1966171168
      %v696 = vunpack.c.0.s8 %v695
      %v697 = vlaneseq
      %v698 = vshrl.u32 %v697, 7
      %v699 = vsub.s32 %v696, %v698
      %v700 = vrot.slane %v686, %v699
      %v701 = vcombine.high %v693, %v693
      %v702 = vcombine.high %v700, %v700
      %v704 = vunpack.c.l.s4 1966171168
      %v705 = vunpack.c.0.s8 %v704
      %v706 = vlaneseq
      %v707 = vshrl.u32 %v706, 7
      %v708 = vsub.s32 %v705, %v707
      %v709 = vrot.slane %v325, %v708
      %v710 = vcombine.high %v709, %v709
      %v712 = vunpack.c.l.s4 1966171168
      %v713 = vunpack.c.0.s8 %v712
      %v714 = vlaneseq
      %v715 = vshrl.u32 %v714, 7
      %v716 = vsub.s32 %v713, %v715
      %v717 = vrot.slane %v709, %v716
      %v719 = vunpack.c.l.s4 1966171168
      %v720 = vunpack.c.0.s8 %v719
      %v721 = vlaneseq
      %v722 = vshrl.u32 %v721, 7
      %v723 = vsub.s32 %v720, %v722
      %v724 = vrot.slane %v710, %v723
      %v725 = vcombine.high %v717, %v717
      %v726 = vcombine.high %v724, %v724
      %v728 = vunpack.c.l.s4 1966171168
      %v729 = vunpack.c.0.s8 %v728
      %v730 = vlaneseq
      %v731 = vshrl.u32 %v730, 7
      %v732 = vsub.s32 %v729, %v731
      %v733 = vrot.slane %v326, %v732
      %v735 = vunpack.c.l.s4 1966171168
      %v736 = vunpack.c.0.s8 %v735
      %v737 = vlaneseq
      %v738 = vshrl.u32 %v737, 7
      %v739 = vsub.s32 %v736, %v738
      %v740 = vrot.slane %v733, %v739
      %v742 = vunpack.c.l.s4 1966171168
      %v743 = vunpack.c.0.s8 %v742
      %v744 = vlaneseq
      %v745 = vshrl.u32 %v744, 7
      %v746 = vsub.s32 %v743, %v745
      %v747 = vrot.slane %v327, %v746
      %v748 = vcombine.high %v747, %v747
      %v750 = vunpack.c.l.s4 1966171168
      %v751 = vunpack.c.0.s8 %v750
      %v752 = vlaneseq
      %v753 = vshrl.u32 %v752, 7
      %v754 = vsub.s32 %v751, %v753
      %v755 = vrot.slane %v747, %v754
      %v757 = vunpack.c.l.s4 1966171168
      %v758 = vunpack.c.0.s8 %v757
      %v759 = vlaneseq
      %v760 = vshrl.u32 %v759, 7
      %v761 = vsub.s32 %v758, %v760
      %v762 = vrot.slane %v748, %v761
      %v763 = vcombine.high %v755, %v755
      %v764 = vcombine.high %v762, %v762
      %v766 = vunpack.c.l.s4 1966171168
      %v767 = vunpack.c.0.s8 %v766
      %v768 = vlaneseq
      %v769 = vshrl.u32 %v768, 7
      %v770 = vsub.s32 %v767, %v769
      %v771 = vrot.slane %v328, %v770
      %v772 = vcombine.high %v771, %v771
      %v774 = vunpack.c.l.s4 1966171168
      %v775 = vunpack.c.0.s8 %v774
      %v776 = vlaneseq
      %v777 = vshrl.u32 %v776, 7
      %v778 = vsub.s32 %v775, %v777
      %v779 = vrot.slane %v771, %v778
      %v781 = vunpack.c.l.s4 1966171168
      %v782 = vunpack.c.0.s8 %v781
      %v783 = vlaneseq
      %v784 = vshrl.u32 %v783, 7
      %v785 = vsub.s32 %v782, %v784
      %v786 = vrot.slane %v772, %v785
      %v787 = vcombine.high %v779, %v779
      %v788 = vcombine.high %v786, %v786
      %v790 = vunpack.c.l.s4 1966171168
      %v791 = vunpack.c.0.s8 %v790
      %v792 = vlaneseq
      %v793 = vshrl.u32 %v792, 7
      %v794 = vsub.s32 %v791, %v793
      %v795 = vrot.slane %v329, %v794
      %v797 = vunpack.c.l.s4 1966171168
      %v798 = vunpack.c.0.s8 %v797
      %v799 = vlaneseq
      %v800 = vshrl.u32 %v799, 7
      %v801 = vsub.s32 %v798, %v800
      %v802 = vrot.slane %v795, %v801
      %v804 = vunpack.c.l.s4 1966171168
      %v805 = vunpack.c.0.s8 %v804
      %v806 = vlaneseq
      %v807 = vshrl.u32 %v806, 7
      %v808 = vsub.s32 %v805, %v807
      %v809 = vrot.slane %v330, %v808
      %v810 = vcombine.high %v809, %v809
      %v812 = vunpack.c.l.s4 1966171168
      %v813 = vunpack.c.0.s8 %v812
      %v814 = vlaneseq
      %v815 = vshrl.u32 %v814, 7
      %v816 = vsub.s32 %v813, %v815
      %v817 = vrot.slane %v809, %v816
      %v819 = vunpack.c.l.s4 1966171168
      %v820 = vunpack.c.0.s8 %v819
      %v821 = vlaneseq
      %v822 = vshrl.u32 %v821, 7
      %v823 = vsub.s32 %v820, %v822
      %v824 = vrot.slane %v810, %v823
      %v825 = vcombine.high %v817, %v817
      %v826 = vcombine.high %v824, %v824
      %v828 = vunpack.c.l.s4 1966171168
      %v829 = vunpack.c.0.s8 %v828
      %v830 = vlaneseq
      %v831 = vshrl.u32 %v830, 7
      %v832 = vsub.s32 %v829, %v831
      %v833 = vrot.slane %v331, %v832
      %v834 = vcombine.high %v833, %v833
      %v836 = vunpack.c.l.s4 1966171168
      %v837 = vunpack.c.0.s8 %v836
      %v838 = vlaneseq
      %v839 = vshrl.u32 %v838, 7
      %v840 = vsub.s32 %v837, %v839
      %v841 = vrot.slane %v833, %v840
      %v843 = vunpack.c.l.s4 1966171168
      %v844 = vunpack.c.0.s8 %v843
      %v845 = vlaneseq
      %v846 = vshrl.u32 %v845, 7
      %v847 = vsub.s32 %v844, %v846
      %v848 = vrot.slane %v834, %v847
      %v849 = vcombine.high %v841, %v841
      %v850 = vcombine.high %v848, %v848
      %v852 = vunpack.c.l.s4 1966171168
      %v853 = vunpack.c.0.s8 %v852
      %v854 = vlaneseq
      %v855 = vshrl.u32 %v854, 7
      %v856 = vsub.s32 %v853, %v855
      %v857 = vrot.slane %v332, %v856
      %v859 = vunpack.c.l.s4 1966171168
      %v860 = vunpack.c.0.s8 %v859
      %v861 = vlaneseq
      %v862 = vshrl.u32 %v861, 7
      %v863 = vsub.s32 %v860, %v862
      %v864 = vrot.slane %v857, %v863
      %v866 = vunpack.c.l.s4 1966171168
      %v867 = vunpack.c.0.s8 %v866
      %v868 = vlaneseq
      %v869 = vshrl.u32 %v868, 7
      %v870 = vsub.s32 %v867, %v869
      %v871 = vrot.slane %v333, %v870
      %v872 = vcombine.high %v871, %v871
      %v874 = vunpack.c.l.s4 1966171168
      %v875 = vunpack.c.0.s8 %v874
      %v876 = vlaneseq
      %v877 = vshrl.u32 %v876, 7
      %v878 = vsub.s32 %v875, %v877
      %v879 = vrot.slane %v871, %v878
      %v881 = vunpack.c.l.s4 1966171168
      %v882 = vunpack.c.0.s8 %v881
      %v883 = vlaneseq
      %v884 = vshrl.u32 %v883, 7
      %v885 = vsub.s32 %v882, %v884
      %v886 = vrot.slane %v872, %v885
      %v887 = vcombine.high %v879, %v879
      %v888 = vcombine.high %v886, %v886
      %v890 = vunpack.c.l.s4 1966171168
      %v891 = vunpack.c.0.s8 %v890
      %v892 = vlaneseq
      %v893 = vshrl.u32 %v892, 7
      %v894 = vsub.s32 %v891, %v893
      %v895 = vrot.slane %v334, %v894
      %v896 = vcombine.high %v895, %v895
      %v898 = vunpack.c.l.s4 1966171168
      %v899 = vunpack.c.0.s8 %v898
      %v900 = vlaneseq
      %v901 = vshrl.u32 %v900, 7
      %v902 = vsub.s32 %v899, %v901
      %v903 = vrot.slane %v895, %v902
      %v905 = vunpack.c.l.s4 1966171168
      %v906 = vunpack.c.0.s8 %v905
      %v907 = vlaneseq
      %v908 = vshrl.u32 %v907, 7
      %v909 = vsub.s32 %v906, %v908
      %v910 = vrot.slane %v896, %v909
      %v911 = vcombine.high %v903, %v903
      %v912 = vcombine.high %v910, %v910
      %v914 = vunpack.c.l.s4 1966171168
      %v915 = vunpack.c.0.s8 %v914
      %v916 = vlaneseq
      %v917 = vshrl.u32 %v916, 7
      %v918 = vsub.s32 %v915, %v917
      %v919 = vrot.slane %v335, %v918
      %v921 = vunpack.c.l.s4 1966171168
      %v922 = vunpack.c.0.s8 %v921
      %v923 = vlaneseq
      %v924 = vshrl.u32 %v923, 7
      %v925 = vsub.s32 %v922, %v924
      %v926 = vrot.slane %v919, %v925
      %v928 = vunpack.c.l.s4 1966171168
      %v929 = vunpack.c.0.s8 %v928
      %v930 = vlaneseq
      %v931 = vshrl.u32 %v930, 7
      %v932 = vsub.s32 %v929, %v931
      %v933 = vrot.slane %v336, %v932
      %v934 = vcombine.high %v933, %v933
      %v936 = vunpack.c.l.s4 1966171168
      %v937 = vunpack.c.0.s8 %v936
      %v938 = vlaneseq
      %v939 = vshrl.u32 %v938, 7
      %v940 = vsub.s32 %v937, %v939
      %v941 = vrot.slane %v933, %v940
      %v943 = vunpack.c.l.s4 1966171168
      %v944 = vunpack.c.0.s8 %v943
      %v945 = vlaneseq
      %v946 = vshrl.u32 %v945, 7
      %v947 = vsub.s32 %v944, %v946
      %v948 = vrot.slane %v934, %v947
      %v949 = vcombine.high %v941, %v941
      %v950 = vcombine.high %v948, %v948
      %v952 = vunpack.c.l.s4 1966171168
      %v953 = vunpack.c.0.s8 %v952
      %v954 = vlaneseq
      %v955 = vshrl.u32 %v954, 7
      %v956 = vsub.s32 %v953, %v955
      %v957 = vrot.slane %v337, %v956
      %v958 = vcombine.high %v957, %v957
      %v960 = vunpack.c.l.s4 1966171168
      %v961 = vunpack.c.0.s8 %v960
      %v962 = vlaneseq
      %v963 = vshrl.u32 %v962, 7
      %v964 = vsub.s32 %v961, %v963
      %v965 = vrot.slane %v957, %v964
      %v967 = vunpack.c.l.s4 1966171168
      %v968 = vunpack.c.0.s8 %v967
      %v969 = vlaneseq
      %v970 = vshrl.u32 %v969, 7
      %v971 = vsub.s32 %v968, %v970
      %v972 = vrot.slane %v958, %v971
      %v973 = vcombine.high %v965, %v965
      %v974 = vcombine.high %v972, %v972
      %v976 = vunpack.c.l.s4 1966171168
      %v977 = vunpack.c.0.s8 %v976
      %v978 = vlaneseq
      %v979 = vshrl.u32 %v978, 7
      %v980 = vsub.s32 %v977, %v979
      %v981 = vrot.slane %v338, %v980
      %v983 = vunpack.c.l.s4 1966171168
      %v984 = vunpack.c.0.s8 %v983
      %v985 = vlaneseq
      %v986 = vshrl.u32 %v985, 7
      %v987 = vsub.s32 %v984, %v986
      %v988 = vrot.slane %v981, %v987
      %v989 = vld [vmem:[%s1] sm:$0xff]
      %v990 = vld [vmem:[%s1 + $0x8] sm:$0xff]
      %v991 = vld [vmem:[%s1 + $0x10] sm:$0xff]
      %v992 = vld [vmem:[%s1 + $0x18] sm:$0xff]
      %v993 = vld [vmem:[%s1 + $0x20] sm:$0xff]
      %v994 = vld [vmem:[%s1 + $0x28] sm:$0xff]
      %v995 = vld [vmem:[%s1 + $0x30] sm:$0xff]
      %v996 = vld [vmem:[%s1 + $0x38] sm:$0xff]
      %v997 = vld [vmem:[%s1 + $0x40] sm:$0xff]
      %v998 = vld [vmem:[%s1 + $0x48] sm:$0xff]
      %v999 = vld [vmem:[%s1 + $0x50] sm:$0xff]
      %v1000 = vld [vmem:[%s1 + $0x58] sm:$0xff]
      %v1001 = vld [vmem:[%s1 + $0x60] sm:$0xff]
      %v1002 = vld [vmem:[%s1 + $0x68] sm:$0xff]
      %v1003 = vld [vmem:[%s1 + $0x70] sm:$0xff]
      %v1004 = vld [vmem:[%s1 + $0x78] sm:$0xff]
      %v1005 = vld [vmem:[%s2] sm:$0x3]
      %v1007 = vlaneseq
      %v1008 = vshrl.u32 %v1007, 7
      %v1009 = vsub.s32 0, %v1008
      %v1010 = vrot.slane %v1005, %v1009
      %v1011 = vlaneseq
      %v1012 = vshrl.u32 %v1011, 7
      %v1013 = vsub.s32 1, %v1012
      %v1014 = vrot.slane %v1005, %v1013
      %v1017 = vcombine.low %v383, %v390
      %v1018 = vcombine.low %v391, %v392
      %v1019 = vcombine.low %v407, %v414
      %v1020 = vcombine.low %v415, %v416
      %v1022 = vunpack.c.l.s4 1966171168
      %v1023 = vunpack.c.0.s8 %v1022
      %v1024 = vlaneseq
      %v1025 = vshrl.u32 %v1024, 7
      %v1026 = vsub.s32 %v1023, %v1025
      %v1027 = vrot.slane %v1017, %v1026
      %v1029 = vunpack.c.l.s4 1966171168
      %v1030 = vunpack.c.0.s8 %v1029
      %v1031 = vlaneseq
      %v1032 = vshrl.u32 %v1031, 7
      %v1033 = vsub.s32 %v1030, %v1032
      %v1034 = vrot.slane %v1018, %v1033
      %v1036 = vunpack.c.l.s4 1966171168
      %v1037 = vunpack.c.0.s8 %v1036
      %v1038 = vlaneseq
      %v1039 = vshrl.u32 %v1038, 7
      %v1040 = vsub.s32 %v1037, %v1039
      %v1041 = vrot.slane %v1019, %v1040
      %v1043 = vunpack.c.l.s4 1966171168
      %v1044 = vunpack.c.0.s8 %v1043
      %v1045 = vlaneseq
      %v1046 = vshrl.u32 %v1045, 7
      %v1047 = vsub.s32 %v1044, %v1046
      %v1048 = vrot.slane %v1020, %v1047
      %v1049 = vcombine.low %v1027, %v1034
      %v1050 = vcombine.low %v1041, %v1048
      %v1052 = vunpack.c.l.s4 1966171168
      %v1053 = vunpack.c.0.s8 %v1052
      %v1054 = vlaneseq
      %v1055 = vshrl.u32 %v1054, 7
      %v1056 = vsub.s32 %v1053, %v1055
      %v1057 = vrot.slane %v1049, %v1056
      %v1059 = vunpack.c.l.s4 1966171168
      %v1060 = vunpack.c.0.s8 %v1059
      %v1061 = vlaneseq
      %v1062 = vshrl.u32 %v1061, 7
      %v1063 = vsub.s32 %v1060, %v1062
      %v1064 = vrot.slane %v1050, %v1063
      %v1065 = vcombine.low %v1057, %v1064
      %v1066 = vcombine.low %v430, %v445
      %v1067 = vcombine.low %v452, %v453
      %v1068 = vcombine.low %v454, %v469
      %v1069 = vcombine.low %v476, %v477
      %v1071 = vunpack.c.l.s4 1966171168
      %v1072 = vunpack.c.0.s8 %v1071
      %v1073 = vlaneseq
      %v1074 = vshrl.u32 %v1073, 7
      %v1075 = vsub.s32 %v1072, %v1074
      %v1076 = vrot.slane %v1066, %v1075
      %v1078 = vunpack.c.l.s4 1966171168
      %v1079 = vunpack.c.0.s8 %v1078
      %v1080 = vlaneseq
      %v1081 = vshrl.u32 %v1080, 7
      %v1082 = vsub.s32 %v1079, %v1081
      %v1083 = vrot.slane %v1067, %v1082
      %v1085 = vunpack.c.l.s4 1966171168
      %v1086 = vunpack.c.0.s8 %v1085
      %v1087 = vlaneseq
      %v1088 = vshrl.u32 %v1087, 7
      %v1089 = vsub.s32 %v1086, %v1088
      %v1090 = vrot.slane %v1068, %v1089
      %v1092 = vunpack.c.l.s4 1966171168
      %v1093 = vunpack.c.0.s8 %v1092
      %v1094 = vlaneseq
      %v1095 = vshrl.u32 %v1094, 7
      %v1096 = vsub.s32 %v1093, %v1095
      %v1097 = vrot.slane %v1069, %v1096
      %v1098 = vcombine.low %v1076, %v1083
      %v1099 = vcombine.low %v1090, %v1097
      %v1101 = vunpack.c.l.s4 1966171168
      %v1102 = vunpack.c.0.s8 %v1101
      %v1103 = vlaneseq
      %v1104 = vshrl.u32 %v1103, 7
      %v1105 = vsub.s32 %v1102, %v1104
      %v1106 = vrot.slane %v1098, %v1105
      %v1108 = vunpack.c.l.s4 1966171168
      %v1109 = vunpack.c.0.s8 %v1108
      %v1110 = vlaneseq
      %v1111 = vshrl.u32 %v1110, 7
      %v1112 = vsub.s32 %v1109, %v1111
      %v1113 = vrot.slane %v1099, %v1112
      %v1114 = vcombine.low %v1106, %v1113
      %v1115 = vcombine.low %v478, %v492
      %v1116 = vcombine.low %v507, %v514
      %v1117 = vcombine.low %v515, %v516
      %v1118 = vcombine.low %v531, %v538
      %v1120 = vunpack.c.l.s4 1966171168
      %v1121 = vunpack.c.0.s8 %v1120
      %v1122 = vlaneseq
      %v1123 = vshrl.u32 %v1122, 7
      %v1124 = vsub.s32 %v1121, %v1123
      %v1125 = vrot.slane %v1115, %v1124
      %v1127 = vunpack.c.l.s4 1966171168
      %v1128 = vunpack.c.0.s8 %v1127
      %v1129 = vlaneseq
      %v1130 = vshrl.u32 %v1129, 7
      %v1131 = vsub.s32 %v1128, %v1130
      %v1132 = vrot.slane %v1116, %v1131
      %v1134 = vunpack.c.l.s4 1966171168
      %v1135 = vunpack.c.0.s8 %v1134
      %v1136 = vlaneseq
      %v1137 = vshrl.u32 %v1136, 7
      %v1138 = vsub.s32 %v1135, %v1137
      %v1139 = vrot.slane %v1117, %v1138
      %v1141 = vunpack.c.l.s4 1966171168
      %v1142 = vunpack.c.0.s8 %v1141
      %v1143 = vlaneseq
      %v1144 = vshrl.u32 %v1143, 7
      %v1145 = vsub.s32 %v1142, %v1144
      %v1146 = vrot.slane %v1118, %v1145
      %v1147 = vcombine.low %v1125, %v1132
      %v1148 = vcombine.low %v1139, %v1146
      %v1150 = vunpack.c.l.s4 1966171168
      %v1151 = vunpack.c.0.s8 %v1150
      %v1152 = vlaneseq
      %v1153 = vshrl.u32 %v1152, 7
      %v1154 = vsub.s32 %v1151, %v1153
      %v1155 = vrot.slane %v1147, %v1154
      %v1157 = vunpack.c.l.s4 1966171168
      %v1158 = vunpack.c.0.s8 %v1157
      %v1159 = vlaneseq
      %v1160 = vshrl.u32 %v1159, 7
      %v1161 = vsub.s32 %v1158, %v1160
      %v1162 = vrot.slane %v1148, %v1161
      %v1163 = vcombine.low %v1155, %v1162
      %v1164 = vcombine.low %v539, %v540
      %v1165 = vcombine.low %v554, %v569
      %v1166 = vcombine.low %v576, %v577
      %v1167 = vcombine.low %v578, %v593
      %v1169 = vunpack.c.l.s4 1966171168
      %v1170 = vunpack.c.0.s8 %v1169
      %v1171 = vlaneseq
      %v1172 = vshrl.u32 %v1171, 7
      %v1173 = vsub.s32 %v1170, %v1172
      %v1174 = vrot.slane %v1164, %v1173
      %v1176 = vunpack.c.l.s4 1966171168
      %v1177 = vunpack.c.0.s8 %v1176
      %v1178 = vlaneseq
      %v1179 = vshrl.u32 %v1178, 7
      %v1180 = vsub.s32 %v1177, %v1179
      %v1181 = vrot.slane %v1165, %v1180
      %v1183 = vunpack.c.l.s4 1966171168
      %v1184 = vunpack.c.0.s8 %v1183
      %v1185 = vlaneseq
      %v1186 = vshrl.u32 %v1185, 7
      %v1187 = vsub.s32 %v1184, %v1186
      %v1188 = vrot.slane %v1166, %v1187
      %v1190 = vunpack.c.l.s4 1966171168
      %v1191 = vunpack.c.0.s8 %v1190
      %v1192 = vlaneseq
      %v1193 = vshrl.u32 %v1192, 7
      %v1194 = vsub.s32 %v1191, %v1193
      %v1195 = vrot.slane %v1167, %v1194
      %v1196 = vcombine.low %v1174, %v1181
      %v1197 = vcombine.low %v1188, %v1195
      %v1199 = vunpack.c.l.s4 1966171168
      %v1200 = vunpack.c.0.s8 %v1199
      %v1201 = vlaneseq
      %v1202 = vshrl.u32 %v1201, 7
      %v1203 = vsub.s32 %v1200, %v1202
      %v1204 = vrot.slane %v1196, %v1203
      %v1206 = vunpack.c.l.s4 1966171168
      %v1207 = vunpack.c.0.s8 %v1206
      %v1208 = vlaneseq
      %v1209 = vshrl.u32 %v1208, 7
      %v1210 = vsub.s32 %v1207, %v1209
      %v1211 = vrot.slane %v1197, %v1210
      %v1212 = vcombine.low %v1204, %v1211
      %v1213 = vcombine.low %v600, %v601
      %v1214 = vcombine.low %v602, %v616
      %v1215 = vcombine.low %v631, %v638
      %v1216 = vcombine.low %v639, %v640
      %v1218 = vunpack.c.l.s4 1966171168
      %v1219 = vunpack.c.0.s8 %v1218
      %v1220 = vlaneseq
      %v1221 = vshrl.u32 %v1220, 7
      %v1222 = vsub.s32 %v1219, %v1221
      %v1223 = vrot.slane %v1213, %v1222
      %v1225 = vunpack.c.l.s4 1966171168
      %v1226 = vunpack.c.0.s8 %v1225
      %v1227 = vlaneseq
      %v1228 = vshrl.u32 %v1227, 7
      %v1229 = vsub.s32 %v1226, %v1228
      %v1230 = vrot.slane %v1214, %v1229
      %v1232 = vunpack.c.l.s4 1966171168
      %v1233 = vunpack.c.0.s8 %v1232
      %v1234 = vlaneseq
      %v1235 = vshrl.u32 %v1234, 7
      %v1236 = vsub.s32 %v1233, %v1235
      %v1237 = vrot.slane %v1215, %v1236
      %v1239 = vunpack.c.l.s4 1966171168
      %v1240 = vunpack.c.0.s8 %v1239
      %v1241 = vlaneseq
      %v1242 = vshrl.u32 %v1241, 7
      %v1243 = vsub.s32 %v1240, %v1242
      %v1244 = vrot.slane %v1216, %v1243
      %v1245 = vcombine.low %v1223, %v1230
      %v1246 = vcombine.low %v1237, %v1244
      %v1248 = vunpack.c.l.s4 1966171168
      %v1249 = vunpack.c.0.s8 %v1248
      %v1250 = vlaneseq
      %v1251 = vshrl.u32 %v1250, 7
      %v1252 = vsub.s32 %v1249, %v1251
      %v1253 = vrot.slane %v1245, %v1252
      %v1255 = vunpack.c.l.s4 1966171168
      %v1256 = vunpack.c.0.s8 %v1255
      %v1257 = vlaneseq
      %v1258 = vshrl.u32 %v1257, 7
      %v1259 = vsub.s32 %v1256, %v1258
      %v1260 = vrot.slane %v1246, %v1259
      %v1261 = vcombine.low %v1253, %v1260
      %v1262 = vcombine.low %v655, %v662
      %v1263 = vcombine.low %v663, %v664
      %v1264 = vcombine.low %v678, %v693
      %v1265 = vcombine.low %v700, %v701
      %v1267 = vunpack.c.l.s4 1966171168
      %v1268 = vunpack.c.0.s8 %v1267
      %v1269 = vlaneseq
      %v1270 = vshrl.u32 %v1269, 7
      %v1271 = vsub.s32 %v1268, %v1270
      %v1272 = vrot.slane %v1262, %v1271
      %v1274 = vunpack.c.l.s4 1966171168
      %v1275 = vunpack.c.0.s8 %v1274
      %v1276 = vlaneseq
      %v1277 = vshrl.u32 %v1276, 7
      %v1278 = vsub.s32 %v1275, %v1277
      %v1279 = vrot.slane %v1263, %v1278
      %v1281 = vunpack.c.l.s4 1966171168
      %v1282 = vunpack.c.0.s8 %v1281
      %v1283 = vlaneseq
      %v1284 = vshrl.u32 %v1283, 7
      %v1285 = vsub.s32 %v1282, %v1284
      %v1286 = vrot.slane %v1264, %v1285
      %v1288 = vunpack.c.l.s4 1966171168
      %v1289 = vunpack.c.0.s8 %v1288
      %v1290 = vlaneseq
      %v1291 = vshrl.u32 %v1290, 7
      %v1292 = vsub.s32 %v1289, %v1291
      %v1293 = vrot.slane %v1265, %v1292
      %v1294 = vcombine.low %v1272, %v1279
      %v1295 = vcombine.low %v1286, %v1293
      %v1297 = vunpack.c.l.s4 1966171168
      %v1298 = vunpack.c.0.s8 %v1297
      %v1299 = vlaneseq
      %v1300 = vshrl.u32 %v1299, 7
      %v1301 = vsub.s32 %v1298, %v1300
      %v1302 = vrot.slane %v1294, %v1301
      %v1304 = vunpack.c.l.s4 1966171168
      %v1305 = vunpack.c.0.s8 %v1304
      %v1306 = vlaneseq
      %v1307 = vshrl.u32 %v1306, 7
      %v1308 = vsub.s32 %v1305, %v1307
      %v1309 = vrot.slane %v1295, %v1308
      %v1310 = vcombine.low %v1302, %v1309
      %v1311 = vcombine.low %v702, %v717
      %v1312 = vcombine.low %v724, %v725
      %v1313 = vcombine.low %v726, %v740
      %v1314 = vcombine.low %v755, %v762
      %v1316 = vunpack.c.l.s4 1966171168
      %v1317 = vunpack.c.0.s8 %v1316
      %v1318 = vlaneseq
      %v1319 = vshrl.u32 %v1318, 7
      %v1320 = vsub.s32 %v1317, %v1319
      %v1321 = vrot.slane %v1311, %v1320
      %v1323 = vunpack.c.l.s4 1966171168
      %v1324 = vunpack.c.0.s8 %v1323
      %v1325 = vlaneseq
      %v1326 = vshrl.u32 %v1325, 7
      %v1327 = vsub.s32 %v1324, %v1326
      %v1328 = vrot.slane %v1312, %v1327
      %v1330 = vunpack.c.l.s4 1966171168
      %v1331 = vunpack.c.0.s8 %v1330
      %v1332 = vlaneseq
      %v1333 = vshrl.u32 %v1332, 7
      %v1334 = vsub.s32 %v1331, %v1333
      %v1335 = vrot.slane %v1313, %v1334
      %v1337 = vunpack.c.l.s4 1966171168
      %v1338 = vunpack.c.0.s8 %v1337
      %v1339 = vlaneseq
      %v1340 = vshrl.u32 %v1339, 7
      %v1341 = vsub.s32 %v1338, %v1340
      %v1342 = vrot.slane %v1314, %v1341
      %v1343 = vcombine.low %v1321, %v1328
      %v1344 = vcombine.low %v1335, %v1342
      %v1346 = vunpack.c.l.s4 1966171168
      %v1347 = vunpack.c.0.s8 %v1346
      %v1348 = vlaneseq
      %v1349 = vshrl.u32 %v1348, 7
      %v1350 = vsub.s32 %v1347, %v1349
      %v1351 = vrot.slane %v1343, %v1350
      %v1353 = vunpack.c.l.s4 1966171168
      %v1354 = vunpack.c.0.s8 %v1353
      %v1355 = vlaneseq
      %v1356 = vshrl.u32 %v1355, 7
      %v1357 = vsub.s32 %v1354, %v1356
      %v1358 = vrot.slane %v1344, %v1357
      %v1359 = vcombine.low %v1351, %v1358
      %v1360 = vcombine.low %v763, %v764
      %v1361 = vcombine.low %v779, %v786
      %v1362 = vcombine.low %v787, %v788
      %v1363 = vcombine.low %v802, %v817
      %v1365 = vunpack.c.l.s4 1966171168
      %v1366 = vunpack.c.0.s8 %v1365
      %v1367 = vlaneseq
      %v1368 = vshrl.u32 %v1367, 7
      %v1369 = vsub.s32 %v1366, %v1368
      %v1370 = vrot.slane %v1360, %v1369
      %v1372 = vunpack.c.l.s4 1966171168
      %v1373 = vunpack.c.0.s8 %v1372
      %v1374 = vlaneseq
      %v1375 = vshrl.u32 %v1374, 7
      %v1376 = vsub.s32 %v1373, %v1375
      %v1377 = vrot.slane %v1361, %v1376
      %v1379 = vunpack.c.l.s4 1966171168
      %v1380 = vunpack.c.0.s8 %v1379
      %v1381 = vlaneseq
      %v1382 = vshrl.u32 %v1381, 7
      %v1383 = vsub.s32 %v1380, %v1382
      %v1384 = vrot.slane %v1362, %v1383
      %v1386 = vunpack.c.l.s4 1966171168
      %v1387 = vunpack.c.0.s8 %v1386
      %v1388 = vlaneseq
      %v1389 = vshrl.u32 %v1388, 7
      %v1390 = vsub.s32 %v1387, %v1389
      %v1391 = vrot.slane %v1363, %v1390
      %v1392 = vcombine.low %v1370, %v1377
      %v1393 = vcombine.low %v1384, %v1391
      %v1395 = vunpack.c.l.s4 1966171168
      %v1396 = vunpack.c.0.s8 %v1395
      %v1397 = vlaneseq
      %v1398 = vshrl.u32 %v1397, 7
      %v1399 = vsub.s32 %v1396, %v1398
      %v1400 = vrot.slane %v1392, %v1399
      %v1402 = vunpack.c.l.s4 1966171168
      %v1403 = vunpack.c.0.s8 %v1402
      %v1404 = vlaneseq
      %v1405 = vshrl.u32 %v1404, 7
      %v1406 = vsub.s32 %v1403, %v1405
      %v1407 = vrot.slane %v1393, %v1406
      %v1408 = vcombine.low %v1400, %v1407
      %v1409 = vcombine.low %v824, %v825
      %v1410 = vcombine.low %v826, %v841
      %v1411 = vcombine.low %v848, %v849
      %v1412 = vcombine.low %v850, %v864
      %v1414 = vunpack.c.l.s4 1966171168
      %v1415 = vunpack.c.0.s8 %v1414
      %v1416 = vlaneseq
      %v1417 = vshrl.u32 %v1416, 7
      %v1418 = vsub.s32 %v1415, %v1417
      %v1419 = vrot.slane %v1409, %v1418
      %v1421 = vunpack.c.l.s4 1966171168
      %v1422 = vunpack.c.0.s8 %v1421
      %v1423 = vlaneseq
      %v1424 = vshrl.u32 %v1423, 7
      %v1425 = vsub.s32 %v1422, %v1424
      %v1426 = vrot.slane %v1410, %v1425
      %v1428 = vunpack.c.l.s4 1966171168
      %v1429 = vunpack.c.0.s8 %v1428
      %v1430 = vlaneseq
      %v1431 = vshrl.u32 %v1430, 7
      %v1432 = vsub.s32 %v1429, %v1431
      %v1433 = vrot.slane %v1411, %v1432
      %v1435 = vunpack.c.l.s4 1966171168
      %v1436 = vunpack.c.0.s8 %v1435
      %v1437 = vlaneseq
      %v1438 = vshrl.u32 %v1437, 7
      %v1439 = vsub.s32 %v1436, %v1438
      %v1440 = vrot.slane %v1412, %v1439
      %v1441 = vcombine.low %v1419, %v1426
      %v1442 = vcombine.low %v1433, %v1440
      %v1444 = vunpack.c.l.s4 1966171168
      %v1445 = vunpack.c.0.s8 %v1444
      %v1446 = vlaneseq
      %v1447 = vshrl.u32 %v1446, 7
      %v1448 = vsub.s32 %v1445, %v1447
      %v1449 = vrot.slane %v1441, %v1448
      %v1451 = vunpack.c.l.s4 1966171168
      %v1452 = vunpack.c.0.s8 %v1451
      %v1453 = vlaneseq
      %v1454 = vshrl.u32 %v1453, 7
      %v1455 = vsub.s32 %v1452, %v1454
      %v1456 = vrot.slane %v1442, %v1455
      %v1457 = vcombine.low %v1449, %v1456
      %v1458 = vcombine.low %v879, %v886
      %v1459 = vcombine.low %v887, %v888
      %v1460 = vcombine.low %v903, %v910
      %v1461 = vcombine.low %v911, %v912
      %v1463 = vunpack.c.l.s4 1966171168
      %v1464 = vunpack.c.0.s8 %v1463
      %v1465 = vlaneseq
      %v1466 = vshrl.u32 %v1465, 7
      %v1467 = vsub.s32 %v1464, %v1466
      %v1468 = vrot.slane %v1458, %v1467
      %v1470 = vunpack.c.l.s4 1966171168
      %v1471 = vunpack.c.0.s8 %v1470
      %v1472 = vlaneseq
      %v1473 = vshrl.u32 %v1472, 7
      %v1474 = vsub.s32 %v1471, %v1473
      %v1475 = vrot.slane %v1459, %v1474
      %v1477 = vunpack.c.l.s4 1966171168
      %v1478 = vunpack.c.0.s8 %v1477
      %v1479 = vlaneseq
      %v1480 = vshrl.u32 %v1479, 7
      %v1481 = vsub.s32 %v1478, %v1480
      %v1482 = vrot.slane %v1460, %v1481
      %v1484 = vunpack.c.l.s4 1966171168
      %v1485 = vunpack.c.0.s8 %v1484
      %v1486 = vlaneseq
      %v1487 = vshrl.u32 %v1486, 7
      %v1488 = vsub.s32 %v1485, %v1487
      %v1489 = vrot.slane %v1461, %v1488
      %v1490 = vcombine.low %v1468, %v1475
      %v1491 = vcombine.low %v1482, %v1489
      %v1493 = vunpack.c.l.s4 1966171168
      %v1494 = vunpack.c.0.s8 %v1493
      %v1495 = vlaneseq
      %v1496 = vshrl.u32 %v1495, 7
      %v1497 = vsub.s32 %v1494, %v1496
      %v1498 = vrot.slane %v1490, %v1497
      %v1500 = vunpack.c.l.s4 1966171168
      %v1501 = vunpack.c.0.s8 %v1500
      %v1502 = vlaneseq
      %v1503 = vshrl.u32 %v1502, 7
      %v1504 = vsub.s32 %v1501, %v1503
      %v1505 = vrot.slane %v1491, %v1504
      %v1506 = vcombine.low %v1498, %v1505
      %v1507 = vcombine.low %v926, %v941
      %v1508 = vcombine.low %v948, %v949
      %v1509 = vcombine.low %v950, %v965
      %v1510 = vcombine.low %v972, %v973
      %v1512 = vunpack.c.l.s4 1966171168
      %v1513 = vunpack.c.0.s8 %v1512
      %v1514 = vlaneseq
      %v1515 = vshrl.u32 %v1514, 7
      %v1516 = vsub.s32 %v1513, %v1515
      %v1517 = vrot.slane %v1507, %v1516
      %v1519 = vunpack.c.l.s4 1966171168
      %v1520 = vunpack.c.0.s8 %v1519
      %v1521 = vlaneseq
      %v1522 = vshrl.u32 %v1521, 7
      %v1523 = vsub.s32 %v1520, %v1522
      %v1524 = vrot.slane %v1508, %v1523
      %v1526 = vunpack.c.l.s4 1966171168
      %v1527 = vunpack.c.0.s8 %v1526
      %v1528 = vlaneseq
      %v1529 = vshrl.u32 %v1528, 7
      %v1530 = vsub.s32 %v1527, %v1529
      %v1531 = vrot.slane %v1509, %v1530
      %v1533 = vunpack.c.l.s4 1966171168
      %v1534 = vunpack.c.0.s8 %v1533
      %v1535 = vlaneseq
      %v1536 = vshrl.u32 %v1535, 7
      %v1537 = vsub.s32 %v1534, %v1536
      %v1538 = vrot.slane %v1510, %v1537
      %v1539 = vcombine.low %v1517, %v1524
      %v1540 = vcombine.low %v1531, %v1538
      %v1542 = vunpack.c.l.s4 1966171168
      %v1543 = vunpack.c.0.s8 %v1542
      %v1544 = vlaneseq
      %v1545 = vshrl.u32 %v1544, 7
      %v1546 = vsub.s32 %v1543, %v1545
      %v1547 = vrot.slane %v1539, %v1546
      %v1549 = vunpack.c.l.s4 1966171168
      %v1550 = vunpack.c.0.s8 %v1549
      %v1551 = vlaneseq
      %v1552 = vshrl.u32 %v1551, 7
      %v1553 = vsub.s32 %v1550, %v1552
      %v1554 = vrot.slane %v1540, %v1553
      %v1555 = vcombine.low %v1547, %v1554
      %v1556 = vcombine.low %v974, %v988
      %v1558 = vunpack.c.l.s4 1966171168
      %v1559 = vunpack.c.0.s8 %v1558
      %v1560 = vlaneseq
      %v1561 = vshrl.u32 %v1560, 7
      %v1562 = vsub.s32 %v1559, %v1561
      %v1563 = vrot.slane %v1556, %v1562
      %v1565 = vunpack.c.l.s4 1966171168
      %v1566 = vunpack.c.0.s8 %v1565
      %v1567 = vlaneseq
      %v1568 = vshrl.u32 %v1567, 7
      %v1569 = vsub.s32 %v1566, %v1568
      %v1570 = vrot.slane %v1563, %v1569
      %v1599 = vunpack.c.l.b16 %v989
      %v1600 = vunpack.c.h.b16 %v989
      %v1601 = vunpack.c.l.b16 %v990
      %v1602 = vunpack.c.h.b16 %v990
      %v1603 = vunpack.c.l.b16 %v991
      %v1604 = vunpack.c.h.b16 %v991
      %v1605 = vunpack.c.l.b16 %v992
      %v1606 = vunpack.c.h.b16 %v992
      %v1607 = vunpack.c.l.b16 %v993
      %v1608 = vunpack.c.h.b16 %v993
      %v1609 = vunpack.c.l.b16 %v994
      %v1610 = vunpack.c.h.b16 %v994
      %v1611 = vunpack.c.l.b16 %v995
      %v1612 = vunpack.c.h.b16 %v995
      %v1613 = vunpack.c.l.b16 %v996
      %v1614 = vunpack.c.h.b16 %v996
      %v1615 = vunpack.c.l.b16 %v997
      %v1616 = vunpack.c.h.b16 %v997
      %v1617 = vunpack.c.l.b16 %v998
      %v1618 = vunpack.c.h.b16 %v998
      %v1619 = vunpack.c.l.b16 %v999
      %v1620 = vunpack.c.h.b16 %v999
      %v1621 = vunpack.c.l.b16 %v1000
      %v1622 = vunpack.c.h.b16 %v1000
      %v1623 = vunpack.c.l.b16 %v1001
      %v1624 = vunpack.c.h.b16 %v1001
      %v1625 = vunpack.c.l.b16 %v1002
      %v1626 = vunpack.c.h.b16 %v1002
      %v1627 = vunpack.c.l.b16 %v1003
      %v1628 = vunpack.c.h.b16 %v1003
      %v1629 = vunpack.c.l.b16 %v1004
      %v1630 = vunpack.c.h.b16 %v1004
      %v1631 = vpack.c.b16 %v1601, %v1599
      %v1632 = vpack.c.b16 %v1602, %v1600
      %v1633 = vpack.c.b16 %v1605, %v1603
      %v1634 = vpack.c.b16 %v1606, %v1604
      %v1635 = vpack.c.b16 %v1609, %v1607
      %v1636 = vpack.c.b16 %v1610, %v1608
      %v1637 = vpack.c.b16 %v1613, %v1611
      %v1638 = vpack.c.b16 %v1614, %v1612
      %v1639 = vpack.c.b16 %v1617, %v1615
      %v1640 = vpack.c.b16 %v1618, %v1616
      %v1641 = vpack.c.b16 %v1621, %v1619
      %v1642 = vpack.c.b16 %v1622, %v1620
      %v1643 = vpack.c.b16 %v1625, %v1623
      %v1644 = vpack.c.b16 %v1626, %v1624
      %v1645 = vpack.c.b16 %v1629, %v1627
      %v1646 = vpack.c.b16 %v1630, %v1628
      %1663 = vmatprep.subr.bf16.mxu0 %v1632
      %1664 = vmatpush1.bf16.msra.mxu0 %v1631
      %1665 = vmatprep.subr.bf16.mxu0 %v1634
      %1666 = vmatpush1.bf16.msra.mxu0 %v1633
      %1667 = vmatprep.subr.bf16.mxu0 %v1636
      %1668 = vmatpush1.bf16.msra.mxu0 %v1635
      %1669 = vmatprep.subr.bf16.mxu0 %v1638
      %1670 = vmatpush1.bf16.msra.mxu0 %v1637
      %1671 = vmatprep.subr.bf16.mxu0 %v1640
      %1672 = vmatpush1.bf16.msra.mxu0 %v1639
      %1673 = vmatprep.subr.bf16.mxu0 %v1642
      %1674 = vmatpush1.bf16.msra.mxu0 %v1641
      %1675 = vmatprep.subr.bf16.mxu0 %v1644
      %1676 = vmatpush1.bf16.msra.mxu0 %v1643
      %1677 = vmatprep.subr.bf16.mxu0 %v1646
      %1678 = vmatpush1.bf16.msra.mxu0 %v1645
      %1679 = vmatprep.subr.bf16.mxu0 0
      %1680 = vmatpush1.bf16.msra.mxu0 0
      %1681 = vmatprep.subr.bf16.mxu0 0
      %1682 = vmatpush1.bf16.msra.mxu0 0
      %1683 = vmatprep.subr.bf16.mxu0 0
      %1684 = vmatpush1.bf16.msra.mxu0 0
      %1685 = vmatprep.subr.bf16.mxu0 0
      %1686 = vmatpush1.bf16.msra.mxu0 0
      %1687 = vmatprep.subr.bf16.mxu0 0
      %1688 = vmatpush1.bf16.msra.mxu0 0
      %1689 = vmatprep.subr.bf16.mxu0 0
      %1690 = vmatpush1.bf16.msra.mxu0 0
      %1691 = vmatprep.subr.bf16.mxu0 0
      %1692 = vmatpush1.bf16.msra.mxu0 0
      %1693 = vmatprep.subr.bf16.mxu0 0
      %1694 = vmatpush1.bf16.msra.mxu0 0
      %1695 = vmatprep.mubr.bf16.mxu0 0
      %1696 = vmatmul.mubr.bf16.gmra.mrb[0].mxu0 %v1065
      %v1697 = vpop.f32.mrb[0].mxu0
      %v1698 = vadd.f32 %v1010, %v1697
      %v1699 = vpop.f32.mrb[0].mxu0
      %v1700 = vadd.f32 %v1014, %v1699
      %v1701 = vpop.f32.mrb[0].mxu0
      %v1702 = vadd.f32 %v1010, %v1701
      %v1703 = vpop.f32.mrb[0].mxu0
      %v1704 = vadd.f32 %v1014, %v1703
      %1705 = vmatprep.mubr.bf16.mxu0 0
      %1706 = vmatmul.mubr.bf16.gmra.mrb[0].mxu0 %v1114
      %v1707 = vpop.f32.mrb[0].mxu0
      %v1708 = vadd.f32 %v1010, %v1707
      %v1709 = vpop.f32.mrb[0].mxu0
      %v1710 = vadd.f32 %v1014, %v1709
      %v1711 = vpop.f32.mrb[0].mxu0
      %v1712 = vadd.f32 %v1010, %v1711
      %v1713 = vpop.f32.mrb[0].mxu0
      %v1714 = vadd.f32 %v1014, %v1713
      %1715 = vmatprep.mubr.bf16.mxu0 0
      %1716 = vmatmul.mubr.bf16.gmra.mrb[0].mxu0 %v1163
      %v1717 = vpop.f32.mrb[0].mxu0
      %v1718 = vadd.f32 %v1010, %v1717
      %v1719 = vpop.f32.mrb[0].mxu0
      %v1720 = vadd.f32 %v1014, %v1719
      %v1721 = vpop.f32.mrb[0].mxu0
      %v1722 = vadd.f32 %v1010, %v1721
      %v1723 = vpop.f32.mrb[0].mxu0
      %v1724 = vadd.f32 %v1014, %v1723
      %1725 = vmatprep.mubr.bf16.mxu0 0
      %1726 = vmatmul.mubr.bf16.gmra.mrb[0].mxu0 %v1212
      %v1727 = vpop.f32.mrb[0].mxu0
      %v1728 = vadd.f32 %v1010, %v1727
      %v1729 = vpop.f32.mrb[0].mxu0
      %v1730 = vadd.f32 %v1014, %v1729
      %v1731 = vpop.f32.mrb[0].mxu0
      %v1732 = vadd.f32 %v1010, %v1731
      %v1733 = vpop.f32.mrb[0].mxu0
      %v1734 = vadd.f32 %v1014, %v1733
      %1735 = vmatprep.mubr.bf16.mxu0 0
      %1736 = vmatmul.mubr.bf16.gmra.mrb[0].mxu0 %v1261
      %v1737 = vpop.f32.mrb[0].mxu0
      %v1738 = vadd.f32 %v1010, %v1737
      %v1739 = vpop.f32.mrb[0].mxu0
      %v1740 = vadd.f32 %v1014, %v1739
      %v1741 = vpop.f32.mrb[0].mxu0
      %v1742 = vadd.f32 %v1010, %v1741
      %v1743 = vpop.f32.mrb[0].mxu0
      %v1744 = vadd.f32 %v1014, %v1743
      %1745 = vmatprep.mubr.bf16.mxu0 0
      %1746 = vmatmul.mubr.bf16.gmra.mrb[0].mxu0 %v1310
      %v1747 = vpop.f32.mrb[0].mxu0
      %v1748 = vadd.f32 %v1010, %v1747
      %v1749 = vpop.f32.mrb[0].mxu0
      %v1750 = vadd.f32 %v1014, %v1749
      %v1751 = vpop.f32.mrb[0].mxu0
      %v1752 = vadd.f32 %v1010, %v1751
      %v1753 = vpop.f32.mrb[0].mxu0
      %v1754 = vadd.f32 %v1014, %v1753
      %1755 = vmatprep.mubr.bf16.mxu0 0
      %1756 = vmatmul.mubr.bf16.gmra.mrb[0].mxu0 %v1359
      %v1757 = vpop.f32.mrb[0].mxu0
      %v1758 = vadd.f32 %v1010, %v1757
      %v1759 = vpop.f32.mrb[0].mxu0
      %v1760 = vadd.f32 %v1014, %v1759
      %v1761 = vpop.f32.mrb[0].mxu0
      %v1762 = vadd.f32 %v1010, %v1761
      %v1763 = vpop.f32.mrb[0].mxu0
      %v1764 = vadd.f32 %v1014, %v1763
      %1765 = vmatprep.mubr.bf16.mxu0 0
      %1766 = vmatmul.mubr.bf16.gmra.mrb[0].mxu0 %v1408
      %v1767 = vpop.f32.mrb[0].mxu0
      %v1768 = vadd.f32 %v1010, %v1767
      %v1769 = vpop.f32.mrb[0].mxu0
      %v1770 = vadd.f32 %v1014, %v1769
      %v1771 = vpop.f32.mrb[0].mxu0
      %v1772 = vadd.f32 %v1010, %v1771
      %v1773 = vpop.f32.mrb[0].mxu0
      %v1774 = vadd.f32 %v1014, %v1773
      %1775 = vmatprep.mubr.bf16.mxu0 0
      %1776 = vmatmul.mubr.bf16.gmra.mrb[0].mxu0 %v1457
      %v1777 = vpop.f32.mrb[0].mxu0
      %v1778 = vadd.f32 %v1010, %v1777
      %v1779 = vpop.f32.mrb[0].mxu0
      %v1780 = vadd.f32 %v1014, %v1779
      %v1781 = vpop.f32.mrb[0].mxu0
      %v1782 = vadd.f32 %v1010, %v1781
      %v1783 = vpop.f32.mrb[0].mxu0
      %v1784 = vadd.f32 %v1014, %v1783
      %1785 = vmatprep.mubr.bf16.mxu0 0
      %1786 = vmatmul.mubr.bf16.gmra.mrb[0].mxu0 %v1506
      %v1787 = vpop.f32.mrb[0].mxu0
      %v1788 = vadd.f32 %v1010, %v1787
      %v1789 = vpop.f32.mrb[0].mxu0
      %v1790 = vadd.f32 %v1014, %v1789
      %v1791 = vpop.f32.mrb[0].mxu0
      %v1792 = vadd.f32 %v1010, %v1791
      %v1793 = vpop.f32.mrb[0].mxu0
      %v1794 = vadd.f32 %v1014, %v1793
      %1795 = vmatprep.mubr.bf16.mxu0 0
      %1796 = vmatmul.mubr.bf16.gmra.mrb[0].mxu0 %v1555
      %v1797 = vpop.f32.mrb[0].mxu0
      %v1798 = vadd.f32 %v1010, %v1797
      %v1799 = vpop.f32.mrb[0].mxu0
      %v1800 = vadd.f32 %v1014, %v1799
      %v1801 = vpop.f32.mrb[0].mxu0
      %v1802 = vadd.f32 %v1010, %v1801
      %v1803 = vpop.f32.mrb[0].mxu0
      %v1804 = vadd.f32 %v1014, %v1803
      %1805 = vmatprep.mubr.bf16.mxu0 0
      %1806 = vmatmul.mubr.bf16.gmra.mrb[0].mxu0 %v1570
      %v1807 = vpop.f32.mrb[0].mxu0
      %v1808 = vadd.f32 %v1010, %v1807
      %v1809 = vpop.f32.mrb[0].mxu0
      %v1810 = vadd.f32 %v1014, %v1809
      %v1811 = vpop.f32.mrb[0].mxu0
      %v1812 = vpop.f32.mrb[0].mxu0
      %1813 = vdwg.mxu0
      %v1814 = vmax.f32 %v1698, 0.0
      %v1815 = vmax.f32 %v1700, 0.0
      %v1816 = vmax.f32 %v1702, 0.0
      %v1817 = vmax.f32 %v1704, 0.0
      %v1818 = vmax.f32 %v1708, 0.0
      %v1819 = vmax.f32 %v1710, 0.0
      %v1820 = vmax.f32 %v1712, 0.0
      %v1821 = vmax.f32 %v1714, 0.0
      %v1822 = vmax.f32 %v1718, 0.0
      %v1823 = vmax.f32 %v1720, 0.0
      %v1824 = vmax.f32 %v1722, 0.0
      %v1825 = vmax.f32 %v1724, 0.0
      %v1826 = vmax.f32 %v1728, 0.0
      %v1827 = vmax.f32 %v1730, 0.0
      %v1828 = vmax.f32 %v1732, 0.0
      %v1829 = vmax.f32 %v1734, 0.0
      %v1830 = vmax.f32 %v1738, 0.0
      %v1831 = vmax.f32 %v1740, 0.0
      %v1832 = vmax.f32 %v1742, 0.0
      %v1833 = vmax.f32 %v1744, 0.0
      %v1834 = vmax.f32 %v1748, 0.0
      %v1835 = vmax.f32 %v1750, 0.0
      %v1836 = vmax.f32 %v1752, 0.0
      %v1837 = vmax.f32 %v1754, 0.0
      %v1838 = vmax.f32 %v1758, 0.0
      %v1839 = vmax.f32 %v1760, 0.0
      %v1840 = vmax.f32 %v1762, 0.0
      %v1841 = vmax.f32 %v1764, 0.0
      %v1842 = vmax.f32 %v1768, 0.0
      %v1843 = vmax.f32 %v1770, 0.0
      %v1844 = vmax.f32 %v1772, 0.0
      %v1845 = vmax.f32 %v1774, 0.0
      %v1846 = vmax.f32 %v1778, 0.0
      %v1847 = vmax.f32 %v1780, 0.0
      %v1848 = vmax.f32 %v1782, 0.0
      %v1849 = vmax.f32 %v1784, 0.0
      %v1850 = vmax.f32 %v1788, 0.0
      %v1851 = vmax.f32 %v1790, 0.0
      %v1852 = vmax.f32 %v1792, 0.0
      %v1853 = vmax.f32 %v1794, 0.0
      %v1854 = vmax.f32 %v1798, 0.0
      %v1855 = vmax.f32 %v1800, 0.0
      %v1856 = vmax.f32 %v1802, 0.0
      %v1857 = vmax.f32 %v1804, 0.0
      %v1858 = vmax.f32 %v1808, 0.0
      %v1859 = vmax.f32 %v1810, 0.0
      %v1860 = vmin.f32 %v1814, 6.0
      %v1861 = vmin.f32 %v1815, 6.0
      %v1862 = vmin.f32 %v1816, 6.0
      %v1863 = vmin.f32 %v1817, 6.0
      %v1864 = vmin.f32 %v1818, 6.0
      %v1865 = vmin.f32 %v1819, 6.0
      %v1866 = vmin.f32 %v1820, 6.0
      %v1867 = vmin.f32 %v1821, 6.0
      %v1868 = vmin.f32 %v1822, 6.0
      %v1869 = vmin.f32 %v1823, 6.0
      %v1870 = vmin.f32 %v1824, 6.0
      %v1871 = vmin.f32 %v1825, 6.0
      %v1872 = vmin.f32 %v1826, 6.0
      %v1873 = vmin.f32 %v1827, 6.0
      %v1874 = vmin.f32 %v1828, 6.0
      %v1875 = vmin.f32 %v1829, 6.0
      %v1876 = vmin.f32 %v1830, 6.0
      %v1877 = vmin.f32 %v1831, 6.0
      %v1878 = vmin.f32 %v1832, 6.0
      %v1879 = vmin.f32 %v1833, 6.0
      %v1880 = vmin.f32 %v1834, 6.0
      %v1881 = vmin.f32 %v1835, 6.0
      %v1882 = vmin.f32 %v1836, 6.0
      %v1883 = vmin.f32 %v1837, 6.0
      %v1884 = vmin.f32 %v1838, 6.0
      %v1885 = vmin.f32 %v1839, 6.0
      %v1886 = vmin.f32 %v1840, 6.0
      %v1887 = vmin.f32 %v1841, 6.0
      %v1888 = vmin.f32 %v1842, 6.0
      %v1889 = vmin.f32 %v1843, 6.0
      %v1890 = vmin.f32 %v1844, 6.0
      %v1891 = vmin.f32 %v1845, 6.0
      %v1892 = vmin.f32 %v1846, 6.0
      %v1893 = vmin.f32 %v1847, 6.0
      %v1894 = vmin.f32 %v1848, 6.0
      %v1895 = vmin.f32 %v1849, 6.0
      %v1896 = vmin.f32 %v1850, 6.0
      %v1897 = vmin.f32 %v1851, 6.0
      %v1898 = vmin.f32 %v1852, 6.0
      %v1899 = vmin.f32 %v1853, 6.0
      %v1900 = vmin.f32 %v1854, 6.0
      %v1901 = vmin.f32 %v1855, 6.0
      %v1902 = vmin.f32 %v1856, 6.0
      %v1903 = vmin.f32 %v1857, 6.0
      %v1904 = vmin.f32 %v1858, 6.0
      %v1905 = vmin.f32 %v1859, 6.0
      %v1952 = vcombine.low %v1860, %v1861
      %v1953 = vcombine.high %v1860, %v1861
      %v1955 = vunpack.c.l.s4 1983009808
      %v1956 = vunpack.c.0.s8 %v1955
      %v1957 = vlaneseq
      %v1958 = vshrl.u32 %v1957, 7
      %v1959 = vsub.s32 %v1956, %v1958
      %v1960 = vrot.slane %v1952, %v1959
      %v1962 = vunpack.c.l.s4 1983009808
      %v1963 = vunpack.c.0.s8 %v1962
      %v1964 = vlaneseq
      %v1965 = vshrl.u32 %v1964, 7
      %v1966 = vsub.s32 %v1963, %v1965
      %v1967 = vrot.slane %v1953, %v1966
      %v1968 = vcombine.high %v1960, %v1960
      %v1969 = vcombine.high %v1967, %v1967
      %v1970 = vcombine.low %v1862, %v1863
      %v1971 = vcombine.high %v1862, %v1863
      %v1973 = vunpack.c.l.s4 1983009808
      %v1974 = vunpack.c.0.s8 %v1973
      %v1975 = vlaneseq
      %v1976 = vshrl.u32 %v1975, 7
      %v1977 = vsub.s32 %v1974, %v1976
      %v1978 = vrot.slane %v1970, %v1977
      %v1980 = vunpack.c.l.s4 1983009808
      %v1981 = vunpack.c.0.s8 %v1980
      %v1982 = vlaneseq
      %v1983 = vshrl.u32 %v1982, 7
      %v1984 = vsub.s32 %v1981, %v1983
      %v1985 = vrot.slane %v1971, %v1984
      %v1986 = vcombine.high %v1978, %v1978
      %v1987 = vcombine.high %v1985, %v1985
      %v1988 = vcombine.low %v1864, %v1865
      %v1989 = vcombine.high %v1864, %v1865
      %v1991 = vunpack.c.l.s4 1983009808
      %v1992 = vunpack.c.0.s8 %v1991
      %v1993 = vlaneseq
      %v1994 = vshrl.u32 %v1993, 7
      %v1995 = vsub.s32 %v1992, %v1994
      %v1996 = vrot.slane %v1988, %v1995
      %v1998 = vunpack.c.l.s4 1983009808
      %v1999 = vunpack.c.0.s8 %v1998
      %v2000 = vlaneseq
      %v2001 = vshrl.u32 %v2000, 7
      %v2002 = vsub.s32 %v1999, %v2001
      %v2003 = vrot.slane %v1989, %v2002
      %v2004 = vcombine.high %v1996, %v1996
      %v2005 = vcombine.high %v2003, %v2003
      %v2006 = vcombine.low %v1866, %v1867
      %v2007 = vcombine.high %v1866, %v1867
      %v2009 = vunpack.c.l.s4 1983009808
      %v2010 = vunpack.c.0.s8 %v2009
      %v2011 = vlaneseq
      %v2012 = vshrl.u32 %v2011, 7
      %v2013 = vsub.s32 %v2010, %v2012
      %v2014 = vrot.slane %v2006, %v2013
      %v2016 = vunpack.c.l.s4 1983009808
      %v2017 = vunpack.c.0.s8 %v2016
      %v2018 = vlaneseq
      %v2019 = vshrl.u32 %v2018, 7
      %v2020 = vsub.s32 %v2017, %v2019
      %v2021 = vrot.slane %v2007, %v2020
      %v2022 = vcombine.high %v2014, %v2014
      %v2023 = vcombine.high %v2021, %v2021
      %v2024 = vcombine.low %v1868, %v1869
      %v2025 = vcombine.high %v1868, %v1869
      %v2027 = vunpack.c.l.s4 1983009808
      %v2028 = vunpack.c.0.s8 %v2027
      %v2029 = vlaneseq
      %v2030 = vshrl.u32 %v2029, 7
      %v2031 = vsub.s32 %v2028, %v2030
      %v2032 = vrot.slane %v2024, %v2031
      %v2034 = vunpack.c.l.s4 1983009808
      %v2035 = vunpack.c.0.s8 %v2034
      %v2036 = vlaneseq
      %v2037 = vshrl.u32 %v2036, 7
      %v2038 = vsub.s32 %v2035, %v2037
      %v2039 = vrot.slane %v2025, %v2038
      %v2040 = vcombine.high %v2032, %v2032
      %v2041 = vcombine.high %v2039, %v2039
      %v2042 = vcombine.low %v1870, %v1871
      %v2043 = vcombine.high %v1870, %v1871
      %v2045 = vunpack.c.l.s4 1983009808
      %v2046 = vunpack.c.0.s8 %v2045
      %v2047 = vlaneseq
      %v2048 = vshrl.u32 %v2047, 7
      %v2049 = vsub.s32 %v2046, %v2048
      %v2050 = vrot.slane %v2042, %v2049
      %v2052 = vunpack.c.l.s4 1983009808
      %v2053 = vunpack.c.0.s8 %v2052
      %v2054 = vlaneseq
      %v2055 = vshrl.u32 %v2054, 7
      %v2056 = vsub.s32 %v2053, %v2055
      %v2057 = vrot.slane %v2043, %v2056
      %v2058 = vcombine.high %v2050, %v2050
      %v2059 = vcombine.high %v2057, %v2057
      %v2060 = vcombine.low %v1872, %v1873
      %v2061 = vcombine.high %v1872, %v1873
      %v2063 = vunpack.c.l.s4 1983009808
      %v2064 = vunpack.c.0.s8 %v2063
      %v2065 = vlaneseq
      %v2066 = vshrl.u32 %v2065, 7
      %v2067 = vsub.s32 %v2064, %v2066
      %v2068 = vrot.slane %v2060, %v2067
      %v2070 = vunpack.c.l.s4 1983009808
      %v2071 = vunpack.c.0.s8 %v2070
      %v2072 = vlaneseq
      %v2073 = vshrl.u32 %v2072, 7
      %v2074 = vsub.s32 %v2071, %v2073
      %v2075 = vrot.slane %v2061, %v2074
      %v2076 = vcombine.high %v2068, %v2068
      %v2077 = vcombine.high %v2075, %v2075
      %v2078 = vcombine.low %v1874, %v1875
      %v2079 = vcombine.high %v1874, %v1875
      %v2081 = vunpack.c.l.s4 1983009808
      %v2082 = vunpack.c.0.s8 %v2081
      %v2083 = vlaneseq
      %v2084 = vshrl.u32 %v2083, 7
      %v2085 = vsub.s32 %v2082, %v2084
      %v2086 = vrot.slane %v2078, %v2085
      %v2088 = vunpack.c.l.s4 1983009808
      %v2089 = vunpack.c.0.s8 %v2088
      %v2090 = vlaneseq
      %v2091 = vshrl.u32 %v2090, 7
      %v2092 = vsub.s32 %v2089, %v2091
      %v2093 = vrot.slane %v2079, %v2092
      %v2094 = vcombine.high %v2086, %v2086
      %v2095 = vcombine.high %v2093, %v2093
      %v2096 = vcombine.low %v1876, %v1877
      %v2097 = vcombine.high %v1876, %v1877
      %v2099 = vunpack.c.l.s4 1983009808
      %v2100 = vunpack.c.0.s8 %v2099
      %v2101 = vlaneseq
      %v2102 = vshrl.u32 %v2101, 7
      %v2103 = vsub.s32 %v2100, %v2102
      %v2104 = vrot.slane %v2096, %v2103
      %v2106 = vunpack.c.l.s4 1983009808
      %v2107 = vunpack.c.0.s8 %v2106
      %v2108 = vlaneseq
      %v2109 = vshrl.u32 %v2108, 7
      %v2110 = vsub.s32 %v2107, %v2109
      %v2111 = vrot.slane %v2097, %v2110
      %v2112 = vcombine.high %v2104, %v2104
      %v2113 = vcombine.high %v2111, %v2111
      %v2114 = vcombine.low %v1878, %v1879
      %v2115 = vcombine.high %v1878, %v1879
      %v2117 = vunpack.c.l.s4 1983009808
      %v2118 = vunpack.c.0.s8 %v2117
      %v2119 = vlaneseq
      %v2120 = vshrl.u32 %v2119, 7
      %v2121 = vsub.s32 %v2118, %v2120
      %v2122 = vrot.slane %v2114, %v2121
      %v2124 = vunpack.c.l.s4 1983009808
      %v2125 = vunpack.c.0.s8 %v2124
      %v2126 = vlaneseq
      %v2127 = vshrl.u32 %v2126, 7
      %v2128 = vsub.s32 %v2125, %v2127
      %v2129 = vrot.slane %v2115, %v2128
      %v2130 = vcombine.high %v2122, %v2122
      %v2131 = vcombine.high %v2129, %v2129
      %v2132 = vcombine.low %v1880, %v1881
      %v2133 = vcombine.high %v1880, %v1881
      %v2135 = vunpack.c.l.s4 1983009808
      %v2136 = vunpack.c.0.s8 %v2135
      %v2137 = vlaneseq
      %v2138 = vshrl.u32 %v2137, 7
      %v2139 = vsub.s32 %v2136, %v2138
      %v2140 = vrot.slane %v2132, %v2139
      %v2142 = vunpack.c.l.s4 1983009808
      %v2143 = vunpack.c.0.s8 %v2142
      %v2144 = vlaneseq
      %v2145 = vshrl.u32 %v2144, 7
      %v2146 = vsub.s32 %v2143, %v2145
      %v2147 = vrot.slane %v2133, %v2146
      %v2148 = vcombine.high %v2140, %v2140
      %v2149 = vcombine.high %v2147, %v2147
      %v2150 = vcombine.low %v1882, %v1883
      %v2151 = vcombine.high %v1882, %v1883
      %v2153 = vunpack.c.l.s4 1983009808
      %v2154 = vunpack.c.0.s8 %v2153
      %v2155 = vlaneseq
      %v2156 = vshrl.u32 %v2155, 7
      %v2157 = vsub.s32 %v2154, %v2156
      %v2158 = vrot.slane %v2150, %v2157
      %v2160 = vunpack.c.l.s4 1983009808
      %v2161 = vunpack.c.0.s8 %v2160
      %v2162 = vlaneseq
      %v2163 = vshrl.u32 %v2162, 7
      %v2164 = vsub.s32 %v2161, %v2163
      %v2165 = vrot.slane %v2151, %v2164
      %v2166 = vcombine.high %v2158, %v2158
      %v2167 = vcombine.high %v2165, %v2165
      %v2168 = vcombine.low %v1884, %v1885
      %v2169 = vcombine.high %v1884, %v1885
      %v2171 = vunpack.c.l.s4 1983009808
      %v2172 = vunpack.c.0.s8 %v2171
      %v2173 = vlaneseq
      %v2174 = vshrl.u32 %v2173, 7
      %v2175 = vsub.s32 %v2172, %v2174
      %v2176 = vrot.slane %v2168, %v2175
      %v2178 = vunpack.c.l.s4 1983009808
      %v2179 = vunpack.c.0.s8 %v2178
      %v2180 = vlaneseq
      %v2181 = vshrl.u32 %v2180, 7
      %v2182 = vsub.s32 %v2179, %v2181
      %v2183 = vrot.slane %v2169, %v2182
      %v2184 = vcombine.high %v2176, %v2176
      %v2185 = vcombine.high %v2183, %v2183
      %v2186 = vcombine.low %v1886, %v1887
      %v2187 = vcombine.high %v1886, %v1887
      %v2189 = vunpack.c.l.s4 1983009808
      %v2190 = vunpack.c.0.s8 %v2189
      %v2191 = vlaneseq
      %v2192 = vshrl.u32 %v2191, 7
      %v2193 = vsub.s32 %v2190, %v2192
      %v2194 = vrot.slane %v2186, %v2193
      %v2196 = vunpack.c.l.s4 1983009808
      %v2197 = vunpack.c.0.s8 %v2196
      %v2198 = vlaneseq
      %v2199 = vshrl.u32 %v2198, 7
      %v2200 = vsub.s32 %v2197, %v2199
      %v2201 = vrot.slane %v2187, %v2200
      %v2202 = vcombine.high %v2194, %v2194
      %v2203 = vcombine.high %v2201, %v2201
      %v2204 = vcombine.low %v1888, %v1889
      %v2205 = vcombine.high %v1888, %v1889
      %v2207 = vunpack.c.l.s4 1983009808
      %v2208 = vunpack.c.0.s8 %v2207
      %v2209 = vlaneseq
      %v2210 = vshrl.u32 %v2209, 7
      %v2211 = vsub.s32 %v2208, %v2210
      %v2212 = vrot.slane %v2204, %v2211
      %v2214 = vunpack.c.l.s4 1983009808
      %v2215 = vunpack.c.0.s8 %v2214
      %v2216 = vlaneseq
      %v2217 = vshrl.u32 %v2216, 7
      %v2218 = vsub.s32 %v2215, %v2217
      %v2219 = vrot.slane %v2205, %v2218
      %v2220 = vcombine.high %v2212, %v2212
      %v2221 = vcombine.high %v2219, %v2219
      %v2222 = vcombine.low %v1890, %v1891
      %v2223 = vcombine.high %v1890, %v1891
      %v2225 = vunpack.c.l.s4 1983009808
      %v2226 = vunpack.c.0.s8 %v2225
      %v2227 = vlaneseq
      %v2228 = vshrl.u32 %v2227, 7
      %v2229 = vsub.s32 %v2226, %v2228
      %v2230 = vrot.slane %v2222, %v2229
      %v2232 = vunpack.c.l.s4 1983009808
      %v2233 = vunpack.c.0.s8 %v2232
      %v2234 = vlaneseq
      %v2235 = vshrl.u32 %v2234, 7
      %v2236 = vsub.s32 %v2233, %v2235
      %v2237 = vrot.slane %v2223, %v2236
      %v2238 = vcombine.high %v2230, %v2230
      %v2239 = vcombine.high %v2237, %v2237
      %v2240 = vcombine.low %v1892, %v1893
      %v2241 = vcombine.high %v1892, %v1893
      %v2243 = vunpack.c.l.s4 1983009808
      %v2244 = vunpack.c.0.s8 %v2243
      %v2245 = vlaneseq
      %v2246 = vshrl.u32 %v2245, 7
      %v2247 = vsub.s32 %v2244, %v2246
      %v2248 = vrot.slane %v2240, %v2247
      %v2250 = vunpack.c.l.s4 1983009808
      %v2251 = vunpack.c.0.s8 %v2250
      %v2252 = vlaneseq
      %v2253 = vshrl.u32 %v2252, 7
      %v2254 = vsub.s32 %v2251, %v2253
      %v2255 = vrot.slane %v2241, %v2254
      %v2256 = vcombine.high %v2248, %v2248
      %v2257 = vcombine.high %v2255, %v2255
      %v2258 = vcombine.low %v1894, %v1895
      %v2259 = vcombine.high %v1894, %v1895
      %v2261 = vunpack.c.l.s4 1983009808
      %v2262 = vunpack.c.0.s8 %v2261
      %v2263 = vlaneseq
      %v2264 = vshrl.u32 %v2263, 7
      %v2265 = vsub.s32 %v2262, %v2264
      %v2266 = vrot.slane %v2258, %v2265
      %v2268 = vunpack.c.l.s4 1983009808
      %v2269 = vunpack.c.0.s8 %v2268
      %v2270 = vlaneseq
      %v2271 = vshrl.u32 %v2270, 7
      %v2272 = vsub.s32 %v2269, %v2271
      %v2273 = vrot.slane %v2259, %v2272
      %v2274 = vcombine.high %v2266, %v2266
      %v2275 = vcombine.high %v2273, %v2273
      %v2276 = vcombine.low %v1896, %v1897
      %v2277 = vcombine.high %v1896, %v1897
      %v2279 = vunpack.c.l.s4 1983009808
      %v2280 = vunpack.c.0.s8 %v2279
      %v2281 = vlaneseq
      %v2282 = vshrl.u32 %v2281, 7
      %v2283 = vsub.s32 %v2280, %v2282
      %v2284 = vrot.slane %v2276, %v2283
      %v2286 = vunpack.c.l.s4 1983009808
      %v2287 = vunpack.c.0.s8 %v2286
      %v2288 = vlaneseq
      %v2289 = vshrl.u32 %v2288, 7
      %v2290 = vsub.s32 %v2287, %v2289
      %v2291 = vrot.slane %v2277, %v2290
      %v2292 = vcombine.high %v2284, %v2284
      %v2293 = vcombine.high %v2291, %v2291
      %v2294 = vcombine.low %v1898, %v1899
      %v2295 = vcombine.high %v1898, %v1899
      %v2297 = vunpack.c.l.s4 1983009808
      %v2298 = vunpack.c.0.s8 %v2297
      %v2299 = vlaneseq
      %v2300 = vshrl.u32 %v2299, 7
      %v2301 = vsub.s32 %v2298, %v2300
      %v2302 = vrot.slane %v2294, %v2301
      %v2304 = vunpack.c.l.s4 1983009808
      %v2305 = vunpack.c.0.s8 %v2304
      %v2306 = vlaneseq
      %v2307 = vshrl.u32 %v2306, 7
      %v2308 = vsub.s32 %v2305, %v2307
      %v2309 = vrot.slane %v2295, %v2308
      %v2310 = vcombine.high %v2302, %v2302
      %v2311 = vcombine.high %v2309, %v2309
      %v2312 = vcombine.low %v1900, %v1901
      %v2313 = vcombine.high %v1900, %v1901
      %v2315 = vunpack.c.l.s4 1983009808
      %v2316 = vunpack.c.0.s8 %v2315
      %v2317 = vlaneseq
      %v2318 = vshrl.u32 %v2317, 7
      %v2319 = vsub.s32 %v2316, %v2318
      %v2320 = vrot.slane %v2312, %v2319
      %v2322 = vunpack.c.l.s4 1983009808
      %v2323 = vunpack.c.0.s8 %v2322
      %v2324 = vlaneseq
      %v2325 = vshrl.u32 %v2324, 7
      %v2326 = vsub.s32 %v2323, %v2325
      %v2327 = vrot.slane %v2313, %v2326
      %v2328 = vcombine.high %v2320, %v2320
      %v2329 = vcombine.high %v2327, %v2327
      %v2330 = vcombine.low %v1902, %v1903
      %v2331 = vcombine.high %v1902, %v1903
      %v2333 = vunpack.c.l.s4 1983009808
      %v2334 = vunpack.c.0.s8 %v2333
      %v2335 = vlaneseq
      %v2336 = vshrl.u32 %v2335, 7
      %v2337 = vsub.s32 %v2334, %v2336
      %v2338 = vrot.slane %v2330, %v2337
      %v2340 = vunpack.c.l.s4 1983009808
      %v2341 = vunpack.c.0.s8 %v2340
      %v2342 = vlaneseq
      %v2343 = vshrl.u32 %v2342, 7
      %v2344 = vsub.s32 %v2341, %v2343
      %v2345 = vrot.slane %v2331, %v2344
      %v2346 = vcombine.high %v2338, %v2338
      %v2347 = vcombine.high %v2345, %v2345
      %v2348 = vcombine.low %v1904, %v1905
      %v2350 = vunpack.c.l.s4 1983009808
      %v2351 = vunpack.c.0.s8 %v2350
      %v2352 = vlaneseq
      %v2353 = vshrl.u32 %v2352, 7
      %v2354 = vsub.s32 %v2351, %v2353
      %v2355 = vrot.slane %v2348, %v2354
      %v2356 = vcombine.high %v2355, %v2355
      %v2357 = vstv %s305
      %v2358 = vadd.s32 %v2357, 1
      %v2359 = vadd.s32 %v2357, 2
      %v2360 = vadd.s32 %v2357, 3
      %v2361 = vadd.s32 %v2357, 4
      %v2362 = vadd.s32 %v2357, 5
      %v2363 = vadd.s32 %v2357, 6
      %v2364 = vadd.s32 %v2357, 7
      %v2365 = vadd.s32 %v2357, 8
      %v2366 = vadd.s32 %v2357, 9
      %v2367 = vlaneseq
      %v2368 = vshrl.u32 %v2367, 7
      %v2369 = vadd.s32 %v2368, 8
      %v2370 = vadd.s32 %v2368, 16
      %vm2371 = vcmp.ge.s32.totalorder %v2357, 1
      %vm2372 = vcmp.ge.s32.totalorder %v2358, 1
      %vm2373 = vcmp.ge.s32.totalorder %v2359, 1
      %vm2374 = vcmp.ge.s32.totalorder %v2360, 1
      %vm2375 = vcmp.ge.s32.totalorder %v2361, 1
      %vm2376 = vcmp.ge.s32.totalorder %v2362, 1
      %vm2377 = vcmp.ge.s32.totalorder %v2363, 1
      %vm2378 = vcmp.ge.s32.totalorder %v2364, 1
      %vm2379 = vcmp.ge.s32.totalorder %v2365, 1
      %vm2380 = vcmp.ge.s32.totalorder %v2366, 1
      %vm2381 = vcmp.le.s32.totalorder %v2357, 16
      %vm2382 = vcmp.le.s32.totalorder %v2358, 16
      %vm2383 = vcmp.le.s32.totalorder %v2359, 16
      %vm2384 = vcmp.le.s32.totalorder %v2360, 16
      %vm2385 = vcmp.le.s32.totalorder %v2361, 16
      %vm2386 = vcmp.le.s32.totalorder %v2362, 16
      %vm2387 = vcmp.le.s32.totalorder %v2363, 16
      %vm2388 = vcmp.le.s32.totalorder %v2364, 16
      %vm2389 = vcmp.le.s32.totalorder %v2365, 16
      %vm2390 = vcmp.le.s32.totalorder %v2366, 16
      %vm2391 = vmand %vm2371, %vm2381
      %vm2392 = vmand %vm2372, %vm2382
      %vm2393 = vmand %vm2373, %vm2383
      %vm2394 = vmand %vm2374, %vm2384
      %vm2395 = vmand %vm2375, %vm2385
      %vm2396 = vmand %vm2376, %vm2386
      %vm2397 = vmand %vm2377, %vm2387
      %vm2398 = vmand %vm2378, %vm2388
      %vm2399 = vmand %vm2379, %vm2389
      %vm2400 = vmand %vm2380, %vm2390
      %vm2401 = vcmp.ge.s32.totalorder %v2368, 1
      %vm2402 = vcmp.ge.s32.totalorder %v2369, 1
      %vm2403 = vcmp.ge.s32.totalorder %v2370, 1
      %vm2404 = vmand %vm2391, %vm2401
      %vm2405 = vmand %vm2391, %vm2402
      %vm2406 = vmand %vm2391, %vm2403
      %vm2407 = vmand %vm2392, %vm2401
      %vm2408 = vmand %vm2392, %vm2402
      %vm2409 = vmand %vm2392, %vm2403
      %vm2410 = vmand %vm2393, %vm2401
      %vm2411 = vmand %vm2393, %vm2402
      %vm2412 = vmand %vm2393, %vm2403
      %vm2413 = vmand %vm2394, %vm2401
      %vm2414 = vmand %vm2394, %vm2402
      %vm2415 = vmand %vm2394, %vm2403
      %vm2416 = vmand %vm2395, %vm2401
      %vm2417 = vmand %vm2395, %vm2402
      %vm2418 = vmand %vm2395, %vm2403
      %vm2419 = vmand %vm2396, %vm2401
      %vm2420 = vmand %vm2396, %vm2402
      %vm2421 = vmand %vm2396, %vm2403
      %vm2422 = vmand %vm2397, %vm2401
      %vm2423 = vmand %vm2397, %vm2402
      %vm2424 = vmand %vm2397, %vm2403
      %vm2425 = vmand %vm2398, %vm2401
      %vm2426 = vmand %vm2398, %vm2402
      %vm2427 = vmand %vm2398, %vm2403
      %vm2428 = vmand %vm2399, %vm2401
      %vm2429 = vmand %vm2399, %vm2402
      %vm2430 = vmand %vm2399, %vm2403
      %vm2431 = vmand %vm2400, %vm2401
      %vm2432 = vmand %vm2400, %vm2402
      %vm2433 = vmand %vm2400, %vm2403
      %vm2434 = vcmp.le.s32.totalorder %v2368, 16
      %vm2435 = vcmp.le.s32.totalorder %v2369, 16
      %vm2436 = vcmp.le.s32.totalorder %v2370, 16
      %vm2437 = vmand %vm2404, %vm2434
      %vm2438 = vmand %vm2405, %vm2435
      %vm2439 = vmand %vm2406, %vm2436
      %vm2440 = vmand %vm2407, %vm2434
      %vm2441 = vmand %vm2408, %vm2435
      %vm2442 = vmand %vm2409, %vm2436
      %vm2443 = vmand %vm2410, %vm2434
      %vm2444 = vmand %vm2411, %vm2435
      %vm2445 = vmand %vm2412, %vm2436
      %vm2446 = vmand %vm2413, %vm2434
      %vm2447 = vmand %vm2414, %vm2435
      %vm2448 = vmand %vm2415, %vm2436
      %vm2449 = vmand %vm2416, %vm2434
      %vm2450 = vmand %vm2417, %vm2435
      %vm2451 = vmand %vm2418, %vm2436
      %vm2452 = vmand %vm2419, %vm2434
      %vm2453 = vmand %vm2420, %vm2435
      %vm2454 = vmand %vm2421, %vm2436
      %vm2455 = vmand %vm2422, %vm2434
      %vm2456 = vmand %vm2423, %vm2435
      %vm2457 = vmand %vm2424, %vm2436
      %vm2458 = vmand %vm2425, %vm2434
      %vm2459 = vmand %vm2426, %vm2435
      %vm2460 = vmand %vm2427, %vm2436
      %vm2461 = vmand %vm2428, %vm2434
      %vm2462 = vmand %vm2429, %vm2435
      %vm2463 = vmand %vm2430, %vm2436
      %vm2464 = vmand %vm2431, %vm2434
      %vm2465 = vmand %vm2432, %vm2435
      %vm2466 = vmand %vm2433, %vm2436
      %v2467 = vsel %vm2437, 1, 0
      %v2468 = vsel %vm2438, 1, 0
      %v2469 = vsel %vm2439, 1, 0
      %v2470 = vsel %vm2440, 1, 0
      %v2471 = vsel %vm2441, 1, 0
      %v2472 = vsel %vm2442, 1, 0
      %v2473 = vsel %vm2443, 1, 0
      %v2474 = vsel %vm2444, 1, 0
      %v2475 = vsel %vm2445, 1, 0
      %v2476 = vsel %vm2446, 1, 0
      %v2477 = vsel %vm2447, 1, 0
      %v2478 = vsel %vm2448, 1, 0
      %v2479 = vsel %vm2449, 1, 0
      %v2480 = vsel %vm2450, 1, 0
      %v2481 = vsel %vm2451, 1, 0
      %v2482 = vsel %vm2452, 1, 0
      %v2483 = vsel %vm2453, 1, 0
      %v2484 = vsel %vm2454, 1, 0
      %v2485 = vsel %vm2455, 1, 0
      %v2486 = vsel %vm2456, 1, 0
      %v2487 = vsel %vm2457, 1, 0
      %v2488 = vsel %vm2458, 1, 0
      %v2489 = vsel %vm2459, 1, 0
      %v2490 = vsel %vm2460, 1, 0
      %v2491 = vsel %vm2461, 1, 0
      %v2492 = vsel %vm2462, 1, 0
      %v2493 = vsel %vm2463, 1, 0
      %v2494 = vsel %vm2464, 1, 0
      %v2495 = vsel %vm2465, 1, 0
      %v2496 = vsel %vm2466, 1, 0
      %vm2497 = vcmp.eq.s32.totalorder %v2467, 1
      %vm2498 = vcmp.eq.s32.totalorder %v2468, 1
      %vm2499 = vcmp.eq.s32.totalorder %v2469, 1
      %vm2500 = vcmp.eq.s32.totalorder %v2470, 1
      %vm2501 = vcmp.eq.s32.totalorder %v2471, 1
      %vm2502 = vcmp.eq.s32.totalorder %v2472, 1
      %vm2503 = vcmp.eq.s32.totalorder %v2473, 1
      %vm2504 = vcmp.eq.s32.totalorder %v2474, 1
      %vm2505 = vcmp.eq.s32.totalorder %v2475, 1
      %vm2506 = vcmp.eq.s32.totalorder %v2476, 1
      %vm2507 = vcmp.eq.s32.totalorder %v2477, 1
      %vm2508 = vcmp.eq.s32.totalorder %v2478, 1
      %vm2509 = vcmp.eq.s32.totalorder %v2479, 1
      %vm2510 = vcmp.eq.s32.totalorder %v2480, 1
      %vm2511 = vcmp.eq.s32.totalorder %v2481, 1
      %vm2512 = vcmp.eq.s32.totalorder %v2482, 1
      %vm2513 = vcmp.eq.s32.totalorder %v2483, 1
      %vm2514 = vcmp.eq.s32.totalorder %v2484, 1
      %vm2515 = vcmp.eq.s32.totalorder %v2485, 1
      %vm2516 = vcmp.eq.s32.totalorder %v2486, 1
      %vm2517 = vcmp.eq.s32.totalorder %v2487, 1
      %vm2518 = vcmp.eq.s32.totalorder %v2488, 1
      %vm2519 = vcmp.eq.s32.totalorder %v2489, 1
      %vm2520 = vcmp.eq.s32.totalorder %v2490, 1
      %vm2521 = vcmp.eq.s32.totalorder %v2491, 1
      %vm2522 = vcmp.eq.s32.totalorder %v2492, 1
      %vm2523 = vcmp.eq.s32.totalorder %v2493, 1
      %vm2524 = vcmp.eq.s32.totalorder %v2494, 1
      %vm2525 = vcmp.eq.s32.totalorder %v2495, 1
      %vm2526 = vcmp.eq.s32.totalorder %v2496, 1
      %v2527 = vcombine.low %v1960, %v1968
      %v2528 = vcombine.low %v1967, %v1969
      %v2530 = vunpack.c.l.s4 1983009808
      %v2531 = vunpack.c.0.s8 %v2530
      %v2532 = vlaneseq
      %v2533 = vshrl.u32 %v2532, 7
      %v2534 = vsub.s32 %v2531, %v2533
      %v2535 = vrot.slane %v2527, %v2534
      %v2537 = vunpack.c.l.s4 1983009808
      %v2538 = vunpack.c.0.s8 %v2537
      %v2539 = vlaneseq
      %v2540 = vshrl.u32 %v2539, 7
      %v2541 = vsub.s32 %v2538, %v2540
      %v2542 = vrot.slane %v2528, %v2541
      %v2543 = vcombine.low %v2535, %v2542
      %v2544 = vcombine.high %v2535, %v2542
      %v2545 = vcombine.low %v1978, %v1986
      %v2546 = vcombine.low %v1985, %v1987
      %v2548 = vunpack.c.l.s4 1983009808
      %v2549 = vunpack.c.0.s8 %v2548
      %v2550 = vlaneseq
      %v2551 = vshrl.u32 %v2550, 7
      %v2552 = vsub.s32 %v2549, %v2551
      %v2553 = vrot.slane %v2545, %v2552
      %v2555 = vunpack.c.l.s4 1983009808
      %v2556 = vunpack.c.0.s8 %v2555
      %v2557 = vlaneseq
      %v2558 = vshrl.u32 %v2557, 7
      %v2559 = vsub.s32 %v2556, %v2558
      %v2560 = vrot.slane %v2546, %v2559
      %v2561 = vcombine.low %v2553, %v2560
      %v2562 = vcombine.high %v2553, %v2560
      %v2564 = vunpack.c.l.s4 1983009808
      %v2565 = vunpack.c.0.s8 %v2564
      %v2566 = vlaneseq
      %v2567 = vshrl.u32 %v2566, 7
      %v2568 = vsub.s32 %v2565, %v2567
      %v2569 = vrot.slane %v1996, %v2568
      %v2570 = vcombine.high %v2569, %v2569
      %v2571 = vcombine.low %v2004, %v2003
      %v2572 = vcombine.low %v2005, %v2014
      %v2574 = vunpack.c.l.s4 1983009808
      %v2575 = vunpack.c.0.s8 %v2574
      %v2576 = vlaneseq
      %v2577 = vshrl.u32 %v2576, 7
      %v2578 = vsub.s32 %v2575, %v2577
      %v2579 = vrot.slane %v2571, %v2578
      %v2581 = vunpack.c.l.s4 1983009808
      %v2582 = vunpack.c.0.s8 %v2581
      %v2583 = vlaneseq
      %v2584 = vshrl.u32 %v2583, 7
      %v2585 = vsub.s32 %v2582, %v2584
      %v2586 = vrot.slane %v2572, %v2585
      %v2587 = vcombine.low %v2579, %v2586
      %v2588 = vcombine.high %v2579, %v2586
      %v2589 = vcombine.low %v2022, %v2021
      %v2590 = vcombine.low %v2023, %v2032
      %v2592 = vunpack.c.l.s4 1983009808
      %v2593 = vunpack.c.0.s8 %v2592
      %v2594 = vlaneseq
      %v2595 = vshrl.u32 %v2594, 7
      %v2596 = vsub.s32 %v2593, %v2595
      %v2597 = vrot.slane %v2589, %v2596
      %v2599 = vunpack.c.l.s4 1983009808
      %v2600 = vunpack.c.0.s8 %v2599
      %v2601 = vlaneseq
      %v2602 = vshrl.u32 %v2601, 7
      %v2603 = vsub.s32 %v2600, %v2602
      %v2604 = vrot.slane %v2590, %v2603
      %v2605 = vcombine.low %v2597, %v2604
      %v2606 = vcombine.high %v2597, %v2604
      %v2608 = vunpack.c.l.s4 1983009808
      %v2609 = vunpack.c.0.s8 %v2608
      %v2610 = vlaneseq
      %v2611 = vshrl.u32 %v2610, 7
      %v2612 = vsub.s32 %v2609, %v2611
      %v2613 = vrot.slane %v2040, %v2612
      %v2614 = vcombine.high %v2613, %v2613
      %v2615 = vcombine.low %v2039, %v2041
      %v2616 = vcombine.low %v2050, %v2058
      %v2618 = vunpack.c.l.s4 1983009808
      %v2619 = vunpack.c.0.s8 %v2618
      %v2620 = vlaneseq
      %v2621 = vshrl.u32 %v2620, 7
      %v2622 = vsub.s32 %v2619, %v2621
      %v2623 = vrot.slane %v2615, %v2622
      %v2625 = vunpack.c.l.s4 1983009808
      %v2626 = vunpack.c.0.s8 %v2625
      %v2627 = vlaneseq
      %v2628 = vshrl.u32 %v2627, 7
      %v2629 = vsub.s32 %v2626, %v2628
      %v2630 = vrot.slane %v2616, %v2629
      %v2631 = vcombine.low %v2623, %v2630
      %v2632 = vcombine.high %v2623, %v2630
      %v2633 = vcombine.low %v2057, %v2059
      %v2634 = vcombine.low %v2068, %v2076
      %v2636 = vunpack.c.l.s4 1983009808
      %v2637 = vunpack.c.0.s8 %v2636
      %v2638 = vlaneseq
      %v2639 = vshrl.u32 %v2638, 7
      %v2640 = vsub.s32 %v2637, %v2639
      %v2641 = vrot.slane %v2633, %v2640
      %v2643 = vunpack.c.l.s4 1983009808
      %v2644 = vunpack.c.0.s8 %v2643
      %v2645 = vlaneseq
      %v2646 = vshrl.u32 %v2645, 7
      %v2647 = vsub.s32 %v2644, %v2646
      %v2648 = vrot.slane %v2634, %v2647
      %v2649 = vcombine.low %v2641, %v2648
      %v2650 = vcombine.high %v2641, %v2648
      %v2652 = vunpack.c.l.s4 1983009808
      %v2653 = vunpack.c.0.s8 %v2652
      %v2654 = vlaneseq
      %v2655 = vshrl.u32 %v2654, 7
      %v2656 = vsub.s32 %v2653, %v2655
      %v2657 = vrot.slane %v2075, %v2656
      %v2658 = vcombine.high %v2657, %v2657
      %v2659 = vcombine.low %v2077, %v2086
      %v2660 = vcombine.low %v2094, %v2093
      %v2662 = vunpack.c.l.s4 1983009808
      %v2663 = vunpack.c.0.s8 %v2662
      %v2664 = vlaneseq
      %v2665 = vshrl.u32 %v2664, 7
      %v2666 = vsub.s32 %v2663, %v2665
      %v2667 = vrot.slane %v2659, %v2666
      %v2669 = vunpack.c.l.s4 1983009808
      %v2670 = vunpack.c.0.s8 %v2669
      %v2671 = vlaneseq
      %v2672 = vshrl.u32 %v2671, 7
      %v2673 = vsub.s32 %v2670, %v2672
      %v2674 = vrot.slane %v2660, %v2673
      %v2675 = vcombine.low %v2667, %v2674
      %v2676 = vcombine.high %v2667, %v2674
      %v2677 = vcombine.low %v2095, %v2104
      %v2678 = vcombine.low %v2112, %v2111
      %v2680 = vunpack.c.l.s4 1983009808
      %v2681 = vunpack.c.0.s8 %v2680
      %v2682 = vlaneseq
      %v2683 = vshrl.u32 %v2682, 7
      %v2684 = vsub.s32 %v2681, %v2683
      %v2685 = vrot.slane %v2677, %v2684
      %v2687 = vunpack.c.l.s4 1983009808
      %v2688 = vunpack.c.0.s8 %v2687
      %v2689 = vlaneseq
      %v2690 = vshrl.u32 %v2689, 7
      %v2691 = vsub.s32 %v2688, %v2690
      %v2692 = vrot.slane %v2678, %v2691
      %v2693 = vcombine.low %v2685, %v2692
      %v2694 = vcombine.high %v2685, %v2692
      %v2696 = vunpack.c.l.s4 1983009808
      %v2697 = vunpack.c.0.s8 %v2696
      %v2698 = vlaneseq
      %v2699 = vshrl.u32 %v2698, 7
      %v2700 = vsub.s32 %v2697, %v2699
      %v2701 = vrot.slane %v2113, %v2700
      %v2702 = vcombine.high %v2701, %v2701
      %v2703 = vcombine.low %v2122, %v2130
      %v2704 = vcombine.low %v2129, %v2131
      %v2706 = vunpack.c.l.s4 1983009808
      %v2707 = vunpack.c.0.s8 %v2706
      %v2708 = vlaneseq
      %v2709 = vshrl.u32 %v2708, 7
      %v2710 = vsub.s32 %v2707, %v2709
      %v2711 = vrot.slane %v2703, %v2710
      %v2713 = vunpack.c.l.s4 1983009808
      %v2714 = vunpack.c.0.s8 %v2713
      %v2715 = vlaneseq
      %v2716 = vshrl.u32 %v2715, 7
      %v2717 = vsub.s32 %v2714, %v2716
      %v2718 = vrot.slane %v2704, %v2717
      %v2719 = vcombine.low %v2711, %v2718
      %v2720 = vcombine.high %v2711, %v2718
      %v2721 = vcombine.low %v2140, %v2148
      %v2722 = vcombine.low %v2147, %v2149
      %v2724 = vunpack.c.l.s4 1983009808
      %v2725 = vunpack.c.0.s8 %v2724
      %v2726 = vlaneseq
      %v2727 = vshrl.u32 %v2726, 7
      %v2728 = vsub.s32 %v2725, %v2727
      %v2729 = vrot.slane %v2721, %v2728
      %v2731 = vunpack.c.l.s4 1983009808
      %v2732 = vunpack.c.0.s8 %v2731
      %v2733 = vlaneseq
      %v2734 = vshrl.u32 %v2733, 7
      %v2735 = vsub.s32 %v2732, %v2734
      %v2736 = vrot.slane %v2722, %v2735
      %v2737 = vcombine.low %v2729, %v2736
      %v2738 = vcombine.high %v2729, %v2736
      %v2740 = vunpack.c.l.s4 1983009808
      %v2741 = vunpack.c.0.s8 %v2740
      %v2742 = vlaneseq
      %v2743 = vshrl.u32 %v2742, 7
      %v2744 = vsub.s32 %v2741, %v2743
      %v2745 = vrot.slane %v2158, %v2744
      %v2746 = vcombine.high %v2745, %v2745
      %v2747 = vcombine.low %v2166, %v2165
      %v2748 = vcombine.low %v2167, %v2176
      %v2750 = vunpack.c.l.s4 1983009808
      %v2751 = vunpack.c.0.s8 %v2750
      %v2752 = vlaneseq
      %v2753 = vshrl.u32 %v2752, 7
      %v2754 = vsub.s32 %v2751, %v2753
      %v2755 = vrot.slane %v2747, %v2754
      %v2757 = vunpack.c.l.s4 1983009808
      %v2758 = vunpack.c.0.s8 %v2757
      %v2759 = vlaneseq
      %v2760 = vshrl.u32 %v2759, 7
      %v2761 = vsub.s32 %v2758, %v2760
      %v2762 = vrot.slane %v2748, %v2761
      %v2763 = vcombine.low %v2755, %v2762
      %v2764 = vcombine.high %v2755, %v2762
      %v2765 = vcombine.low %v2184, %v2183
      %v2766 = vcombine.low %v2185, %v2194
      %v2768 = vunpack.c.l.s4 1983009808
      %v2769 = vunpack.c.0.s8 %v2768
      %v2770 = vlaneseq
      %v2771 = vshrl.u32 %v2770, 7
      %v2772 = vsub.s32 %v2769, %v2771
      %v2773 = vrot.slane %v2765, %v2772
      %v2775 = vunpack.c.l.s4 1983009808
      %v2776 = vunpack.c.0.s8 %v2775
      %v2777 = vlaneseq
      %v2778 = vshrl.u32 %v2777, 7
      %v2779 = vsub.s32 %v2776, %v2778
      %v2780 = vrot.slane %v2766, %v2779
      %v2781 = vcombine.low %v2773, %v2780
      %v2782 = vcombine.high %v2773, %v2780
      %v2784 = vunpack.c.l.s4 1983009808
      %v2785 = vunpack.c.0.s8 %v2784
      %v2786 = vlaneseq
      %v2787 = vshrl.u32 %v2786, 7
      %v2788 = vsub.s32 %v2785, %v2787
      %v2789 = vrot.slane %v2202, %v2788
      %v2790 = vcombine.high %v2789, %v2789
      %v2791 = vcombine.low %v2201, %v2203
      %v2792 = vcombine.low %v2212, %v2220
      %v2794 = vunpack.c.l.s4 1983009808
      %v2795 = vunpack.c.0.s8 %v2794
      %v2796 = vlaneseq
      %v2797 = vshrl.u32 %v2796, 7
      %v2798 = vsub.s32 %v2795, %v2797
      %v2799 = vrot.slane %v2791, %v2798
      %v2801 = vunpack.c.l.s4 1983009808
      %v2802 = vunpack.c.0.s8 %v2801
      %v2803 = vlaneseq
      %v2804 = vshrl.u32 %v2803, 7
      %v2805 = vsub.s32 %v2802, %v2804
      %v2806 = vrot.slane %v2792, %v2805
      %v2807 = vcombine.low %v2799, %v2806
      %v2808 = vcombine.high %v2799, %v2806
      %v2809 = vcombine.low %v2219, %v2221
      %v2810 = vcombine.low %v2230, %v2238
      %v2812 = vunpack.c.l.s4 1983009808
      %v2813 = vunpack.c.0.s8 %v2812
      %v2814 = vlaneseq
      %v2815 = vshrl.u32 %v2814, 7
      %v2816 = vsub.s32 %v2813, %v2815
      %v2817 = vrot.slane %v2809, %v2816
      %v2819 = vunpack.c.l.s4 1983009808
      %v2820 = vunpack.c.0.s8 %v2819
      %v2821 = vlaneseq
      %v2822 = vshrl.u32 %v2821, 7
      %v2823 = vsub.s32 %v2820, %v2822
      %v2824 = vrot.slane %v2810, %v2823
      %v2825 = vcombine.low %v2817, %v2824
      %v2826 = vcombine.high %v2817, %v2824
      %v2828 = vunpack.c.l.s4 1983009808
      %v2829 = vunpack.c.0.s8 %v2828
      %v2830 = vlaneseq
      %v2831 = vshrl.u32 %v2830, 7
      %v2832 = vsub.s32 %v2829, %v2831
      %v2833 = vrot.slane %v2237, %v2832
      %v2834 = vcombine.high %v2833, %v2833
      %v2835 = vcombine.low %v2239, %v2248
      %v2836 = vcombine.low %v2256, %v2255
      %v2838 = vunpack.c.l.s4 1983009808
      %v2839 = vunpack.c.0.s8 %v2838
      %v2840 = vlaneseq
      %v2841 = vshrl.u32 %v2840, 7
      %v2842 = vsub.s32 %v2839, %v2841
      %v2843 = vrot.slane %v2835, %v2842
      %v2845 = vunpack.c.l.s4 1983009808
      %v2846 = vunpack.c.0.s8 %v2845
      %v2847 = vlaneseq
      %v2848 = vshrl.u32 %v2847, 7
      %v2849 = vsub.s32 %v2846, %v2848
      %v2850 = vrot.slane %v2836, %v2849
      %v2851 = vcombine.low %v2843, %v2850
      %v2852 = vcombine.high %v2843, %v2850
      %v2853 = vcombine.low %v2257, %v2266
      %v2854 = vcombine.low %v2274, %v2273
      %v2856 = vunpack.c.l.s4 1983009808
      %v2857 = vunpack.c.0.s8 %v2856
      %v2858 = vlaneseq
      %v2859 = vshrl.u32 %v2858, 7
      %v2860 = vsub.s32 %v2857, %v2859
      %v2861 = vrot.slane %v2853, %v2860
      %v2863 = vunpack.c.l.s4 1983009808
      %v2864 = vunpack.c.0.s8 %v2863
      %v2865 = vlaneseq
      %v2866 = vshrl.u32 %v2865, 7
      %v2867 = vsub.s32 %v2864, %v2866
      %v2868 = vrot.slane %v2854, %v2867
      %v2869 = vcombine.low %v2861, %v2868
      %v2870 = vcombine.high %v2861, %v2868
      %v2872 = vunpack.c.l.s4 1983009808
      %v2873 = vunpack.c.0.s8 %v2872
      %v2874 = vlaneseq
      %v2875 = vshrl.u32 %v2874, 7
      %v2876 = vsub.s32 %v2873, %v2875
      %v2877 = vrot.slane %v2275, %v2876
      %v2878 = vcombine.high %v2877, %v2877
      %v2879 = vcombine.low %v2284, %v2292
      %v2880 = vcombine.low %v2291, %v2293
      %v2882 = vunpack.c.l.s4 1983009808
      %v2883 = vunpack.c.0.s8 %v2882
      %v2884 = vlaneseq
      %v2885 = vshrl.u32 %v2884, 7
      %v2886 = vsub.s32 %v2883, %v2885
      %v2887 = vrot.slane %v2879, %v2886
      %v2889 = vunpack.c.l.s4 1983009808
      %v2890 = vunpack.c.0.s8 %v2889
      %v2891 = vlaneseq
      %v2892 = vshrl.u32 %v2891, 7
      %v2893 = vsub.s32 %v2890, %v2892
      %v2894 = vrot.slane %v2880, %v2893
      %v2895 = vcombine.low %v2887, %v2894
      %v2896 = vcombine.high %v2887, %v2894
      %v2897 = vcombine.low %v2302, %v2310
      %v2898 = vcombine.low %v2309, %v2311
      %v2900 = vunpack.c.l.s4 1983009808
      %v2901 = vunpack.c.0.s8 %v2900
      %v2902 = vlaneseq
      %v2903 = vshrl.u32 %v2902, 7
      %v2904 = vsub.s32 %v2901, %v2903
      %v2905 = vrot.slane %v2897, %v2904
      %v2907 = vunpack.c.l.s4 1983009808
      %v2908 = vunpack.c.0.s8 %v2907
      %v2909 = vlaneseq
      %v2910 = vshrl.u32 %v2909, 7
      %v2911 = vsub.s32 %v2908, %v2910
      %v2912 = vrot.slane %v2898, %v2911
      %v2913 = vcombine.low %v2905, %v2912
      %v2914 = vcombine.high %v2905, %v2912
      %v2916 = vunpack.c.l.s4 1983009808
      %v2917 = vunpack.c.0.s8 %v2916
      %v2918 = vlaneseq
      %v2919 = vshrl.u32 %v2918, 7
      %v2920 = vsub.s32 %v2917, %v2919
      %v2921 = vrot.slane %v2320, %v2920
      %v2922 = vcombine.high %v2921, %v2921
      %v2923 = vcombine.low %v2328, %v2327
      %v2924 = vcombine.low %v2329, %v2338
      %v2926 = vunpack.c.l.s4 1983009808
      %v2927 = vunpack.c.0.s8 %v2926
      %v2928 = vlaneseq
      %v2929 = vshrl.u32 %v2928, 7
      %v2930 = vsub.s32 %v2927, %v2929
      %v2931 = vrot.slane %v2923, %v2930
      %v2933 = vunpack.c.l.s4 1983009808
      %v2934 = vunpack.c.0.s8 %v2933
      %v2935 = vlaneseq
      %v2936 = vshrl.u32 %v2935, 7
      %v2937 = vsub.s32 %v2934, %v2936
      %v2938 = vrot.slane %v2924, %v2937
      %v2939 = vcombine.low %v2931, %v2938
      %v2940 = vcombine.high %v2931, %v2938
      %v2941 = vcombine.low %v2346, %v2345
      %v2942 = vcombine.low %v2347, %v2355
      %v2944 = vunpack.c.l.s4 1983009808
      %v2945 = vunpack.c.0.s8 %v2944
      %v2946 = vlaneseq
      %v2947 = vshrl.u32 %v2946, 7
      %v2948 = vsub.s32 %v2945, %v2947
      %v2949 = vrot.slane %v2941, %v2948
      %v2951 = vunpack.c.l.s4 1983009808
      %v2952 = vunpack.c.0.s8 %v2951
      %v2953 = vlaneseq
      %v2954 = vshrl.u32 %v2953, 7
      %v2955 = vsub.s32 %v2952, %v2954
      %v2956 = vrot.slane %v2942, %v2955
      %v2957 = vcombine.low %v2949, %v2956
      %v2958 = vcombine.high %v2949, %v2956
      %v2960 = vunpack.c.l.s4 1983009808
      %v2961 = vunpack.c.0.s8 %v2960
      %v2962 = vlaneseq
      %v2963 = vshrl.u32 %v2962, 7
      %v2964 = vsub.s32 %v2961, %v2963
      %v2965 = vrot.slane %v2356, %v2964
      %v2966 = vcombine.high %v2965, %v2965
      %v3027 = vsel %vm2497, %v2543, 0.0
      %v3028 = vsel %vm2497, %v2544, 0.0
      %v3029 = vsel %vm2498, %v2561, 0.0
      %v3030 = vsel %vm2498, %v2562, 0.0
      %v3031 = vsel %vm2499, %v2569, 0.0
      %v3032 = vsel %vm2499, %v2570, 0.0
      %v3033 = vsel %vm2500, %v2587, 0.0
      %v3034 = vsel %vm2500, %v2588, 0.0
      %v3035 = vsel %vm2501, %v2605, 0.0
      %v3036 = vsel %vm2501, %v2606, 0.0
      %v3037 = vsel %vm2502, %v2613, 0.0
      %v3038 = vsel %vm2502, %v2614, 0.0
      %v3039 = vsel %vm2503, %v2631, 0.0
      %v3040 = vsel %vm2503, %v2632, 0.0
      %v3041 = vsel %vm2504, %v2649, 0.0
      %v3042 = vsel %vm2504, %v2650, 0.0
      %v3043 = vsel %vm2505, %v2657, 0.0
      %v3044 = vsel %vm2505, %v2658, 0.0
      %v3045 = vsel %vm2506, %v2675, 0.0
      %v3046 = vsel %vm2506, %v2676, 0.0
      %v3047 = vsel %vm2507, %v2693, 0.0
      %v3048 = vsel %vm2507, %v2694, 0.0
      %v3049 = vsel %vm2508, %v2701, 0.0
      %v3050 = vsel %vm2508, %v2702, 0.0
      %v3051 = vsel %vm2509, %v2719, 0.0
      %v3052 = vsel %vm2509, %v2720, 0.0
      %v3053 = vsel %vm2510, %v2737, 0.0
      %v3054 = vsel %vm2510, %v2738, 0.0
      %v3055 = vsel %vm2511, %v2745, 0.0
      %v3056 = vsel %vm2511, %v2746, 0.0
      %v3057 = vsel %vm2512, %v2763, 0.0
      %v3058 = vsel %vm2512, %v2764, 0.0
      %v3059 = vsel %vm2513, %v2781, 0.0
      %v3060 = vsel %vm2513, %v2782, 0.0
      %v3061 = vsel %vm2514, %v2789, 0.0
      %v3062 = vsel %vm2514, %v2790, 0.0
      %v3063 = vsel %vm2515, %v2807, 0.0
      %v3064 = vsel %vm2515, %v2808, 0.0
      %v3065 = vsel %vm2516, %v2825, 0.0
      %v3066 = vsel %vm2516, %v2826, 0.0
      %v3067 = vsel %vm2517, %v2833, 0.0
      %v3068 = vsel %vm2517, %v2834, 0.0
      %v3069 = vsel %vm2518, %v2851, 0.0
      %v3070 = vsel %vm2518, %v2852, 0.0
      %v3071 = vsel %vm2519, %v2869, 0.0
      %v3072 = vsel %vm2519, %v2870, 0.0
      %v3073 = vsel %vm2520, %v2877, 0.0
      %v3074 = vsel %vm2520, %v2878, 0.0
      %v3075 = vsel %vm2521, %v2895, 0.0
      %v3076 = vsel %vm2521, %v2896, 0.0
      %v3077 = vsel %vm2522, %v2913, 0.0
      %v3078 = vsel %vm2522, %v2914, 0.0
      %v3079 = vsel %vm2523, %v2921, 0.0
      %v3080 = vsel %vm2523, %v2922, 0.0
      %v3081 = vsel %vm2524, %v2939, 0.0
      %v3082 = vsel %vm2524, %v2940, 0.0
      %v3083 = vsel %vm2525, %v2957, 0.0
      %v3084 = vsel %vm2525, %v2958, 0.0
      %v3085 = vsel %vm2526, %v2965, 0.0
      %v3086 = vsel %vm2526, %v2966, 0.0
      %3087 = vst [vmem:[#allocation2] sm:$0xff] %v3027
      %3088 = vst [vmem:[#allocation2 + $0x8] sm:$0xff] %v3028
      %3089 = vst [vmem:[#allocation2 + $0x10] sm:$0xff] %v3029
      %3090 = vst [vmem:[#allocation2 + $0x18] sm:$0xff] %v3030
      %3091 = vst [vmem:[#allocation2 + $0x20] sm:$0x3] %v3031
      %3092 = vst [vmem:[#allocation2 + $0x28] sm:$0x3] %v3032
      %3093 = vst [vmem:[#allocation2 + $0x30] sm:$0xff] %v3033
      %3094 = vst [vmem:[#allocation2 + $0x38] sm:$0xff] %v3034
      %3095 = vst [vmem:[#allocation2 + $0x40] sm:$0xff] %v3035
      %3096 = vst [vmem:[#allocation2 + $0x48] sm:$0xff] %v3036
      %3097 = vst [vmem:[#allocation2 + $0x50] sm:$0x3] %v3037
      %3098 = vst [vmem:[#allocation2 + $0x58] sm:$0x3] %v3038
      %3099 = vst [vmem:[#allocation2 + $0x60] sm:$0xff] %v3039
      %3100 = vst [vmem:[#allocation2 + $0x68] sm:$0xff] %v3040
      %3101 = vst [vmem:[#allocation2 + $0x70] sm:$0xff] %v3041
      %3102 = vst [vmem:[#allocation2 + $0x78] sm:$0xff] %v3042
      %3103 = vst [vmem:[#allocation2 + $0x80] sm:$0x3] %v3043
      %3104 = vst [vmem:[#allocation2 + $0x88] sm:$0x3] %v3044
      %3105 = vst [vmem:[#allocation2 + $0x90] sm:$0xff] %v3045
      %3106 = vst [vmem:[#allocation2 + $0x98] sm:$0xff] %v3046
      %3107 = vst [vmem:[#allocation2 + $0xa0] sm:$0xff] %v3047
      %3108 = vst [vmem:[#allocation2 + $0xa8] sm:$0xff] %v3048
      %3109 = vst [vmem:[#allocation2 + $0xb0] sm:$0x3] %v3049
      %3110 = vst [vmem:[#allocation2 + $0xb8] sm:$0x3] %v3050
      %3111 = vst [vmem:[#allocation2 + $0xc0] sm:$0xff] %v3051
      %3112 = vst [vmem:[#allocation2 + $0xc8] sm:$0xff] %v3052
      %3113 = vst [vmem:[#allocation2 + $0xd0] sm:$0xff] %v3053
      %3114 = vst [vmem:[#allocation2 + $0xd8] sm:$0xff] %v3054
      %3115 = vst [vmem:[#allocation2 + $0xe0] sm:$0x3] %v3055
      %3116 = vst [vmem:[#allocation2 + $0xe8] sm:$0x3] %v3056
      %3117 = vst [vmem:[#allocation2 + $0xf0] sm:$0xff] %v3057
      %3118 = vst [vmem:[#allocation2 + $0xf8] sm:$0xff] %v3058
      %3119 = vst [vmem:[#allocation2 + $0x100] sm:$0xff] %v3059
      %3120 = vst [vmem:[#allocation2 + $0x108] sm:$0xff] %v3060
      %3121 = vst [vmem:[#allocation2 + $0x110] sm:$0x3] %v3061
      %3122 = vst [vmem:[#allocation2 + $0x118] sm:$0x3] %v3062
      %3123 = vst [vmem:[#allocation2 + $0x120] sm:$0xff] %v3063
      %3124 = vst [vmem:[#allocation2 + $0x128] sm:$0xff] %v3064
      %3125 = vst [vmem:[#allocation2 + $0x130] sm:$0xff] %v3065
      %3126 = vst [vmem:[#allocation2 + $0x138] sm:$0xff] %v3066
      %3127 = vst [vmem:[#allocation2 + $0x140] sm:$0x3] %v3067
      %3128 = vst [vmem:[#allocation2 + $0x148] sm:$0x3] %v3068
      %3129 = vst [vmem:[#allocation2 + $0x150] sm:$0xff] %v3069
      %3130 = vst [vmem:[#allocation2 + $0x158] sm:$0xff] %v3070
      %3131 = vst [vmem:[#allocation2 + $0x160] sm:$0xff] %v3071
      %3132 = vst [vmem:[#allocation2 + $0x168] sm:$0xff] %v3072
      %3133 = vst [vmem:[#allocation2 + $0x170] sm:$0x3] %v3073
      %3134 = vst [vmem:[#allocation2 + $0x178] sm:$0x3] %v3074
      %3135 = vst [vmem:[#allocation2 + $0x180] sm:$0xff] %v3075
      %3136 = vst [vmem:[#allocation2 + $0x188] sm:$0xff] %v3076
      %3137 = vst [vmem:[#allocation2 + $0x190] sm:$0xff] %v3077
      %3138 = vst [vmem:[#allocation2 + $0x198] sm:$0xff] %v3078
      %3139 = vst [vmem:[#allocation2 + $0x1a0] sm:$0x3] %v3079
      %3140 = vst [vmem:[#allocation2 + $0x1a8] sm:$0x3] %v3080
      %3141 = vst [vmem:[#allocation2 + $0x1b0] sm:$0xff] %v3081
      %3142 = vst [vmem:[#allocation2 + $0x1b8] sm:$0xff] %v3082
      %3143 = vst [vmem:[#allocation2 + $0x1c0] sm:$0xff] %v3083
      %3144 = vst [vmem:[#allocation2 + $0x1c8] sm:$0xff] %v3084
      %3145 = vst [vmem:[#allocation2 + $0x1d0] sm:$0x3] %v3085
      %3146 = vst [vmem:[#allocation2 + $0x1d8] sm:$0x3] %v3086
      %v3147 = vld [vmem:[#allocation2] sm:$0xff]
      %v3148 = vld [vmem:[#allocation2 + $0x8] sm:$0xff]
      %v3149 = vld [vmem:[#allocation2 + $0x10] sm:$0xff]
      %v3150 = vld [vmem:[#allocation2 + $0x18] sm:$0xff]
      %v3151 = vld [vmem:[#allocation2 + $0x30] sm:$0xff]
      %v3152 = vld [vmem:[#allocation2 + $0x38] sm:$0xff]
      %v3153 = vld [vmem:[#allocation2 + $0x40] sm:$0xff]
      %v3154 = vld [vmem:[#allocation2 + $0x48] sm:$0xff]
      %v3155 = vld [vmem:[#allocation2 + $0x60] sm:$0xff]
      %v3156 = vld [vmem:[#allocation2 + $0x68] sm:$0xff]
      %v3157 = vld [vmem:[#allocation2 + $0x70] sm:$0xff]
      %v3158 = vld [vmem:[#allocation2 + $0x78] sm:$0xff]
      %v3159 = vld [vmem:[#allocation2 + $0x90] sm:$0xff]
      %v3160 = vld [vmem:[#allocation2 + $0x98] sm:$0xff]
      %v3161 = vld [vmem:[#allocation2 + $0xa0] sm:$0xff]
      %v3162 = vld [vmem:[#allocation2 + $0xa8] sm:$0xff]
      %v3163 = vld [vmem:[#allocation2 + $0xc0] sm:$0xff]
      %v3164 = vld [vmem:[#allocation2 + $0xc8] sm:$0xff]
      %v3165 = vld [vmem:[#allocation2 + $0xd0] sm:$0xff]
      %v3166 = vld [vmem:[#allocation2 + $0xd8] sm:$0xff]
      %v3167 = vld [vmem:[#allocation2 + $0xf0] sm:$0xff]
      %v3168 = vld [vmem:[#allocation2 + $0xf8] sm:$0xff]
      %v3169 = vld [vmem:[#allocation2 + $0x100] sm:$0xff]
      %v3170 = vld [vmem:[#allocation2 + $0x108] sm:$0xff]
      %v3171 = vld [vmem:[#allocation2 + $0x120] sm:$0xff]
      %v3172 = vld [vmem:[#allocation2 + $0x128] sm:$0xff]
      %v3173 = vld [vmem:[#allocation2 + $0x130] sm:$0xff]
      %v3174 = vld [vmem:[#allocation2 + $0x138] sm:$0xff]
      %v3175 = vld [vmem:[#allocation2 + $0x150] sm:$0xff]
      %v3176 = vld [vmem:[#allocation2 + $0x158] sm:$0xff]
      %v3177 = vld [vmem:[#allocation2 + $0x160] sm:$0xff]
      %v3178 = vld [vmem:[#allocation2 + $0x168] sm:$0xff]
      %v3179 = vld [vmem:[%s3] sm:$0x3]
      %v3181 = vlaneseq
      %v3182 = vshrl.u32 %v3181, 7
      %v3183 = vsub.s32 0, %v3182
      %v3184 = vrot.slane %v3179, %v3183
      %v3185 = vlaneseq
      %v3186 = vshrl.u32 %v3185, 7
      %v3187 = vsub.s32 1, %v3186
      %v3188 = vrot.slane %v3179, %v3187
      %v3191 = vmul.f32 %v3147, %v3184
      %v3192 = vmul.f32 %v3148, %v3188
      %v3193 = vmul.f32 %v3149, %v3184
      %v3194 = vmul.f32 %v3150, %v3188
      %v3195 = vmul.f32 %v3151, %v3184
      %v3196 = vmul.f32 %v3152, %v3188
      %v3197 = vmul.f32 %v3153, %v3184
      %v3198 = vmul.f32 %v3154, %v3188
      %v3199 = vmul.f32 %v3155, %v3184
      %v3200 = vmul.f32 %v3156, %v3188
      %v3201 = vmul.f32 %v3157, %v3184
      %v3202 = vmul.f32 %v3158, %v3188
      %v3203 = vmul.f32 %v3159, %v3184
      %v3204 = vmul.f32 %v3160, %v3188
      %v3205 = vmul.f32 %v3161, %v3184
      %v3206 = vmul.f32 %v3162, %v3188
      %v3207 = vmul.f32 %v3163, %v3184
      %v3208 = vmul.f32 %v3164, %v3188
      %v3209 = vmul.f32 %v3165, %v3184
      %v3210 = vmul.f32 %v3166, %v3188
      %v3211 = vmul.f32 %v3167, %v3184
      %v3212 = vmul.f32 %v3168, %v3188
      %v3213 = vmul.f32 %v3169, %v3184
      %v3214 = vmul.f32 %v3170, %v3188
      %v3215 = vmul.f32 %v3171, %v3184
      %v3216 = vmul.f32 %v3172, %v3188
      %v3217 = vmul.f32 %v3173, %v3184
      %v3218 = vmul.f32 %v3174, %v3188
      %v3219 = vmul.f32 %v3175, %v3184
      %v3220 = vmul.f32 %v3176, %v3188
      %v3221 = vmul.f32 %v3177, %v3184
      %v3222 = vmul.f32 %v3178, %v3188
      %v3223 = vadd.f32 %v3191, 0.0
      %v3224 = vadd.f32 %v3192, 0.0
      %v3225 = vadd.f32 %v3193, 0.0
      %v3226 = vadd.f32 %v3194, 0.0
      %v3227 = vadd.f32 %v3195, 0.0
      %v3228 = vadd.f32 %v3196, 0.0
      %v3229 = vadd.f32 %v3197, 0.0
      %v3230 = vadd.f32 %v3198, 0.0
      %v3231 = vadd.f32 %v3199, 0.0
      %v3232 = vadd.f32 %v3200, 0.0
      %v3233 = vadd.f32 %v3201, 0.0
      %v3234 = vadd.f32 %v3202, 0.0
      %v3235 = vadd.f32 %v3203, 0.0
      %v3236 = vadd.f32 %v3204, 0.0
      %v3237 = vadd.f32 %v3205, 0.0
      %v3238 = vadd.f32 %v3206, 0.0
      %v3239 = vadd.f32 %v3207, 0.0
      %v3240 = vadd.f32 %v3208, 0.0
      %v3241 = vadd.f32 %v3209, 0.0
      %v3242 = vadd.f32 %v3210, 0.0
      %v3243 = vadd.f32 %v3211, 0.0
      %v3244 = vadd.f32 %v3212, 0.0
      %v3245 = vadd.f32 %v3213, 0.0
      %v3246 = vadd.f32 %v3214, 0.0
      %v3247 = vadd.f32 %v3215, 0.0
      %v3248 = vadd.f32 %v3216, 0.0
      %v3249 = vadd.f32 %v3217, 0.0
      %v3250 = vadd.f32 %v3218, 0.0
      %v3251 = vadd.f32 %v3219, 0.0
      %v3252 = vadd.f32 %v3220, 0.0
      %v3253 = vadd.f32 %v3221, 0.0
      %v3254 = vadd.f32 %v3222, 0.0
      %v3255 = vld [vmem:[#allocation2] sm:$0xfe]
      %v3256 = vld [vmem:[#allocation2 + $0x8] sm:$0xfe]
      %v3257 = vld [vmem:[#allocation2 + $0x20] sm:$0x1]
      %v3258 = vld [vmem:[#allocation2 + $0x28] sm:$0x1]
      %v3259 = vld [vmem:[#allocation2 + $0x30] sm:$0xfe]
      %v3260 = vld [vmem:[#allocation2 + $0x38] sm:$0xfe]
      %v3261 = vld [vmem:[#allocation2 + $0x50] sm:$0x1]
      %v3262 = vld [vmem:[#allocation2 + $0x58] sm:$0x1]
      %v3263 = vld [vmem:[#allocation2 + $0x60] sm:$0xfe]
      %v3264 = vld [vmem:[#allocation2 + $0x68] sm:$0xfe]
      %v3265 = vld [vmem:[#allocation2 + $0x80] sm:$0x1]
      %v3266 = vld [vmem:[#allocation2 + $0x88] sm:$0x1]
      %v3267 = vld [vmem:[#allocation2 + $0x90] sm:$0xfe]
      %v3268 = vld [vmem:[#allocation2 + $0x98] sm:$0xfe]
      %v3269 = vld [vmem:[#allocation2 + $0xb0] sm:$0x1]
      %v3270 = vld [vmem:[#allocation2 + $0xb8] sm:$0x1]
      %v3271 = vld [vmem:[#allocation2 + $0xc0] sm:$0xfe]
      %v3272 = vld [vmem:[#allocation2 + $0xc8] sm:$0xfe]
      %v3273 = vld [vmem:[#allocation2 + $0xe0] sm:$0x1]
      %v3274 = vld [vmem:[#allocation2 + $0xe8] sm:$0x1]
      %v3275 = vld [vmem:[#allocation2 + $0xf0] sm:$0xfe]
      %v3276 = vld [vmem:[#allocation2 + $0xf8] sm:$0xfe]
      %v3277 = vld [vmem:[#allocation2 + $0x110] sm:$0x1]
      %v3278 = vld [vmem:[#allocation2 + $0x118] sm:$0x1]
      %v3279 = vld [vmem:[#allocation2 + $0x120] sm:$0xfe]
      %v3280 = vld [vmem:[#allocation2 + $0x128] sm:$0xfe]
      %v3281 = vld [vmem:[#allocation2 + $0x140] sm:$0x1]
      %v3282 = vld [vmem:[#allocation2 + $0x148] sm:$0x1]
      %v3283 = vld [vmem:[#allocation2 + $0x150] sm:$0xfe]
      %v3284 = vld [vmem:[#allocation2 + $0x158] sm:$0xfe]
      %v3285 = vld [vmem:[#allocation2 + $0x170] sm:$0x1]
      %v3286 = vld [vmem:[#allocation2 + $0x178] sm:$0x1]
      %s3287 = scalar_lea.vmem %s3, 2
      %v3288 = vld [vmem:[%s3287] sm:$0x3]
      %v3290 = vlaneseq
      %v3291 = vshrl.u32 %v3290, 7
      %v3292 = vsub.s32 0, %v3291
      %v3293 = vrot.slane %v3288, %v3292
      %v3294 = vlaneseq
      %v3295 = vshrl.u32 %v3294, 7
      %v3296 = vsub.s32 1, %v3295
      %v3297 = vrot.slane %v3288, %v3296
      %v3300 = vmul.f32 %v3255, %v3293
      %v3301 = vmul.f32 %v3256, %v3297
      %v3302 = vmul.f32 %v3149, %v3293
      %v3303 = vmul.f32 %v3150, %v3297
      %v3304 = vmul.f32 %v3257, %v3293
      %v3305 = vmul.f32 %v3258, %v3297
      %v3306 = vmul.f32 %v3259, %v3293
      %v3307 = vmul.f32 %v3260, %v3297
      %v3308 = vmul.f32 %v3153, %v3293
      %v3309 = vmul.f32 %v3154, %v3297
      %v3310 = vmul.f32 %v3261, %v3293
      %v3311 = vmul.f32 %v3262, %v3297
      %v3312 = vmul.f32 %v3263, %v3293
      %v3313 = vmul.f32 %v3264, %v3297
      %v3314 = vmul.f32 %v3157, %v3293
      %v3315 = vmul.f32 %v3158, %v3297
      %v3316 = vmul.f32 %v3265, %v3293
      %v3317 = vmul.f32 %v3266, %v3297
      %v3318 = vmul.f32 %v3267, %v3293
      %v3319 = vmul.f32 %v3268, %v3297
      %v3320 = vmul.f32 %v3161, %v3293
      %v3321 = vmul.f32 %v3162, %v3297
      %v3322 = vmul.f32 %v3269, %v3293
      %v3323 = vmul.f32 %v3270, %v3297
      %v3324 = vmul.f32 %v3271, %v3293
      %v3325 = vmul.f32 %v3272, %v3297
      %v3326 = vmul.f32 %v3165, %v3293
      %v3327 = vmul.f32 %v3166, %v3297
      %v3328 = vmul.f32 %v3273, %v3293
      %v3329 = vmul.f32 %v3274, %v3297
      %v3330 = vmul.f32 %v3275, %v3293
      %v3331 = vmul.f32 %v3276, %v3297
      %v3332 = vmul.f32 %v3169, %v3293
      %v3333 = vmul.f32 %v3170, %v3297
      %v3334 = vmul.f32 %v3277, %v3293
      %v3335 = vmul.f32 %v3278, %v3297
      %v3336 = vmul.f32 %v3279, %v3293
      %v3337 = vmul.f32 %v3280, %v3297
      %v3338 = vmul.f32 %v3173, %v3293
      %v3339 = vmul.f32 %v3174, %v3297
      %v3340 = vmul.f32 %v3281, %v3293
      %v3341 = vmul.f32 %v3282, %v3297
      %v3342 = vmul.f32 %v3283, %v3293
      %v3343 = vmul.f32 %v3284, %v3297
      %v3344 = vmul.f32 %v3177, %v3293
      %v3345 = vmul.f32 %v3178, %v3297
      %v3346 = vmul.f32 %v3285, %v3293
      %v3347 = vmul.f32 %v3286, %v3297
      %vm3396 = vcmask 1046528
      %v3397 = vrot.slane %v3300, 1
      %v3398 = vrot.slane %v3302, 1
      %v3399 = vsel %vm3396, %v3397, %v3398
      %v3400 = vrot.slane %v3301, 1
      %v3401 = vrot.slane %v3303, 1
      %v3402 = vsel %vm3396, %v3400, %v3401
      %v3403 = vrot.slane %v3304, 1
      %v3404 = vsel %vm3396, %v3398, %v3403
      %v3405 = vrot.slane %v3305, 1
      %v3406 = vsel %vm3396, %v3401, %v3405
      %v3407 = vrot.slane %v3306, 1
      %v3408 = vrot.slane %v3308, 1
      %v3409 = vsel %vm3396, %v3407, %v3408
      %v3410 = vrot.slane %v3307, 1
      %v3411 = vrot.slane %v3309, 1
      %v3412 = vsel %vm3396, %v3410, %v3411
      %v3413 = vrot.slane %v3310, 1
      %v3414 = vsel %vm3396, %v3408, %v3413
      %v3415 = vrot.slane %v3311, 1
      %v3416 = vsel %vm3396, %v3411, %v3415
      %v3417 = vrot.slane %v3312, 1
      %v3418 = vrot.slane %v3314, 1
      %v3419 = vsel %vm3396, %v3417, %v3418
      %v3420 = vrot.slane %v3313, 1
      %v3421 = vrot.slane %v3315, 1
      %v3422 = vsel %vm3396, %v3420, %v3421
      %v3423 = vrot.slane %v3316, 1
      %v3424 = vsel %vm3396, %v3418, %v3423
      %v3425 = vrot.slane %v3317, 1
      %v3426 = vsel %vm3396, %v3421, %v3425
      %v3427 = vrot.slane %v3318, 1
      %v3428 = vrot.slane %v3320, 1
      %v3429 = vsel %vm3396, %v3427, %v3428
      %v3430 = vrot.slane %v3319, 1
      %v3431 = vrot.slane %v3321, 1
      %v3432 = vsel %vm3396, %v3430, %v3431
      %v3433 = vrot.slane %v3322, 1
      %v3434 = vsel %vm3396, %v3428, %v3433
      %v3435 = vrot.slane %v3323, 1
      %v3436 = vsel %vm3396, %v3431, %v3435
      %v3437 = vrot.slane %v3324, 1
      %v3438 = vrot.slane %v3326, 1
      %v3439 = vsel %vm3396, %v3437, %v3438
      %v3440 = vrot.slane %v3325, 1
      %v3441 = vrot.slane %v3327, 1
      %v3442 = vsel %vm3396, %v3440, %v3441
      %v3443 = vrot.slane %v3328, 1
      %v3444 = vsel %vm3396, %v3438, %v3443
      %v3445 = vrot.slane %v3329, 1
      %v3446 = vsel %vm3396, %v3441, %v3445
      %v3447 = vrot.slane %v3330, 1
      %v3448 = vrot.slane %v3332, 1
      %v3449 = vsel %vm3396, %v3447, %v3448
      %v3450 = vrot.slane %v3331, 1
      %v3451 = vrot.slane %v3333, 1
      %v3452 = vsel %vm3396, %v3450, %v3451
      %v3453 = vrot.slane %v3334, 1
      %v3454 = vsel %vm3396, %v3448, %v3453
      %v3455 = vrot.slane %v3335, 1
      %v3456 = vsel %vm3396, %v3451, %v3455
      %v3457 = vrot.slane %v3336, 1
      %v3458 = vrot.slane %v3338, 1
      %v3459 = vsel %vm3396, %v3457, %v3458
      %v3460 = vrot.slane %v3337, 1
      %v3461 = vrot.slane %v3339, 1
      %v3462 = vsel %vm3396, %v3460, %v3461
      %v3463 = vrot.slane %v3340, 1
      %v3464 = vsel %vm3396, %v3458, %v3463
      %v3465 = vrot.slane %v3341, 1
      %v3466 = vsel %vm3396, %v3461, %v3465
      %v3467 = vrot.slane %v3342, 1
      %v3468 = vrot.slane %v3344, 1
      %v3469 = vsel %vm3396, %v3467, %v3468
      %v3470 = vrot.slane %v3343, 1
      %v3471 = vrot.slane %v3345, 1
      %v3472 = vsel %vm3396, %v3470, %v3471
      %v3473 = vrot.slane %v3346, 1
      %v3474 = vsel %vm3396, %v3468, %v3473
      %v3475 = vrot.slane %v3347, 1
      %v3476 = vsel %vm3396, %v3471, %v3475
      %v3509 = vadd.f32 %v3223, %v3399
      %v3510 = vadd.f32 %v3224, %v3402
      %v3511 = vadd.f32 %v3225, %v3404
      %v3512 = vadd.f32 %v3226, %v3406
      %v3513 = vadd.f32 %v3227, %v3409
      %v3514 = vadd.f32 %v3228, %v3412
      %v3515 = vadd.f32 %v3229, %v3414
      %v3516 = vadd.f32 %v3230, %v3416
      %v3517 = vadd.f32 %v3231, %v3419
      %v3518 = vadd.f32 %v3232, %v3422
      %v3519 = vadd.f32 %v3233, %v3424
      %v3520 = vadd.f32 %v3234, %v3426
      %v3521 = vadd.f32 %v3235, %v3429
      %v3522 = vadd.f32 %v3236, %v3432
      %v3523 = vadd.f32 %v3237, %v3434
      %v3524 = vadd.f32 %v3238, %v3436
      %v3525 = vadd.f32 %v3239, %v3439
      %v3526 = vadd.f32 %v3240, %v3442
      %v3527 = vadd.f32 %v3241, %v3444
      %v3528 = vadd.f32 %v3242, %v3446
      %v3529 = vadd.f32 %v3243, %v3449
      %v3530 = vadd.f32 %v3244, %v3452
      %v3531 = vadd.f32 %v3245, %v3454
      %v3532 = vadd.f32 %v3246, %v3456
      %v3533 = vadd.f32 %v3247, %v3459
      %v3534 = vadd.f32 %v3248, %v3462
      %v3535 = vadd.f32 %v3249, %v3464
      %v3536 = vadd.f32 %v3250, %v3466
      %v3537 = vadd.f32 %v3251, %v3469
      %v3538 = vadd.f32 %v3252, %v3472
      %v3539 = vadd.f32 %v3253, %v3474
      %v3540 = vadd.f32 %v3254, %v3476
      %v3541 = vld [vmem:[#allocation2] sm:$0xfc]
      %v3542 = vld [vmem:[#allocation2 + $0x8] sm:$0xfc]
      %v3543 = vld [vmem:[#allocation2 + $0x20] sm:$0x3]
      %v3544 = vld [vmem:[#allocation2 + $0x28] sm:$0x3]
      %v3545 = vld [vmem:[#allocation2 + $0x30] sm:$0xfc]
      %v3546 = vld [vmem:[#allocation2 + $0x38] sm:$0xfc]
      %v3547 = vld [vmem:[#allocation2 + $0x50] sm:$0x3]
      %v3548 = vld [vmem:[#allocation2 + $0x58] sm:$0x3]
      %v3549 = vld [vmem:[#allocation2 + $0x60] sm:$0xfc]
      %v3550 = vld [vmem:[#allocation2 + $0x68] sm:$0xfc]
      %v3551 = vld [vmem:[#allocation2 + $0x80] sm:$0x3]
      %v3552 = vld [vmem:[#allocation2 + $0x88] sm:$0x3]
      %v3553 = vld [vmem:[#allocation2 + $0x90] sm:$0xfc]
      %v3554 = vld [vmem:[#allocation2 + $0x98] sm:$0xfc]
      %v3555 = vld [vmem:[#allocation2 + $0xb0] sm:$0x3]
      %v3556 = vld [vmem:[#allocation2 + $0xb8] sm:$0x3]
      %v3557 = vld [vmem:[#allocation2 + $0xc0] sm:$0xfc]
      %v3558 = vld [vmem:[#allocation2 + $0xc8] sm:$0xfc]
      %v3559 = vld [vmem:[#allocation2 + $0xe0] sm:$0x3]
      %v3560 = vld [vmem:[#allocation2 + $0xe8] sm:$0x3]
      %v3561 = vld [vmem:[#allocation2 + $0xf0] sm:$0xfc]
      %v3562 = vld [vmem:[#allocation2 + $0xf8] sm:$0xfc]
      %v3563 = vld [vmem:[#allocation2 + $0x110] sm:$0x3]
      %v3564 = vld [vmem:[#allocation2 + $0x118] sm:$0x3]
      %v3565 = vld [vmem:[#allocation2 + $0x120] sm:$0xfc]
      %v3566 = vld [vmem:[#allocation2 + $0x128] sm:$0xfc]
      %v3567 = vld [vmem:[#allocation2 + $0x140] sm:$0x3]
      %v3568 = vld [vmem:[#allocation2 + $0x148] sm:$0x3]
      %v3569 = vld [vmem:[#allocation2 + $0x150] sm:$0xfc]
      %v3570 = vld [vmem:[#allocation2 + $0x158] sm:$0xfc]
      %v3571 = vld [vmem:[#allocation2 + $0x170] sm:$0x3]
      %v3572 = vld [vmem:[#allocation2 + $0x178] sm:$0x3]
      %s3573 = scalar_lea.vmem %s3, 4
      %v3574 = vld [vmem:[%s3573] sm:$0x3]
      %v3576 = vlaneseq
      %v3577 = vshrl.u32 %v3576, 7
      %v3578 = vsub.s32 0, %v3577
      %v3579 = vrot.slane %v3574, %v3578
      %v3580 = vlaneseq
      %v3581 = vshrl.u32 %v3580, 7
      %v3582 = vsub.s32 1, %v3581
      %v3583 = vrot.slane %v3574, %v3582
      %v3586 = vmul.f32 %v3541, %v3579
      %v3587 = vmul.f32 %v3542, %v3583
      %v3588 = vmul.f32 %v3149, %v3579
      %v3589 = vmul.f32 %v3150, %v3583
      %v3590 = vmul.f32 %v3543, %v3579
      %v3591 = vmul.f32 %v3544, %v3583
      %v3592 = vmul.f32 %v3545, %v3579
      %v3593 = vmul.f32 %v3546, %v3583
      %v3594 = vmul.f32 %v3153, %v3579
      %v3595 = vmul.f32 %v3154, %v3583
      %v3596 = vmul.f32 %v3547, %v3579
      %v3597 = vmul.f32 %v3548, %v3583
      %v3598 = vmul.f32 %v3549, %v3579
      %v3599 = vmul.f32 %v3550, %v3583
      %v3600 = vmul.f32 %v3157, %v3579
      %v3601 = vmul.f32 %v3158, %v3583
      %v3602 = vmul.f32 %v3551, %v3579
      %v3603 = vmul.f32 %v3552, %v3583
      %v3604 = vmul.f32 %v3553, %v3579
      %v3605 = vmul.f32 %v3554, %v3583
      %v3606 = vmul.f32 %v3161, %v3579
      %v3607 = vmul.f32 %v3162, %v3583
      %v3608 = vmul.f32 %v3555, %v3579
      %v3609 = vmul.f32 %v3556, %v3583
      %v3610 = vmul.f32 %v3557, %v3579
      %v3611 = vmul.f32 %v3558, %v3583
      %v3612 = vmul.f32 %v3165, %v3579
      %v3613 = vmul.f32 %v3166, %v3583
      %v3614 = vmul.f32 %v3559, %v3579
      %v3615 = vmul.f32 %v3560, %v3583
      %v3616 = vmul.f32 %v3561, %v3579
      %v3617 = vmul.f32 %v3562, %v3583
      %v3618 = vmul.f32 %v3169, %v3579
      %v3619 = vmul.f32 %v3170, %v3583
      %v3620 = vmul.f32 %v3563, %v3579
      %v3621 = vmul.f32 %v3564, %v3583
      %v3622 = vmul.f32 %v3565, %v3579
      %v3623 = vmul.f32 %v3566, %v3583
      %v3624 = vmul.f32 %v3173, %v3579
      %v3625 = vmul.f32 %v3174, %v3583
      %v3626 = vmul.f32 %v3567, %v3579
      %v3627 = vmul.f32 %v3568, %v3583
      %v3628 = vmul.f32 %v3569, %v3579
      %v3629 = vmul.f32 %v3570, %v3583
      %v3630 = vmul.f32 %v3177, %v3579
      %v3631 = vmul.f32 %v3178, %v3583
      %v3632 = vmul.f32 %v3571, %v3579
      %v3633 = vmul.f32 %v3572, %v3583
      %vm3682 = vcmask 1045504
      %v3683 = vrot.slane %v3586, 2
      %v3684 = vrot.slane %v3588, 2
      %v3685 = vsel %vm3682, %v3683, %v3684
      %v3686 = vrot.slane %v3587, 2
      %v3687 = vrot.slane %v3589, 2
      %v3688 = vsel %vm3682, %v3686, %v3687
      %v3689 = vrot.slane %v3590, 2
      %v3690 = vsel %vm3682, %v3684, %v3689
      %v3691 = vrot.slane %v3591, 2
      %v3692 = vsel %vm3682, %v3687, %v3691
      %v3693 = vrot.slane %v3592, 2
      %v3694 = vrot.slane %v3594, 2
      %v3695 = vsel %vm3682, %v3693, %v3694
      %v3696 = vrot.slane %v3593, 2
      %v3697 = vrot.slane %v3595, 2
      %v3698 = vsel %vm3682, %v3696, %v3697
      %v3699 = vrot.slane %v3596, 2
      %v3700 = vsel %vm3682, %v3694, %v3699
      %v3701 = vrot.slane %v3597, 2
      %v3702 = vsel %vm3682, %v3697, %v3701
      %v3703 = vrot.slane %v3598, 2
      %v3704 = vrot.slane %v3600, 2
      %v3705 = vsel %vm3682, %v3703, %v3704
      %v3706 = vrot.slane %v3599, 2
      %v3707 = vrot.slane %v3601, 2
      %v3708 = vsel %vm3682, %v3706, %v3707
      %v3709 = vrot.slane %v3602, 2
      %v3710 = vsel %vm3682, %v3704, %v3709
      %v3711 = vrot.slane %v3603, 2
      %v3712 = vsel %vm3682, %v3707, %v3711
      %v3713 = vrot.slane %v3604, 2
      %v3714 = vrot.slane %v3606, 2
      %v3715 = vsel %vm3682, %v3713, %v3714
      %v3716 = vrot.slane %v3605, 2
      %v3717 = vrot.slane %v3607, 2
      %v3718 = vsel %vm3682, %v3716, %v3717
      %v3719 = vrot.slane %v3608, 2
      %v3720 = vsel %vm3682, %v3714, %v3719
      %v3721 = vrot.slane %v3609, 2
      %v3722 = vsel %vm3682, %v3717, %v3721
      %v3723 = vrot.slane %v3610, 2
      %v3724 = vrot.slane %v3612, 2
      %v3725 = vsel %vm3682, %v3723, %v3724
      %v3726 = vrot.slane %v3611, 2
      %v3727 = vrot.slane %v3613, 2
      %v3728 = vsel %vm3682, %v3726, %v3727
      %v3729 = vrot.slane %v3614, 2
      %v3730 = vsel %vm3682, %v3724, %v3729
      %v3731 = vrot.slane %v3615, 2
      %v3732 = vsel %vm3682, %v3727, %v3731
      %v3733 = vrot.slane %v3616, 2
      %v3734 = vrot.slane %v3618, 2
      %v3735 = vsel %vm3682, %v3733, %v3734
      %v3736 = vrot.slane %v3617, 2
      %v3737 = vrot.slane %v3619, 2
      %v3738 = vsel %vm3682, %v3736, %v3737
      %v3739 = vrot.slane %v3620, 2
      %v3740 = vsel %vm3682, %v3734, %v3739
      %v3741 = vrot.slane %v3621, 2
      %v3742 = vsel %vm3682, %v3737, %v3741
      %v3743 = vrot.slane %v3622, 2
      %v3744 = vrot.slane %v3624, 2
      %v3745 = vsel %vm3682, %v3743, %v3744
      %v3746 = vrot.slane %v3623, 2
      %v3747 = vrot.slane %v3625, 2
      %v3748 = vsel %vm3682, %v3746, %v3747
      %v3749 = vrot.slane %v3626, 2
      %v3750 = vsel %vm3682, %v3744, %v3749
      %v3751 = vrot.slane %v3627, 2
      %v3752 = vsel %vm3682, %v3747, %v3751
      %v3753 = vrot.slane %v3628, 2
      %v3754 = vrot.slane %v3630, 2
      %v3755 = vsel %vm3682, %v3753, %v3754
      %v3756 = vrot.slane %v3629, 2
      %v3757 = vrot.slane %v3631, 2
      %v3758 = vsel %vm3682, %v3756, %v3757
      %v3759 = vrot.slane %v3632, 2
      %v3760 = vsel %vm3682, %v3754, %v3759
      %v3761 = vrot.slane %v3633, 2
      %v3762 = vsel %vm3682, %v3757, %v3761
      %v3795 = vadd.f32 %v3509, %v3685
      %v3796 = vadd.f32 %v3510, %v3688
      %v3797 = vadd.f32 %v3511, %v3690
      %v3798 = vadd.f32 %v3512, %v3692
      %v3799 = vadd.f32 %v3513, %v3695
      %v3800 = vadd.f32 %v3514, %v3698
      %v3801 = vadd.f32 %v3515, %v3700
      %v3802 = vadd.f32 %v3516, %v3702
      %v3803 = vadd.f32 %v3517, %v3705
      %v3804 = vadd.f32 %v3518, %v3708
      %v3805 = vadd.f32 %v3519, %v3710
      %v3806 = vadd.f32 %v3520, %v3712
      %v3807 = vadd.f32 %v3521, %v3715
      %v3808 = vadd.f32 %v3522, %v3718
      %v3809 = vadd.f32 %v3523, %v3720
      %v3810 = vadd.f32 %v3524, %v3722
      %v3811 = vadd.f32 %v3525, %v3725
      %v3812 = vadd.f32 %v3526, %v3728
      %v3813 = vadd.f32 %v3527, %v3730
      %v3814 = vadd.f32 %v3528, %v3732
      %v3815 = vadd.f32 %v3529, %v3735
      %v3816 = vadd.f32 %v3530, %v3738
      %v3817 = vadd.f32 %v3531, %v3740
      %v3818 = vadd.f32 %v3532, %v3742
      %v3819 = vadd.f32 %v3533, %v3745
      %v3820 = vadd.f32 %v3534, %v3748
      %v3821 = vadd.f32 %v3535, %v3750
      %v3822 = vadd.f32 %v3536, %v3752
      %v3823 = vadd.f32 %v3537, %v3755
      %v3824 = vadd.f32 %v3538, %v3758
      %v3825 = vadd.f32 %v3539, %v3760
      %v3826 = vadd.f32 %v3540, %v3762
      %s3827 = scalar_lea.vmem [#allocation2], 48
      %v3828 = vld [vmem:[%s3827] sm:$0xff]
      %v3829 = vld [vmem:[%s3827 + $0x8] sm:$0xff]
      %v3830 = vld [vmem:[%s3827 + $0x10] sm:$0xff]
      %v3831 = vld [vmem:[%s3827 + $0x18] sm:$0xff]
      %v3832 = vld [vmem:[%s3827 + $0x30] sm:$0xff]
      %v3833 = vld [vmem:[%s3827 + $0x38] sm:$0xff]
      %v3834 = vld [vmem:[%s3827 + $0x40] sm:$0xff]
      %v3835 = vld [vmem:[%s3827 + $0x48] sm:$0xff]
      %v3836 = vld [vmem:[%s3827 + $0x60] sm:$0xff]
      %v3837 = vld [vmem:[%s3827 + $0x68] sm:$0xff]
      %v3838 = vld [vmem:[%s3827 + $0x70] sm:$0xff]
      %v3839 = vld [vmem:[%s3827 + $0x78] sm:$0xff]
      %v3840 = vld [vmem:[%s3827 + $0x90] sm:$0xff]
      %v3841 = vld [vmem:[%s3827 + $0x98] sm:$0xff]
      %v3842 = vld [vmem:[%s3827 + $0xa0] sm:$0xff]
      %v3843 = vld [vmem:[%s3827 + $0xa8] sm:$0xff]
      %v3844 = vld [vmem:[%s3827 + $0xc0] sm:$0xff]
      %v3845 = vld [vmem:[%s3827 + $0xc8] sm:$0xff]
      %v3846 = vld [vmem:[%s3827 + $0xd0] sm:$0xff]
      %v3847 = vld [vmem:[%s3827 + $0xd8] sm:$0xff]
      %v3848 = vld [vmem:[%s3827 + $0xf0] sm:$0xff]
      %v3849 = vld [vmem:[%s3827 + $0xf8] sm:$0xff]
      %v3850 = vld [vmem:[%s3827 + $0x100] sm:$0xff]
      %v3851 = vld [vmem:[%s3827 + $0x108] sm:$0xff]
      %v3852 = vld [vmem:[%s3827 + $0x120] sm:$0xff]
      %v3853 = vld [vmem:[%s3827 + $0x128] sm:$0xff]
      %v3854 = vld [vmem:[%s3827 + $0x130] sm:$0xff]
      %v3855 = vld [vmem:[%s3827 + $0x138] sm:$0xff]
      %v3856 = vld [vmem:[%s3827 + $0x150] sm:$0xff]
      %v3857 = vld [vmem:[%s3827 + $0x158] sm:$0xff]
      %v3858 = vld [vmem:[%s3827 + $0x160] sm:$0xff]
      %v3859 = vld [vmem:[%s3827 + $0x168] sm:$0xff]
      %s3860 = scalar_lea.vmem %s3, 6
      %v3861 = vld [vmem:[%s3860] sm:$0x3]
      %v3863 = vlaneseq
      %v3864 = vshrl.u32 %v3863, 7
      %v3865 = vsub.s32 0, %v3864
      %v3866 = vrot.slane %v3861, %v3865
      %v3867 = vlaneseq
      %v3868 = vshrl.u32 %v3867, 7
      %v3869 = vsub.s32 1, %v3868
      %v3870 = vrot.slane %v3861, %v3869
      %v3873 = vmul.f32 %v3828, %v3866
      %v3874 = vmul.f32 %v3829, %v3870
      %v3875 = vmul.f32 %v3830, %v3866
      %v3876 = vmul.f32 %v3831, %v3870
      %v3877 = vmul.f32 %v3832, %v3866
      %v3878 = vmul.f32 %v3833, %v3870
      %v3879 = vmul.f32 %v3834, %v3866
      %v3880 = vmul.f32 %v3835, %v3870
      %v3881 = vmul.f32 %v3836, %v3866
      %v3882 = vmul.f32 %v3837, %v3870
      %v3883 = vmul.f32 %v3838, %v3866
      %v3884 = vmul.f32 %v3839, %v3870
      %v3885 = vmul.f32 %v3840, %v3866
      %v3886 = vmul.f32 %v3841, %v3870
      %v3887 = vmul.f32 %v3842, %v3866
      %v3888 = vmul.f32 %v3843, %v3870
      %v3889 = vmul.f32 %v3844, %v3866
      %v3890 = vmul.f32 %v3845, %v3870
      %v3891 = vmul.f32 %v3846, %v3866
      %v3892 = vmul.f32 %v3847, %v3870
      %v3893 = vmul.f32 %v3848, %v3866
      %v3894 = vmul.f32 %v3849, %v3870
      %v3895 = vmul.f32 %v3850, %v3866
      %v3896 = vmul.f32 %v3851, %v3870
      %v3897 = vmul.f32 %v3852, %v3866
      %v3898 = vmul.f32 %v3853, %v3870
      %v3899 = vmul.f32 %v3854, %v3866
      %v3900 = vmul.f32 %v3855, %v3870
      %v3901 = vmul.f32 %v3856, %v3866
      %v3902 = vmul.f32 %v3857, %v3870
      %v3903 = vmul.f32 %v3858, %v3866
      %v3904 = vmul.f32 %v3859, %v3870
      %v3905 = vadd.f32 %v3795, %v3873
      %v3906 = vadd.f32 %v3796, %v3874
      %v3907 = vadd.f32 %v3797, %v3875
      %v3908 = vadd.f32 %v3798, %v3876
      %v3909 = vadd.f32 %v3799, %v3877
      %v3910 = vadd.f32 %v3800, %v3878
      %v3911 = vadd.f32 %v3801, %v3879
      %v3912 = vadd.f32 %v3802, %v3880
      %v3913 = vadd.f32 %v3803, %v3881
      %v3914 = vadd.f32 %v3804, %v3882
      %v3915 = vadd.f32 %v3805, %v3883
      %v3916 = vadd.f32 %v3806, %v3884
      %v3917 = vadd.f32 %v3807, %v3885
      %v3918 = vadd.f32 %v3808, %v3886
      %v3919 = vadd.f32 %v3809, %v3887
      %v3920 = vadd.f32 %v3810, %v3888
      %v3921 = vadd.f32 %v3811, %v3889
      %v3922 = vadd.f32 %v3812, %v3890
      %v3923 = vadd.f32 %v3813, %v3891
      %v3924 = vadd.f32 %v3814, %v3892
      %v3925 = vadd.f32 %v3815, %v3893
      %v3926 = vadd.f32 %v3816, %v3894
      %v3927 = vadd.f32 %v3817, %v3895
      %v3928 = vadd.f32 %v3818, %v3896
      %v3929 = vadd.f32 %v3819, %v3897
      %v3930 = vadd.f32 %v3820, %v3898
      %v3931 = vadd.f32 %v3821, %v3899
      %v3932 = vadd.f32 %v3822, %v3900
      %v3933 = vadd.f32 %v3823, %v3901
      %v3934 = vadd.f32 %v3824, %v3902
      %v3935 = vadd.f32 %v3825, %v3903
      %v3936 = vadd.f32 %v3826, %v3904
      %v3937 = vld [vmem:[%s3827] sm:$0xfe]
      %v3938 = vld [vmem:[%s3827 + $0x8] sm:$0xfe]
      %v3939 = vld [vmem:[%s3827 + $0x20] sm:$0x1]
      %v3940 = vld [vmem:[%s3827 + $0x28] sm:$0x1]
      %v3941 = vld [vmem:[%s3827 + $0x30] sm:$0xfe]
      %v3942 = vld [vmem:[%s3827 + $0x38] sm:$0xfe]
      %v3943 = vld [vmem:[%s3827 + $0x50] sm:$0x1]
      %v3944 = vld [vmem:[%s3827 + $0x58] sm:$0x1]
      %v3945 = vld [vmem:[%s3827 + $0x60] sm:$0xfe]
      %v3946 = vld [vmem:[%s3827 + $0x68] sm:$0xfe]
      %v3947 = vld [vmem:[%s3827 + $0x80] sm:$0x1]
      %v3948 = vld [vmem:[%s3827 + $0x88] sm:$0x1]
      %v3949 = vld [vmem:[%s3827 + $0x90] sm:$0xfe]
      %v3950 = vld [vmem:[%s3827 + $0x98] sm:$0xfe]
      %v3951 = vld [vmem:[%s3827 + $0xb0] sm:$0x1]
      %v3952 = vld [vmem:[%s3827 + $0xb8] sm:$0x1]
      %v3953 = vld [vmem:[%s3827 + $0xc0] sm:$0xfe]
      %v3954 = vld [vmem:[%s3827 + $0xc8] sm:$0xfe]
      %v3955 = vld [vmem:[%s3827 + $0xe0] sm:$0x1]
      %v3956 = vld [vmem:[%s3827 + $0xe8] sm:$0x1]
      %v3957 = vld [vmem:[%s3827 + $0xf0] sm:$0xfe]
      %v3958 = vld [vmem:[%s3827 + $0xf8] sm:$0xfe]
      %v3959 = vld [vmem:[%s3827 + $0x110] sm:$0x1]
      %v3960 = vld [vmem:[%s3827 + $0x118] sm:$0x1]
      %v3961 = vld [vmem:[%s3827 + $0x120] sm:$0xfe]
      %v3962 = vld [vmem:[%s3827 + $0x128] sm:$0xfe]
      %v3963 = vld [vmem:[%s3827 + $0x140] sm:$0x1]
      %v3964 = vld [vmem:[%s3827 + $0x148] sm:$0x1]
      %v3965 = vld [vmem:[%s3827 + $0x150] sm:$0xfe]
      %v3966 = vld [vmem:[%s3827 + $0x158] sm:$0xfe]
      %v3967 = vld [vmem:[%s3827 + $0x170] sm:$0x1]
      %v3968 = vld [vmem:[%s3827 + $0x178] sm:$0x1]
      %s3969 = scalar_lea.vmem %s3, 8
      %v3970 = vld [vmem:[%s3969] sm:$0x3]
      %v3972 = vlaneseq
      %v3973 = vshrl.u32 %v3972, 7
      %v3974 = vsub.s32 0, %v3973
      %v3975 = vrot.slane %v3970, %v3974
      %v3976 = vlaneseq
      %v3977 = vshrl.u32 %v3976, 7
      %v3978 = vsub.s32 1, %v3977
      %v3979 = vrot.slane %v3970, %v3978
      %v3982 = vmul.f32 %v3937, %v3975
      %v3983 = vmul.f32 %v3938, %v3979
      %v3984 = vmul.f32 %v3830, %v3975
      %v3985 = vmul.f32 %v3831, %v3979
      %v3986 = vmul.f32 %v3939, %v3975
      %v3987 = vmul.f32 %v3940, %v3979
      %v3988 = vmul.f32 %v3941, %v3975
      %v3989 = vmul.f32 %v3942, %v3979
      %v3990 = vmul.f32 %v3834, %v3975
      %v3991 = vmul.f32 %v3835, %v3979
      %v3992 = vmul.f32 %v3943, %v3975
      %v3993 = vmul.f32 %v3944, %v3979
      %v3994 = vmul.f32 %v3945, %v3975
      %v3995 = vmul.f32 %v3946, %v3979
      %v3996 = vmul.f32 %v3838, %v3975
      %v3997 = vmul.f32 %v3839, %v3979
      %v3998 = vmul.f32 %v3947, %v3975
      %v3999 = vmul.f32 %v3948, %v3979
      %v4000 = vmul.f32 %v3949, %v3975
      %v4001 = vmul.f32 %v3950, %v3979
      %v4002 = vmul.f32 %v3842, %v3975
      %v4003 = vmul.f32 %v3843, %v3979
      %v4004 = vmul.f32 %v3951, %v3975
      %v4005 = vmul.f32 %v3952, %v3979
      %v4006 = vmul.f32 %v3953, %v3975
      %v4007 = vmul.f32 %v3954, %v3979
      %v4008 = vmul.f32 %v3846, %v3975
      %v4009 = vmul.f32 %v3847, %v3979
      %v4010 = vmul.f32 %v3955, %v3975
      %v4011 = vmul.f32 %v3956, %v3979
      %v4012 = vmul.f32 %v3957, %v3975
      %v4013 = vmul.f32 %v3958, %v3979
      %v4014 = vmul.f32 %v3850, %v3975
      %v4015 = vmul.f32 %v3851, %v3979
      %v4016 = vmul.f32 %v3959, %v3975
      %v4017 = vmul.f32 %v3960, %v3979
      %v4018 = vmul.f32 %v3961, %v3975
      %v4019 = vmul.f32 %v3962, %v3979
      %v4020 = vmul.f32 %v3854, %v3975
      %v4021 = vmul.f32 %v3855, %v3979
      %v4022 = vmul.f32 %v3963, %v3975
      %v4023 = vmul.f32 %v3964, %v3979
      %v4024 = vmul.f32 %v3965, %v3975
      %v4025 = vmul.f32 %v3966, %v3979
      %v4026 = vmul.f32 %v3858, %v3975
      %v4027 = vmul.f32 %v3859, %v3979
      %v4028 = vmul.f32 %v3967, %v3975
      %v4029 = vmul.f32 %v3968, %v3979
      %v4078 = vrot.slane %v3982, 1
      %v4079 = vrot.slane %v3984, 1
      %v4080 = vsel %vm3396, %v4078, %v4079
      %v4081 = vrot.slane %v3983, 1
      %v4082 = vrot.slane %v3985, 1
      %v4083 = vsel %vm3396, %v4081, %v4082
      %v4084 = vrot.slane %v3986, 1
      %v4085 = vsel %vm3396, %v4079, %v4084
      %v4086 = vrot.slane %v3987, 1
      %v4087 = vsel %vm3396, %v4082, %v4086
      %v4088 = vrot.slane %v3988, 1
      %v4089 = vrot.slane %v3990, 1
      %v4090 = vsel %vm3396, %v4088, %v4089
      %v4091 = vrot.slane %v3989, 1
      %v4092 = vrot.slane %v3991, 1
      %v4093 = vsel %vm3396, %v4091, %v4092
      %v4094 = vrot.slane %v3992, 1
      %v4095 = vsel %vm3396, %v4089, %v4094
      %v4096 = vrot.slane %v3993, 1
      %v4097 = vsel %vm3396, %v4092, %v4096
      %v4098 = vrot.slane %v3994, 1
      %v4099 = vrot.slane %v3996, 1
      %v4100 = vsel %vm3396, %v4098, %v4099
      %v4101 = vrot.slane %v3995, 1
      %v4102 = vrot.slane %v3997, 1
      %v4103 = vsel %vm3396, %v4101, %v4102
      %v4104 = vrot.slane %v3998, 1
      %v4105 = vsel %vm3396, %v4099, %v4104
      %v4106 = vrot.slane %v3999, 1
      %v4107 = vsel %vm3396, %v4102, %v4106
      %v4108 = vrot.slane %v4000, 1
      %v4109 = vrot.slane %v4002, 1
      %v4110 = vsel %vm3396, %v4108, %v4109
      %v4111 = vrot.slane %v4001, 1
      %v4112 = vrot.slane %v4003, 1
      %v4113 = vsel %vm3396, %v4111, %v4112
      %v4114 = vrot.slane %v4004, 1
      %v4115 = vsel %vm3396, %v4109, %v4114
      %v4116 = vrot.slane %v4005, 1
      %v4117 = vsel %vm3396, %v4112, %v4116
      %v4118 = vrot.slane %v4006, 1
      %v4119 = vrot.slane %v4008, 1
      %v4120 = vsel %vm3396, %v4118, %v4119
      %v4121 = vrot.slane %v4007, 1
      %v4122 = vrot.slane %v4009, 1
      %v4123 = vsel %vm3396, %v4121, %v4122
      %v4124 = vrot.slane %v4010, 1
      %v4125 = vsel %vm3396, %v4119, %v4124
      %v4126 = vrot.slane %v4011, 1
      %v4127 = vsel %vm3396, %v4122, %v4126
      %v4128 = vrot.slane %v4012, 1
      %v4129 = vrot.slane %v4014, 1
      %v4130 = vsel %vm3396, %v4128, %v4129
      %v4131 = vrot.slane %v4013, 1
      %v4132 = vrot.slane %v4015, 1
      %v4133 = vsel %vm3396, %v4131, %v4132
      %v4134 = vrot.slane %v4016, 1
      %v4135 = vsel %vm3396, %v4129, %v4134
      %v4136 = vrot.slane %v4017, 1
      %v4137 = vsel %vm3396, %v4132, %v4136
      %v4138 = vrot.slane %v4018, 1
      %v4139 = vrot.slane %v4020, 1
      %v4140 = vsel %vm3396, %v4138, %v4139
      %v4141 = vrot.slane %v4019, 1
      %v4142 = vrot.slane %v4021, 1
      %v4143 = vsel %vm3396, %v4141, %v4142
      %v4144 = vrot.slane %v4022, 1
      %v4145 = vsel %vm3396, %v4139, %v4144
      %v4146 = vrot.slane %v4023, 1
      %v4147 = vsel %vm3396, %v4142, %v4146
      %v4148 = vrot.slane %v4024, 1
      %v4149 = vrot.slane %v4026, 1
      %v4150 = vsel %vm3396, %v4148, %v4149
      %v4151 = vrot.slane %v4025, 1
      %v4152 = vrot.slane %v4027, 1
      %v4153 = vsel %vm3396, %v4151, %v4152
      %v4154 = vrot.slane %v4028, 1
      %v4155 = vsel %vm3396, %v4149, %v4154
      %v4156 = vrot.slane %v4029, 1
      %v4157 = vsel %vm3396, %v4152, %v4156
      %v4190 = vadd.f32 %v3905, %v4080
      %v4191 = vadd.f32 %v3906, %v4083
      %v4192 = vadd.f32 %v3907, %v4085
      %v4193 = vadd.f32 %v3908, %v4087
      %v4194 = vadd.f32 %v3909, %v4090
      %v4195 = vadd.f32 %v3910, %v4093
      %v4196 = vadd.f32 %v3911, %v4095
      %v4197 = vadd.f32 %v3912, %v4097
      %v4198 = vadd.f32 %v3913, %v4100
      %v4199 = vadd.f32 %v3914, %v4103
      %v4200 = vadd.f32 %v3915, %v4105
      %v4201 = vadd.f32 %v3916, %v4107
      %v4202 = vadd.f32 %v3917, %v4110
      %v4203 = vadd.f32 %v3918, %v4113
      %v4204 = vadd.f32 %v3919, %v4115
      %v4205 = vadd.f32 %v3920, %v4117
      %v4206 = vadd.f32 %v3921, %v4120
      %v4207 = vadd.f32 %v3922, %v4123
      %v4208 = vadd.f32 %v3923, %v4125
      %v4209 = vadd.f32 %v3924, %v4127
      %v4210 = vadd.f32 %v3925, %v4130
      %v4211 = vadd.f32 %v3926, %v4133
      %v4212 = vadd.f32 %v3927, %v4135
      %v4213 = vadd.f32 %v3928, %v4137
      %v4214 = vadd.f32 %v3929, %v4140
      %v4215 = vadd.f32 %v3930, %v4143
      %v4216 = vadd.f32 %v3931, %v4145
      %v4217 = vadd.f32 %v3932, %v4147
      %v4218 = vadd.f32 %v3933, %v4150
      %v4219 = vadd.f32 %v3934, %v4153
      %v4220 = vadd.f32 %v3935, %v4155
      %v4221 = vadd.f32 %v3936, %v4157
      %v4222 = vld [vmem:[%s3827] sm:$0xfc]
      %v4223 = vld [vmem:[%s3827 + $0x8] sm:$0xfc]
      %v4224 = vld [vmem:[%s3827 + $0x20] sm:$0x3]
      %v4225 = vld [vmem:[%s3827 + $0x28] sm:$0x3]
      %v4226 = vld [vmem:[%s3827 + $0x30] sm:$0xfc]
      %v4227 = vld [vmem:[%s3827 + $0x38] sm:$0xfc]
      %v4228 = vld [vmem:[%s3827 + $0x50] sm:$0x3]
      %v4229 = vld [vmem:[%s3827 + $0x58] sm:$0x3]
      %v4230 = vld [vmem:[%s3827 + $0x60] sm:$0xfc]
      %v4231 = vld [vmem:[%s3827 + $0x68] sm:$0xfc]
      %v4232 = vld [vmem:[%s3827 + $0x80] sm:$0x3]
      %v4233 = vld [vmem:[%s3827 + $0x88] sm:$0x3]
      %v4234 = vld [vmem:[%s3827 + $0x90] sm:$0xfc]
      %v4235 = vld [vmem:[%s3827 + $0x98] sm:$0xfc]
      %v4236 = vld [vmem:[%s3827 + $0xb0] sm:$0x3]
      %v4237 = vld [vmem:[%s3827 + $0xb8] sm:$0x3]
      %v4238 = vld [vmem:[%s3827 + $0xc0] sm:$0xfc]
      %v4239 = vld [vmem:[%s3827 + $0xc8] sm:$0xfc]
      %v4240 = vld [vmem:[%s3827 + $0xe0] sm:$0x3]
      %v4241 = vld [vmem:[%s3827 + $0xe8] sm:$0x3]
      %v4242 = vld [vmem:[%s3827 + $0xf0] sm:$0xfc]
      %v4243 = vld [vmem:[%s3827 + $0xf8] sm:$0xfc]
      %v4244 = vld [vmem:[%s3827 + $0x110] sm:$0x3]
      %v4245 = vld [vmem:[%s3827 + $0x118] sm:$0x3]
      %v4246 = vld [vmem:[%s3827 + $0x120] sm:$0xfc]
      %v4247 = vld [vmem:[%s3827 + $0x128] sm:$0xfc]
      %v4248 = vld [vmem:[%s3827 + $0x140] sm:$0x3]
      %v4249 = vld [vmem:[%s3827 + $0x148] sm:$0x3]
      %v4250 = vld [vmem:[%s3827 + $0x150] sm:$0xfc]
      %v4251 = vld [vmem:[%s3827 + $0x158] sm:$0xfc]
      %v4252 = vld [vmem:[%s3827 + $0x170] sm:$0x3]
      %v4253 = vld [vmem:[%s3827 + $0x178] sm:$0x3]
      %s4254 = scalar_lea.vmem %s3, 10
      %v4255 = vld [vmem:[%s4254] sm:$0x3]
      %v4257 = vlaneseq
      %v4258 = vshrl.u32 %v4257, 7
      %v4259 = vsub.s32 0, %v4258
      %v4260 = vrot.slane %v4255, %v4259
      %v4261 = vlaneseq
      %v4262 = vshrl.u32 %v4261, 7
      %v4263 = vsub.s32 1, %v4262
      %v4264 = vrot.slane %v4255, %v4263
      %v4267 = vmul.f32 %v4222, %v4260
      %v4268 = vmul.f32 %v4223, %v4264
      %v4269 = vmul.f32 %v3830, %v4260
      %v4270 = vmul.f32 %v3831, %v4264
      %v4271 = vmul.f32 %v4224, %v4260
      %v4272 = vmul.f32 %v4225, %v4264
      %v4273 = vmul.f32 %v4226, %v4260
      %v4274 = vmul.f32 %v4227, %v4264
      %v4275 = vmul.f32 %v3834, %v4260
      %v4276 = vmul.f32 %v3835, %v4264
      %v4277 = vmul.f32 %v4228, %v4260
      %v4278 = vmul.f32 %v4229, %v4264
      %v4279 = vmul.f32 %v4230, %v4260
      %v4280 = vmul.f32 %v4231, %v4264
      %v4281 = vmul.f32 %v3838, %v4260
      %v4282 = vmul.f32 %v3839, %v4264
      %v4283 = vmul.f32 %v4232, %v4260
      %v4284 = vmul.f32 %v4233, %v4264
      %v4285 = vmul.f32 %v4234, %v4260
      %v4286 = vmul.f32 %v4235, %v4264
      %v4287 = vmul.f32 %v3842, %v4260
      %v4288 = vmul.f32 %v3843, %v4264
      %v4289 = vmul.f32 %v4236, %v4260
      %v4290 = vmul.f32 %v4237, %v4264
      %v4291 = vmul.f32 %v4238, %v4260
      %v4292 = vmul.f32 %v4239, %v4264
      %v4293 = vmul.f32 %v3846, %v4260
      %v4294 = vmul.f32 %v3847, %v4264
      %v4295 = vmul.f32 %v4240, %v4260
      %v4296 = vmul.f32 %v4241, %v4264
      %v4297 = vmul.f32 %v4242, %v4260
      %v4298 = vmul.f32 %v4243, %v4264
      %v4299 = vmul.f32 %v3850, %v4260
      %v4300 = vmul.f32 %v3851, %v4264
      %v4301 = vmul.f32 %v4244, %v4260
      %v4302 = vmul.f32 %v4245, %v4264
      %v4303 = vmul.f32 %v4246, %v4260
      %v4304 = vmul.f32 %v4247, %v4264
      %v4305 = vmul.f32 %v3854, %v4260
      %v4306 = vmul.f32 %v3855, %v4264
      %v4307 = vmul.f32 %v4248, %v4260
      %v4308 = vmul.f32 %v4249, %v4264
      %v4309 = vmul.f32 %v4250, %v4260
      %v4310 = vmul.f32 %v4251, %v4264
      %v4311 = vmul.f32 %v3858, %v4260
      %v4312 = vmul.f32 %v3859, %v4264
      %v4313 = vmul.f32 %v4252, %v4260
      %v4314 = vmul.f32 %v4253, %v4264
      %v4363 = vrot.slane %v4267, 2
      %v4364 = vrot.slane %v4269, 2
      %v4365 = vsel %vm3682, %v4363, %v4364
      %v4366 = vrot.slane %v4268, 2
      %v4367 = vrot.slane %v4270, 2
      %v4368 = vsel %vm3682, %v4366, %v4367
      %v4369 = vrot.slane %v4271, 2
      %v4370 = vsel %vm3682, %v4364, %v4369
      %v4371 = vrot.slane %v4272, 2
      %v4372 = vsel %vm3682, %v4367, %v4371
      %v4373 = vrot.slane %v4273, 2
      %v4374 = vrot.slane %v4275, 2
      %v4375 = vsel %vm3682, %v4373, %v4374
      %v4376 = vrot.slane %v4274, 2
      %v4377 = vrot.slane %v4276, 2
      %v4378 = vsel %vm3682, %v4376, %v4377
      %v4379 = vrot.slane %v4277, 2
      %v4380 = vsel %vm3682, %v4374, %v4379
      %v4381 = vrot.slane %v4278, 2
      %v4382 = vsel %vm3682, %v4377, %v4381
      %v4383 = vrot.slane %v4279, 2
      %v4384 = vrot.slane %v4281, 2
      %v4385 = vsel %vm3682, %v4383, %v4384
      %v4386 = vrot.slane %v4280, 2
      %v4387 = vrot.slane %v4282, 2
      %v4388 = vsel %vm3682, %v4386, %v4387
      %v4389 = vrot.slane %v4283, 2
      %v4390 = vsel %vm3682, %v4384, %v4389
      %v4391 = vrot.slane %v4284, 2
      %v4392 = vsel %vm3682, %v4387, %v4391
      %v4393 = vrot.slane %v4285, 2
      %v4394 = vrot.slane %v4287, 2
      %v4395 = vsel %vm3682, %v4393, %v4394
      %v4396 = vrot.slane %v4286, 2
      %v4397 = vrot.slane %v4288, 2
      %v4398 = vsel %vm3682, %v4396, %v4397
      %v4399 = vrot.slane %v4289, 2
      %v4400 = vsel %vm3682, %v4394, %v4399
      %v4401 = vrot.slane %v4290, 2
      %v4402 = vsel %vm3682, %v4397, %v4401
      %v4403 = vrot.slane %v4291, 2
      %v4404 = vrot.slane %v4293, 2
      %v4405 = vsel %vm3682, %v4403, %v4404
      %v4406 = vrot.slane %v4292, 2
      %v4407 = vrot.slane %v4294, 2
      %v4408 = vsel %vm3682, %v4406, %v4407
      %v4409 = vrot.slane %v4295, 2
      %v4410 = vsel %vm3682, %v4404, %v4409
      %v4411 = vrot.slane %v4296, 2
      %v4412 = vsel %vm3682, %v4407, %v4411
      %v4413 = vrot.slane %v4297, 2
      %v4414 = vrot.slane %v4299, 2
      %v4415 = vsel %vm3682, %v4413, %v4414
      %v4416 = vrot.slane %v4298, 2
      %v4417 = vrot.slane %v4300, 2
      %v4418 = vsel %vm3682, %v4416, %v4417
      %v4419 = vrot.slane %v4301, 2
      %v4420 = vsel %vm3682, %v4414, %v4419
      %v4421 = vrot.slane %v4302, 2
      %v4422 = vsel %vm3682, %v4417, %v4421
      %v4423 = vrot.slane %v4303, 2
      %v4424 = vrot.slane %v4305, 2
      %v4425 = vsel %vm3682, %v4423, %v4424
      %v4426 = vrot.slane %v4304, 2
      %v4427 = vrot.slane %v4306, 2
      %v4428 = vsel %vm3682, %v4426, %v4427
      %v4429 = vrot.slane %v4307, 2
      %v4430 = vsel %vm3682, %v4424, %v4429
      %v4431 = vrot.slane %v4308, 2
      %v4432 = vsel %vm3682, %v4427, %v4431
      %v4433 = vrot.slane %v4309, 2
      %v4434 = vrot.slane %v4311, 2
      %v4435 = vsel %vm3682, %v4433, %v4434
      %v4436 = vrot.slane %v4310, 2
      %v4437 = vrot.slane %v4312, 2
      %v4438 = vsel %vm3682, %v4436, %v4437
      %v4439 = vrot.slane %v4313, 2
      %v4440 = vsel %vm3682, %v4434, %v4439
      %v4441 = vrot.slane %v4314, 2
      %v4442 = vsel %vm3682, %v4437, %v4441
      %v4475 = vadd.f32 %v4190, %v4365
      %v4476 = vadd.f32 %v4191, %v4368
      %v4477 = vadd.f32 %v4192, %v4370
      %v4478 = vadd.f32 %v4193, %v4372
      %v4479 = vadd.f32 %v4194, %v4375
      %v4480 = vadd.f32 %v4195, %v4378
      %v4481 = vadd.f32 %v4196, %v4380
      %v4482 = vadd.f32 %v4197, %v4382
      %v4483 = vadd.f32 %v4198, %v4385
      %v4484 = vadd.f32 %v4199, %v4388
      %v4485 = vadd.f32 %v4200, %v4390
      %v4486 = vadd.f32 %v4201, %v4392
      %v4487 = vadd.f32 %v4202, %v4395
      %v4488 = vadd.f32 %v4203, %v4398
      %v4489 = vadd.f32 %v4204, %v4400
      %v4490 = vadd.f32 %v4205, %v4402
      %v4491 = vadd.f32 %v4206, %v4405
      %v4492 = vadd.f32 %v4207, %v4408
      %v4493 = vadd.f32 %v4208, %v4410
      %v4494 = vadd.f32 %v4209, %v4412
      %v4495 = vadd.f32 %v4210, %v4415
      %v4496 = vadd.f32 %v4211, %v4418
      %v4497 = vadd.f32 %v4212, %v4420
      %v4498 = vadd.f32 %v4213, %v4422
      %v4499 = vadd.f32 %v4214, %v4425
      %v4500 = vadd.f32 %v4215, %v4428
      %v4501 = vadd.f32 %v4216, %v4430
      %v4502 = vadd.f32 %v4217, %v4432
      %v4503 = vadd.f32 %v4218, %v4435
      %v4504 = vadd.f32 %v4219, %v4438
      %v4505 = vadd.f32 %v4220, %v4440
      %v4506 = vadd.f32 %v4221, %v4442
      %s4507 = scalar_lea.vmem [#allocation2], 96
      %v4508 = vld [vmem:[%s4507] sm:$0xff]
      %v4509 = vld [vmem:[%s4507 + $0x8] sm:$0xff]
      %v4510 = vld [vmem:[%s4507 + $0x10] sm:$0xff]
      %v4511 = vld [vmem:[%s4507 + $0x18] sm:$0xff]
      %v4512 = vld [vmem:[%s4507 + $0x30] sm:$0xff]
      %v4513 = vld [vmem:[%s4507 + $0x38] sm:$0xff]
      %v4514 = vld [vmem:[%s4507 + $0x40] sm:$0xff]
      %v4515 = vld [vmem:[%s4507 + $0x48] sm:$0xff]
      %v4516 = vld [vmem:[%s4507 + $0x60] sm:$0xff]
      %v4517 = vld [vmem:[%s4507 + $0x68] sm:$0xff]
      %v4518 = vld [vmem:[%s4507 + $0x70] sm:$0xff]
      %v4519 = vld [vmem:[%s4507 + $0x78] sm:$0xff]
      %v4520 = vld [vmem:[%s4507 + $0x90] sm:$0xff]
      %v4521 = vld [vmem:[%s4507 + $0x98] sm:$0xff]
      %v4522 = vld [vmem:[%s4507 + $0xa0] sm:$0xff]
      %v4523 = vld [vmem:[%s4507 + $0xa8] sm:$0xff]
      %v4524 = vld [vmem:[%s4507 + $0xc0] sm:$0xff]
      %v4525 = vld [vmem:[%s4507 + $0xc8] sm:$0xff]
      %v4526 = vld [vmem:[%s4507 + $0xd0] sm:$0xff]
      %v4527 = vld [vmem:[%s4507 + $0xd8] sm:$0xff]
      %v4528 = vld [vmem:[%s4507 + $0xf0] sm:$0xff]
      %v4529 = vld [vmem:[%s4507 + $0xf8] sm:$0xff]
      %v4530 = vld [vmem:[%s4507 + $0x100] sm:$0xff]
      %v4531 = vld [vmem:[%s4507 + $0x108] sm:$0xff]
      %v4532 = vld [vmem:[%s4507 + $0x120] sm:$0xff]
      %v4533 = vld [vmem:[%s4507 + $0x128] sm:$0xff]
      %v4534 = vld [vmem:[%s4507 + $0x130] sm:$0xff]
      %v4535 = vld [vmem:[%s4507 + $0x138] sm:$0xff]
      %v4536 = vld [vmem:[%s4507 + $0x150] sm:$0xff]
      %v4537 = vld [vmem:[%s4507 + $0x158] sm:$0xff]
      %v4538 = vld [vmem:[%s4507 + $0x160] sm:$0xff]
      %v4539 = vld [vmem:[%s4507 + $0x168] sm:$0xff]
      %s4540 = scalar_lea.vmem %s3, 12
      %v4541 = vld [vmem:[%s4540] sm:$0x3]
      %v4543 = vlaneseq
      %v4544 = vshrl.u32 %v4543, 7
      %v4545 = vsub.s32 0, %v4544
      %v4546 = vrot.slane %v4541, %v4545
      %v4547 = vlaneseq
      %v4548 = vshrl.u32 %v4547, 7
      %v4549 = vsub.s32 1, %v4548
      %v4550 = vrot.slane %v4541, %v4549
      %v4553 = vmul.f32 %v4508, %v4546
      %v4554 = vmul.f32 %v4509, %v4550
      %v4555 = vmul.f32 %v4510, %v4546
      %v4556 = vmul.f32 %v4511, %v4550
      %v4557 = vmul.f32 %v4512, %v4546
      %v4558 = vmul.f32 %v4513, %v4550
      %v4559 = vmul.f32 %v4514, %v4546
      %v4560 = vmul.f32 %v4515, %v4550
      %v4561 = vmul.f32 %v4516, %v4546
      %v4562 = vmul.f32 %v4517, %v4550
      %v4563 = vmul.f32 %v4518, %v4546
      %v4564 = vmul.f32 %v4519, %v4550
      %v4565 = vmul.f32 %v4520, %v4546
      %v4566 = vmul.f32 %v4521, %v4550
      %v4567 = vmul.f32 %v4522, %v4546
      %v4568 = vmul.f32 %v4523, %v4550
      %v4569 = vmul.f32 %v4524, %v4546
      %v4570 = vmul.f32 %v4525, %v4550
      %v4571 = vmul.f32 %v4526, %v4546
      %v4572 = vmul.f32 %v4527, %v4550
      %v4573 = vmul.f32 %v4528, %v4546
      %v4574 = vmul.f32 %v4529, %v4550
      %v4575 = vmul.f32 %v4530, %v4546
      %v4576 = vmul.f32 %v4531, %v4550
      %v4577 = vmul.f32 %v4532, %v4546
      %v4578 = vmul.f32 %v4533, %v4550
      %v4579 = vmul.f32 %v4534, %v4546
      %v4580 = vmul.f32 %v4535, %v4550
      %v4581 = vmul.f32 %v4536, %v4546
      %v4582 = vmul.f32 %v4537, %v4550
      %v4583 = vmul.f32 %v4538, %v4546
      %v4584 = vmul.f32 %v4539, %v4550
      %v4585 = vadd.f32 %v4475, %v4553
      %v4586 = vadd.f32 %v4476, %v4554
      %v4587 = vadd.f32 %v4477, %v4555
      %v4588 = vadd.f32 %v4478, %v4556
      %v4589 = vadd.f32 %v4479, %v4557
      %v4590 = vadd.f32 %v4480, %v4558
      %v4591 = vadd.f32 %v4481, %v4559
      %v4592 = vadd.f32 %v4482, %v4560
      %v4593 = vadd.f32 %v4483, %v4561
      %v4594 = vadd.f32 %v4484, %v4562
      %v4595 = vadd.f32 %v4485, %v4563
      %v4596 = vadd.f32 %v4486, %v4564
      %v4597 = vadd.f32 %v4487, %v4565
      %v4598 = vadd.f32 %v4488, %v4566
      %v4599 = vadd.f32 %v4489, %v4567
      %v4600 = vadd.f32 %v4490, %v4568
      %v4601 = vadd.f32 %v4491, %v4569
      %v4602 = vadd.f32 %v4492, %v4570
      %v4603 = vadd.f32 %v4493, %v4571
      %v4604 = vadd.f32 %v4494, %v4572
      %v4605 = vadd.f32 %v4495, %v4573
      %v4606 = vadd.f32 %v4496, %v4574
      %v4607 = vadd.f32 %v4497, %v4575
      %v4608 = vadd.f32 %v4498, %v4576
      %v4609 = vadd.f32 %v4499, %v4577
      %v4610 = vadd.f32 %v4500, %v4578
      %v4611 = vadd.f32 %v4501, %v4579
      %v4612 = vadd.f32 %v4502, %v4580
      %v4613 = vadd.f32 %v4503, %v4581
      %v4614 = vadd.f32 %v4504, %v4582
      %v4615 = vadd.f32 %v4505, %v4583
      %v4616 = vadd.f32 %v4506, %v4584
      %v4617 = vld [vmem:[%s4507] sm:$0xfe]
      %v4618 = vld [vmem:[%s4507 + $0x8] sm:$0xfe]
      %v4619 = vld [vmem:[%s4507 + $0x20] sm:$0x1]
      %v4620 = vld [vmem:[%s4507 + $0x28] sm:$0x1]
      %v4621 = vld [vmem:[%s4507 + $0x30] sm:$0xfe]
      %v4622 = vld [vmem:[%s4507 + $0x38] sm:$0xfe]
      %v4623 = vld [vmem:[%s4507 + $0x50] sm:$0x1]
      %v4624 = vld [vmem:[%s4507 + $0x58] sm:$0x1]
      %v4625 = vld [vmem:[%s4507 + $0x60] sm:$0xfe]
      %v4626 = vld [vmem:[%s4507 + $0x68] sm:$0xfe]
      %v4627 = vld [vmem:[%s4507 + $0x80] sm:$0x1]
      %v4628 = vld [vmem:[%s4507 + $0x88] sm:$0x1]
      %v4629 = vld [vmem:[%s4507 + $0x90] sm:$0xfe]
      %v4630 = vld [vmem:[%s4507 + $0x98] sm:$0xfe]
      %v4631 = vld [vmem:[%s4507 + $0xb0] sm:$0x1]
      %v4632 = vld [vmem:[%s4507 + $0xb8] sm:$0x1]
      %v4633 = vld [vmem:[%s4507 + $0xc0] sm:$0xfe]
      %v4634 = vld [vmem:[%s4507 + $0xc8] sm:$0xfe]
      %v4635 = vld [vmem:[%s4507 + $0xe0] sm:$0x1]
      %v4636 = vld [vmem:[%s4507 + $0xe8] sm:$0x1]
      %v4637 = vld [vmem:[%s4507 + $0xf0] sm:$0xfe]
      %v4638 = vld [vmem:[%s4507 + $0xf8] sm:$0xfe]
      %v4639 = vld [vmem:[%s4507 + $0x110] sm:$0x1]
      %v4640 = vld [vmem:[%s4507 + $0x118] sm:$0x1]
      %v4641 = vld [vmem:[%s4507 + $0x120] sm:$0xfe]
      %v4642 = vld [vmem:[%s4507 + $0x128] sm:$0xfe]
      %v4643 = vld [vmem:[%s4507 + $0x140] sm:$0x1]
      %v4644 = vld [vmem:[%s4507 + $0x148] sm:$0x1]
      %v4645 = vld [vmem:[%s4507 + $0x150] sm:$0xfe]
      %v4646 = vld [vmem:[%s4507 + $0x158] sm:$0xfe]
      %v4647 = vld [vmem:[%s4507 + $0x170] sm:$0x1]
      %v4648 = vld [vmem:[%s4507 + $0x178] sm:$0x1]
      %s4649 = scalar_lea.vmem %s3, 14
      %v4650 = vld [vmem:[%s4649] sm:$0x3]
      %v4652 = vlaneseq
      %v4653 = vshrl.u32 %v4652, 7
      %v4654 = vsub.s32 0, %v4653
      %v4655 = vrot.slane %v4650, %v4654
      %v4656 = vlaneseq
      %v4657 = vshrl.u32 %v4656, 7
      %v4658 = vsub.s32 1, %v4657
      %v4659 = vrot.slane %v4650, %v4658
      %v4662 = vmul.f32 %v4617, %v4655
      %v4663 = vmul.f32 %v4618, %v4659
      %v4664 = vmul.f32 %v4510, %v4655
      %v4665 = vmul.f32 %v4511, %v4659
      %v4666 = vmul.f32 %v4619, %v4655
      %v4667 = vmul.f32 %v4620, %v4659
      %v4668 = vmul.f32 %v4621, %v4655
      %v4669 = vmul.f32 %v4622, %v4659
      %v4670 = vmul.f32 %v4514, %v4655
      %v4671 = vmul.f32 %v4515, %v4659
      %v4672 = vmul.f32 %v4623, %v4655
      %v4673 = vmul.f32 %v4624, %v4659
      %v4674 = vmul.f32 %v4625, %v4655
      %v4675 = vmul.f32 %v4626, %v4659
      %v4676 = vmul.f32 %v4518, %v4655
      %v4677 = vmul.f32 %v4519, %v4659
      %v4678 = vmul.f32 %v4627, %v4655
      %v4679 = vmul.f32 %v4628, %v4659
      %v4680 = vmul.f32 %v4629, %v4655
      %v4681 = vmul.f32 %v4630, %v4659
      %v4682 = vmul.f32 %v4522, %v4655
      %v4683 = vmul.f32 %v4523, %v4659
      %v4684 = vmul.f32 %v4631, %v4655
      %v4685 = vmul.f32 %v4632, %v4659
      %v4686 = vmul.f32 %v4633, %v4655
      %v4687 = vmul.f32 %v4634, %v4659
      %v4688 = vmul.f32 %v4526, %v4655
      %v4689 = vmul.f32 %v4527, %v4659
      %v4690 = vmul.f32 %v4635, %v4655
      %v4691 = vmul.f32 %v4636, %v4659
      %v4692 = vmul.f32 %v4637, %v4655
      %v4693 = vmul.f32 %v4638, %v4659
      %v4694 = vmul.f32 %v4530, %v4655
      %v4695 = vmul.f32 %v4531, %v4659
      %v4696 = vmul.f32 %v4639, %v4655
      %v4697 = vmul.f32 %v4640, %v4659
      %v4698 = vmul.f32 %v4641, %v4655
      %v4699 = vmul.f32 %v4642, %v4659
      %v4700 = vmul.f32 %v4534, %v4655
      %v4701 = vmul.f32 %v4535, %v4659
      %v4702 = vmul.f32 %v4643, %v4655
      %v4703 = vmul.f32 %v4644, %v4659
      %v4704 = vmul.f32 %v4645, %v4655
      %v4705 = vmul.f32 %v4646, %v4659
      %v4706 = vmul.f32 %v4538, %v4655
      %v4707 = vmul.f32 %v4539, %v4659
      %v4708 = vmul.f32 %v4647, %v4655
      %v4709 = vmul.f32 %v4648, %v4659
      %v4758 = vrot.slane %v4662, 1
      %v4759 = vrot.slane %v4664, 1
      %v4760 = vsel %vm3396, %v4758, %v4759
      %v4761 = vrot.slane %v4663, 1
      %v4762 = vrot.slane %v4665, 1
      %v4763 = vsel %vm3396, %v4761, %v4762
      %v4764 = vrot.slane %v4666, 1
      %v4765 = vsel %vm3396, %v4759, %v4764
      %v4766 = vrot.slane %v4667, 1
      %v4767 = vsel %vm3396, %v4762, %v4766
      %v4768 = vrot.slane %v4668, 1
      %v4769 = vrot.slane %v4670, 1
      %v4770 = vsel %vm3396, %v4768, %v4769
      %v4771 = vrot.slane %v4669, 1
      %v4772 = vrot.slane %v4671, 1
      %v4773 = vsel %vm3396, %v4771, %v4772
      %v4774 = vrot.slane %v4672, 1
      %v4775 = vsel %vm3396, %v4769, %v4774
      %v4776 = vrot.slane %v4673, 1
      %v4777 = vsel %vm3396, %v4772, %v4776
      %v4778 = vrot.slane %v4674, 1
      %v4779 = vrot.slane %v4676, 1
      %v4780 = vsel %vm3396, %v4778, %v4779
      %v4781 = vrot.slane %v4675, 1
      %v4782 = vrot.slane %v4677, 1
      %v4783 = vsel %vm3396, %v4781, %v4782
      %v4784 = vrot.slane %v4678, 1
      %v4785 = vsel %vm3396, %v4779, %v4784
      %v4786 = vrot.slane %v4679, 1
      %v4787 = vsel %vm3396, %v4782, %v4786
      %v4788 = vrot.slane %v4680, 1
      %v4789 = vrot.slane %v4682, 1
      %v4790 = vsel %vm3396, %v4788, %v4789
      %v4791 = vrot.slane %v4681, 1
      %v4792 = vrot.slane %v4683, 1
      %v4793 = vsel %vm3396, %v4791, %v4792
      %v4794 = vrot.slane %v4684, 1
      %v4795 = vsel %vm3396, %v4789, %v4794
      %v4796 = vrot.slane %v4685, 1
      %v4797 = vsel %vm3396, %v4792, %v4796
      %v4798 = vrot.slane %v4686, 1
      %v4799 = vrot.slane %v4688, 1
      %v4800 = vsel %vm3396, %v4798, %v4799
      %v4801 = vrot.slane %v4687, 1
      %v4802 = vrot.slane %v4689, 1
      %v4803 = vsel %vm3396, %v4801, %v4802
      %v4804 = vrot.slane %v4690, 1
      %v4805 = vsel %vm3396, %v4799, %v4804
      %v4806 = vrot.slane %v4691, 1
      %v4807 = vsel %vm3396, %v4802, %v4806
      %v4808 = vrot.slane %v4692, 1
      %v4809 = vrot.slane %v4694, 1
      %v4810 = vsel %vm3396, %v4808, %v4809
      %v4811 = vrot.slane %v4693, 1
      %v4812 = vrot.slane %v4695, 1
      %v4813 = vsel %vm3396, %v4811, %v4812
      %v4814 = vrot.slane %v4696, 1
      %v4815 = vsel %vm3396, %v4809, %v4814
      %v4816 = vrot.slane %v4697, 1
      %v4817 = vsel %vm3396, %v4812, %v4816
      %v4818 = vrot.slane %v4698, 1
      %v4819 = vrot.slane %v4700, 1
      %v4820 = vsel %vm3396, %v4818, %v4819
      %v4821 = vrot.slane %v4699, 1
      %v4822 = vrot.slane %v4701, 1
      %v4823 = vsel %vm3396, %v4821, %v4822
      %v4824 = vrot.slane %v4702, 1
      %v4825 = vsel %vm3396, %v4819, %v4824
      %v4826 = vrot.slane %v4703, 1
      %v4827 = vsel %vm3396, %v4822, %v4826
      %v4828 = vrot.slane %v4704, 1
      %v4829 = vrot.slane %v4706, 1
      %v4830 = vsel %vm3396, %v4828, %v4829
      %v4831 = vrot.slane %v4705, 1
      %v4832 = vrot.slane %v4707, 1
      %v4833 = vsel %vm3396, %v4831, %v4832
      %v4834 = vrot.slane %v4708, 1
      %v4835 = vsel %vm3396, %v4829, %v4834
      %v4836 = vrot.slane %v4709, 1
      %v4837 = vsel %vm3396, %v4832, %v4836
      %v4870 = vadd.f32 %v4585, %v4760
      %v4871 = vadd.f32 %v4586, %v4763
      %v4872 = vadd.f32 %v4587, %v4765
      %v4873 = vadd.f32 %v4588, %v4767
      %v4874 = vadd.f32 %v4589, %v4770
      %v4875 = vadd.f32 %v4590, %v4773
      %v4876 = vadd.f32 %v4591, %v4775
      %v4877 = vadd.f32 %v4592, %v4777
      %v4878 = vadd.f32 %v4593, %v4780
      %v4879 = vadd.f32 %v4594, %v4783
      %v4880 = vadd.f32 %v4595, %v4785
      %v4881 = vadd.f32 %v4596, %v4787
      %v4882 = vadd.f32 %v4597, %v4790
      %v4883 = vadd.f32 %v4598, %v4793
      %v4884 = vadd.f32 %v4599, %v4795
      %v4885 = vadd.f32 %v4600, %v4797
      %v4886 = vadd.f32 %v4601, %v4800
      %v4887 = vadd.f32 %v4602, %v4803
      %v4888 = vadd.f32 %v4603, %v4805
      %v4889 = vadd.f32 %v4604, %v4807
      %v4890 = vadd.f32 %v4605, %v4810
      %v4891 = vadd.f32 %v4606, %v4813
      %v4892 = vadd.f32 %v4607, %v4815
      %v4893 = vadd.f32 %v4608, %v4817
      %v4894 = vadd.f32 %v4609, %v4820
      %v4895 = vadd.f32 %v4610, %v4823
      %v4896 = vadd.f32 %v4611, %v4825
      %v4897 = vadd.f32 %v4612, %v4827
      %v4898 = vadd.f32 %v4613, %v4830
      %v4899 = vadd.f32 %v4614, %v4833
      %v4900 = vadd.f32 %v4615, %v4835
      %v4901 = vadd.f32 %v4616, %v4837
      %v4902 = vld [vmem:[%s4507] sm:$0xfc]
      %v4903 = vld [vmem:[%s4507 + $0x8] sm:$0xfc]
      %v4904 = vld [vmem:[%s4507 + $0x20] sm:$0x3]
      %v4905 = vld [vmem:[%s4507 + $0x28] sm:$0x3]
      %v4906 = vld [vmem:[%s4507 + $0x30] sm:$0xfc]
      %v4907 = vld [vmem:[%s4507 + $0x38] sm:$0xfc]
      %v4908 = vld [vmem:[%s4507 + $0x50] sm:$0x3]
      %v4909 = vld [vmem:[%s4507 + $0x58] sm:$0x3]
      %v4910 = vld [vmem:[%s4507 + $0x60] sm:$0xfc]
      %v4911 = vld [vmem:[%s4507 + $0x68] sm:$0xfc]
      %v4912 = vld [vmem:[%s4507 + $0x80] sm:$0x3]
      %v4913 = vld [vmem:[%s4507 + $0x88] sm:$0x3]
      %v4914 = vld [vmem:[%s4507 + $0x90] sm:$0xfc]
      %v4915 = vld [vmem:[%s4507 + $0x98] sm:$0xfc]
      %v4916 = vld [vmem:[%s4507 + $0xb0] sm:$0x3]
      %v4917 = vld [vmem:[%s4507 + $0xb8] sm:$0x3]
      %v4918 = vld [vmem:[%s4507 + $0xc0] sm:$0xfc]
      %v4919 = vld [vmem:[%s4507 + $0xc8] sm:$0xfc]
      %v4920 = vld [vmem:[%s4507 + $0xe0] sm:$0x3]
      %v4921 = vld [vmem:[%s4507 + $0xe8] sm:$0x3]
      %v4922 = vld [vmem:[%s4507 + $0xf0] sm:$0xfc]
      %v4923 = vld [vmem:[%s4507 + $0xf8] sm:$0xfc]
      %v4924 = vld [vmem:[%s4507 + $0x110] sm:$0x3]
      %v4925 = vld [vmem:[%s4507 + $0x118] sm:$0x3]
      %v4926 = vld [vmem:[%s4507 + $0x120] sm:$0xfc]
      %v4927 = vld [vmem:[%s4507 + $0x128] sm:$0xfc]
      %v4928 = vld [vmem:[%s4507 + $0x140] sm:$0x3]
      %v4929 = vld [vmem:[%s4507 + $0x148] sm:$0x3]
      %v4930 = vld [vmem:[%s4507 + $0x150] sm:$0xfc]
      %v4931 = vld [vmem:[%s4507 + $0x158] sm:$0xfc]
      %v4932 = vld [vmem:[%s4507 + $0x170] sm:$0x3]
      %v4933 = vld [vmem:[%s4507 + $0x178] sm:$0x3]
      %s4934 = scalar_lea.vmem %s3, 16
      %v4935 = vld [vmem:[%s4934] sm:$0x3]
      %v4937 = vlaneseq
      %v4938 = vshrl.u32 %v4937, 7
      %v4939 = vsub.s32 0, %v4938
      %v4940 = vrot.slane %v4935, %v4939
      %v4941 = vlaneseq
      %v4942 = vshrl.u32 %v4941, 7
      %v4943 = vsub.s32 1, %v4942
      %v4944 = vrot.slane %v4935, %v4943
      %v4947 = vmul.f32 %v4902, %v4940
      %v4948 = vmul.f32 %v4903, %v4944
      %v4949 = vmul.f32 %v4510, %v4940
      %v4950 = vmul.f32 %v4511, %v4944
      %v4951 = vmul.f32 %v4904, %v4940
      %v4952 = vmul.f32 %v4905, %v4944
      %v4953 = vmul.f32 %v4906, %v4940
      %v4954 = vmul.f32 %v4907, %v4944
      %v4955 = vmul.f32 %v4514, %v4940
      %v4956 = vmul.f32 %v4515, %v4944
      %v4957 = vmul.f32 %v4908, %v4940
      %v4958 = vmul.f32 %v4909, %v4944
      %v4959 = vmul.f32 %v4910, %v4940
      %v4960 = vmul.f32 %v4911, %v4944
      %v4961 = vmul.f32 %v4518, %v4940
      %v4962 = vmul.f32 %v4519, %v4944
      %v4963 = vmul.f32 %v4912, %v4940
      %v4964 = vmul.f32 %v4913, %v4944
      %v4965 = vmul.f32 %v4914, %v4940
      %v4966 = vmul.f32 %v4915, %v4944
      %v4967 = vmul.f32 %v4522, %v4940
      %v4968 = vmul.f32 %v4523, %v4944
      %v4969 = vmul.f32 %v4916, %v4940
      %v4970 = vmul.f32 %v4917, %v4944
      %v4971 = vmul.f32 %v4918, %v4940
      %v4972 = vmul.f32 %v4919, %v4944
      %v4973 = vmul.f32 %v4526, %v4940
      %v4974 = vmul.f32 %v4527, %v4944
      %v4975 = vmul.f32 %v4920, %v4940
      %v4976 = vmul.f32 %v4921, %v4944
      %v4977 = vmul.f32 %v4922, %v4940
      %v4978 = vmul.f32 %v4923, %v4944
      %v4979 = vmul.f32 %v4530, %v4940
      %v4980 = vmul.f32 %v4531, %v4944
      %v4981 = vmul.f32 %v4924, %v4940
      %v4982 = vmul.f32 %v4925, %v4944
      %v4983 = vmul.f32 %v4926, %v4940
      %v4984 = vmul.f32 %v4927, %v4944
      %v4985 = vmul.f32 %v4534, %v4940
      %v4986 = vmul.f32 %v4535, %v4944
      %v4987 = vmul.f32 %v4928, %v4940
      %v4988 = vmul.f32 %v4929, %v4944
      %v4989 = vmul.f32 %v4930, %v4940
      %v4990 = vmul.f32 %v4931, %v4944
      %v4991 = vmul.f32 %v4538, %v4940
      %v4992 = vmul.f32 %v4539, %v4944
      %v4993 = vmul.f32 %v4932, %v4940
      %v4994 = vmul.f32 %v4933, %v4944
      %v5043 = vrot.slane %v4947, 2
      %v5044 = vrot.slane %v4949, 2
      %v5045 = vsel %vm3682, %v5043, %v5044
      %v5046 = vrot.slane %v4948, 2
      %v5047 = vrot.slane %v4950, 2
      %v5048 = vsel %vm3682, %v5046, %v5047
      %v5049 = vrot.slane %v4951, 2
      %v5050 = vsel %vm3682, %v5044, %v5049
      %v5051 = vrot.slane %v4952, 2
      %v5052 = vsel %vm3682, %v5047, %v5051
      %v5053 = vrot.slane %v4953, 2
      %v5054 = vrot.slane %v4955, 2
      %v5055 = vsel %vm3682, %v5053, %v5054
      %v5056 = vrot.slane %v4954, 2
      %v5057 = vrot.slane %v4956, 2
      %v5058 = vsel %vm3682, %v5056, %v5057
      %v5059 = vrot.slane %v4957, 2
      %v5060 = vsel %vm3682, %v5054, %v5059
      %v5061 = vrot.slane %v4958, 2
      %v5062 = vsel %vm3682, %v5057, %v5061
      %v5063 = vrot.slane %v4959, 2
      %v5064 = vrot.slane %v4961, 2
      %v5065 = vsel %vm3682, %v5063, %v5064
      %v5066 = vrot.slane %v4960, 2
      %v5067 = vrot.slane %v4962, 2
      %v5068 = vsel %vm3682, %v5066, %v5067
      %v5069 = vrot.slane %v4963, 2
      %v5070 = vsel %vm3682, %v5064, %v5069
      %v5071 = vrot.slane %v4964, 2
      %v5072 = vsel %vm3682, %v5067, %v5071
      %v5073 = vrot.slane %v4965, 2
      %v5074 = vrot.slane %v4967, 2
      %v5075 = vsel %vm3682, %v5073, %v5074
      %v5076 = vrot.slane %v4966, 2
      %v5077 = vrot.slane %v4968, 2
      %v5078 = vsel %vm3682, %v5076, %v5077
      %v5079 = vrot.slane %v4969, 2
      %v5080 = vsel %vm3682, %v5074, %v5079
      %v5081 = vrot.slane %v4970, 2
      %v5082 = vsel %vm3682, %v5077, %v5081
      %v5083 = vrot.slane %v4971, 2
      %v5084 = vrot.slane %v4973, 2
      %v5085 = vsel %vm3682, %v5083, %v5084
      %v5086 = vrot.slane %v4972, 2
      %v5087 = vrot.slane %v4974, 2
      %v5088 = vsel %vm3682, %v5086, %v5087
      %v5089 = vrot.slane %v4975, 2
      %v5090 = vsel %vm3682, %v5084, %v5089
      %v5091 = vrot.slane %v4976, 2
      %v5092 = vsel %vm3682, %v5087, %v5091
      %v5093 = vrot.slane %v4977, 2
      %v5094 = vrot.slane %v4979, 2
      %v5095 = vsel %vm3682, %v5093, %v5094
      %v5096 = vrot.slane %v4978, 2
      %v5097 = vrot.slane %v4980, 2
      %v5098 = vsel %vm3682, %v5096, %v5097
      %v5099 = vrot.slane %v4981, 2
      %v5100 = vsel %vm3682, %v5094, %v5099
      %v5101 = vrot.slane %v4982, 2
      %v5102 = vsel %vm3682, %v5097, %v5101
      %v5103 = vrot.slane %v4983, 2
      %v5104 = vrot.slane %v4985, 2
      %v5105 = vsel %vm3682, %v5103, %v5104
      %v5106 = vrot.slane %v4984, 2
      %v5107 = vrot.slane %v4986, 2
      %v5108 = vsel %vm3682, %v5106, %v5107
      %v5109 = vrot.slane %v4987, 2
      %v5110 = vsel %vm3682, %v5104, %v5109
      %v5111 = vrot.slane %v4988, 2
      %v5112 = vsel %vm3682, %v5107, %v5111
      %v5113 = vrot.slane %v4989, 2
      %v5114 = vrot.slane %v4991, 2
      %v5115 = vsel %vm3682, %v5113, %v5114
      %v5116 = vrot.slane %v4990, 2
      %v5117 = vrot.slane %v4992, 2
      %v5118 = vsel %vm3682, %v5116, %v5117
      %v5119 = vrot.slane %v4993, 2
      %v5120 = vsel %vm3682, %v5114, %v5119
      %v5121 = vrot.slane %v4994, 2
      %v5122 = vsel %vm3682, %v5117, %v5121
      %v5155 = vadd.f32 %v4870, %v5045
      %v5156 = vadd.f32 %v4871, %v5048
      %v5157 = vadd.f32 %v4872, %v5050
      %v5158 = vadd.f32 %v4873, %v5052
      %v5159 = vadd.f32 %v4874, %v5055
      %v5160 = vadd.f32 %v4875, %v5058
      %v5161 = vadd.f32 %v4876, %v5060
      %v5162 = vadd.f32 %v4877, %v5062
      %v5163 = vadd.f32 %v4878, %v5065
      %v5164 = vadd.f32 %v4879, %v5068
      %v5165 = vadd.f32 %v4880, %v5070
      %v5166 = vadd.f32 %v4881, %v5072
      %v5167 = vadd.f32 %v4882, %v5075
      %v5168 = vadd.f32 %v4883, %v5078
      %v5169 = vadd.f32 %v4884, %v5080
      %v5170 = vadd.f32 %v4885, %v5082
      %v5171 = vadd.f32 %v4886, %v5085
      %v5172 = vadd.f32 %v4887, %v5088
      %v5173 = vadd.f32 %v4888, %v5090
      %v5174 = vadd.f32 %v4889, %v5092
      %v5175 = vadd.f32 %v4890, %v5095
      %v5176 = vadd.f32 %v4891, %v5098
      %v5177 = vadd.f32 %v4892, %v5100
      %v5178 = vadd.f32 %v4893, %v5102
      %v5179 = vadd.f32 %v4894, %v5105
      %v5180 = vadd.f32 %v4895, %v5108
      %v5181 = vadd.f32 %v4896, %v5110
      %v5182 = vadd.f32 %v4897, %v5112
      %v5183 = vadd.f32 %v4898, %v5115
      %v5184 = vadd.f32 %v4899, %v5118
      %v5185 = vadd.f32 %v4900, %v5120
      %v5186 = vadd.f32 %v4901, %v5122
      %v5187 = vld [vmem:[%s4] sm:$0x3]
      %v5189 = vlaneseq
      %v5190 = vshrl.u32 %v5189, 7
      %v5191 = vsub.s32 0, %v5190
      %v5192 = vrot.slane %v5187, %v5191
      %v5193 = vlaneseq
      %v5194 = vshrl.u32 %v5193, 7
      %v5195 = vsub.s32 1, %v5194
      %v5196 = vrot.slane %v5187, %v5195
      %v5199 = vadd.f32 %v5155, %v5192
      %v5200 = vadd.f32 %v5156, %v5196
      %v5201 = vadd.f32 %v5157, %v5192
      %v5202 = vadd.f32 %v5158, %v5196
      %v5203 = vadd.f32 %v5159, %v5192
      %v5204 = vadd.f32 %v5160, %v5196
      %v5205 = vadd.f32 %v5161, %v5192
      %v5206 = vadd.f32 %v5162, %v5196
      %v5207 = vadd.f32 %v5163, %v5192
      %v5208 = vadd.f32 %v5164, %v5196
      %v5209 = vadd.f32 %v5165, %v5192
      %v5210 = vadd.f32 %v5166, %v5196
      %v5211 = vadd.f32 %v5167, %v5192
      %v5212 = vadd.f32 %v5168, %v5196
      %v5213 = vadd.f32 %v5169, %v5192
      %v5214 = vadd.f32 %v5170, %v5196
      %v5215 = vadd.f32 %v5171, %v5192
      %v5216 = vadd.f32 %v5172, %v5196
      %v5217 = vadd.f32 %v5173, %v5192
      %v5218 = vadd.f32 %v5174, %v5196
      %v5219 = vadd.f32 %v5175, %v5192
      %v5220 = vadd.f32 %v5176, %v5196
      %v5221 = vadd.f32 %v5177, %v5192
      %v5222 = vadd.f32 %v5178, %v5196
      %v5223 = vadd.f32 %v5179, %v5192
      %v5224 = vadd.f32 %v5180, %v5196
      %v5225 = vadd.f32 %v5181, %v5192
      %v5226 = vadd.f32 %v5182, %v5196
      %v5227 = vadd.f32 %v5183, %v5192
      %v5228 = vadd.f32 %v5184, %v5196
      %v5229 = vadd.f32 %v5185, %v5192
      %v5230 = vadd.f32 %v5186, %v5196
      %v5231 = vmax.f32 %v5199, 0.0
      %v5232 = vmax.f32 %v5200, 0.0
      %v5233 = vmax.f32 %v5201, 0.0
      %v5234 = vmax.f32 %v5202, 0.0
      %v5235 = vmax.f32 %v5203, 0.0
      %v5236 = vmax.f32 %v5204, 0.0
      %v5237 = vmax.f32 %v5205, 0.0
      %v5238 = vmax.f32 %v5206, 0.0
      %v5239 = vmax.f32 %v5207, 0.0
      %v5240 = vmax.f32 %v5208, 0.0
      %v5241 = vmax.f32 %v5209, 0.0
      %v5242 = vmax.f32 %v5210, 0.0
      %v5243 = vmax.f32 %v5211, 0.0
      %v5244 = vmax.f32 %v5212, 0.0
      %v5245 = vmax.f32 %v5213, 0.0
      %v5246 = vmax.f32 %v5214, 0.0
      %v5247 = vmax.f32 %v5215, 0.0
      %v5248 = vmax.f32 %v5216, 0.0
      %v5249 = vmax.f32 %v5217, 0.0
      %v5250 = vmax.f32 %v5218, 0.0
      %v5251 = vmax.f32 %v5219, 0.0
      %v5252 = vmax.f32 %v5220, 0.0
      %v5253 = vmax.f32 %v5221, 0.0
      %v5254 = vmax.f32 %v5222, 0.0
      %v5255 = vmax.f32 %v5223, 0.0
      %v5256 = vmax.f32 %v5224, 0.0
      %v5257 = vmax.f32 %v5225, 0.0
      %v5258 = vmax.f32 %v5226, 0.0
      %v5259 = vmax.f32 %v5227, 0.0
      %v5260 = vmax.f32 %v5228, 0.0
      %v5261 = vmax.f32 %v5229, 0.0
      %v5262 = vmax.f32 %v5230, 0.0
      %v5263 = vmin.f32 %v5231, 6.0
      %v5264 = vmin.f32 %v5232, 6.0
      %v5265 = vmin.f32 %v5233, 6.0
      %v5266 = vmin.f32 %v5234, 6.0
      %v5267 = vmin.f32 %v5235, 6.0
      %v5268 = vmin.f32 %v5236, 6.0
      %v5269 = vmin.f32 %v5237, 6.0
      %v5270 = vmin.f32 %v5238, 6.0
      %v5271 = vmin.f32 %v5239, 6.0
      %v5272 = vmin.f32 %v5240, 6.0
      %v5273 = vmin.f32 %v5241, 6.0
      %v5274 = vmin.f32 %v5242, 6.0
      %v5275 = vmin.f32 %v5243, 6.0
      %v5276 = vmin.f32 %v5244, 6.0
      %v5277 = vmin.f32 %v5245, 6.0
      %v5278 = vmin.f32 %v5246, 6.0
      %v5279 = vmin.f32 %v5247, 6.0
      %v5280 = vmin.f32 %v5248, 6.0
      %v5281 = vmin.f32 %v5249, 6.0
      %v5282 = vmin.f32 %v5250, 6.0
      %v5283 = vmin.f32 %v5251, 6.0
      %v5284 = vmin.f32 %v5252, 6.0
      %v5285 = vmin.f32 %v5253, 6.0
      %v5286 = vmin.f32 %v5254, 6.0
      %v5287 = vmin.f32 %v5255, 6.0
      %v5288 = vmin.f32 %v5256, 6.0
      %v5289 = vmin.f32 %v5257, 6.0
      %v5290 = vmin.f32 %v5258, 6.0
      %v5291 = vmin.f32 %v5259, 6.0
      %v5292 = vmin.f32 %v5260, 6.0
      %v5293 = vmin.f32 %v5261, 6.0
      %v5294 = vmin.f32 %v5262, 6.0
      %v5295 = vpack.c.bf16 %v5265, %v5263
      %v5296 = vpack.c.bf16 %v5266, %v5264
      %v5297 = vpack.c.bf16 %v5269, %v5267
      %v5298 = vpack.c.bf16 %v5270, %v5268
      %v5299 = vpack.c.bf16 %v5273, %v5271
      %v5300 = vpack.c.bf16 %v5274, %v5272
      %v5301 = vpack.c.bf16 %v5277, %v5275
      %v5302 = vpack.c.bf16 %v5278, %v5276
      %v5303 = vpack.c.bf16 %v5281, %v5279
      %v5304 = vpack.c.bf16 %v5282, %v5280
      %v5305 = vpack.c.bf16 %v5285, %v5283
      %v5306 = vpack.c.bf16 %v5286, %v5284
      %v5307 = vpack.c.bf16 %v5289, %v5287
      %v5308 = vpack.c.bf16 %v5290, %v5288
      %v5309 = vpack.c.bf16 %v5293, %v5291
      %v5310 = vpack.c.bf16 %v5294, %v5292
      %v5311 = vld [vmem:[%s5] sm:$0xf]
      %v5312 = vld [vmem:[%s5 + $0x4] sm:$0xf]
      %v5313 = vld [vmem:[%s5 + $0x8] sm:$0xf]
      %v5314 = vld [vmem:[%s5 + $0xc] sm:$0xf]
      %v5315 = vld [vmem:[%s5 + $0x10] sm:$0xf]
      %v5316 = vld [vmem:[%s5 + $0x14] sm:$0xf]
      %v5317 = vld [vmem:[%s5 + $0x18] sm:$0xf]
      %v5318 = vld [vmem:[%s5 + $0x1c] sm:$0xf]
      %v5319 = vld [vmem:[%s5 + $0x20] sm:$0xf]
      %v5320 = vld [vmem:[%s5 + $0x24] sm:$0xf]
      %v5321 = vld [vmem:[%s5 + $0x28] sm:$0xf]
      %v5322 = vld [vmem:[%s5 + $0x2c] sm:$0xf]
      %v5323 = vld [vmem:[%s5 + $0x30] sm:$0xf]
      %v5324 = vld [vmem:[%s5 + $0x34] sm:$0xf]
      %v5325 = vld [vmem:[%s5 + $0x38] sm:$0xf]
      %v5326 = vld [vmem:[%s5 + $0x3c] sm:$0xf]
      %v5327 = vld [vmem:[%s5 + $0x40] sm:$0xf]
      %v5328 = vld [vmem:[%s5 + $0x44] sm:$0xf]
      %v5329 = vld [vmem:[%s5 + $0x48] sm:$0xf]
      %v5330 = vld [vmem:[%s5 + $0x4c] sm:$0xf]
      %v5331 = vld [vmem:[%s5 + $0x50] sm:$0xf]
      %v5332 = vld [vmem:[%s5 + $0x54] sm:$0xf]
      %v5333 = vld [vmem:[%s5 + $0x58] sm:$0xf]
      %v5334 = vld [vmem:[%s5 + $0x5c] sm:$0xf]
      %v5335 = vld [vmem:[%s5 + $0x60] sm:$0xf]
      %v5336 = vld [vmem:[%s5 + $0x64] sm:$0xf]
      %v5337 = vld [vmem:[%s5 + $0x68] sm:$0xf]
      %v5338 = vld [vmem:[%s5 + $0x6c] sm:$0xf]
      %v5339 = vld [vmem:[%s5 + $0x70] sm:$0xf]
      %v5340 = vld [vmem:[%s5 + $0x74] sm:$0xf]
      %v5341 = vld [vmem:[%s5 + $0x78] sm:$0xf]
      %v5342 = vld [vmem:[%s5 + $0x7c] sm:$0xf]
      %v5343 = vld [vmem:[%s6] sm:$0x1]
      %v5345 = vlaneseq
      %v5346 = vshrl.u32 %v5345, 7
      %v5347 = vsub.s32 0, %v5346
      %v5348 = vrot.slane %v5343, %v5347
      %v5382 = vunpack.c.l.b16 %v5311
      %v5383 = vunpack.c.l.b16 %v5312
      %v5384 = vunpack.c.l.b16 %v5313
      %v5385 = vunpack.c.l.b16 %v5314
      %v5386 = vunpack.c.l.b16 %v5315
      %v5387 = vunpack.c.l.b16 %v5316
      %v5388 = vunpack.c.l.b16 %v5317
      %v5389 = vunpack.c.l.b16 %v5318
      %v5390 = vunpack.c.l.b16 %v5319
      %v5391 = vunpack.c.l.b16 %v5320
      %v5392 = vunpack.c.l.b16 %v5321
      %v5393 = vunpack.c.l.b16 %v5322
      %v5394 = vunpack.c.l.b16 %v5323
      %v5395 = vunpack.c.l.b16 %v5324
      %v5396 = vunpack.c.l.b16 %v5325
      %v5397 = vunpack.c.l.b16 %v5326
      %v5398 = vunpack.c.l.b16 %v5327
      %v5399 = vunpack.c.l.b16 %v5328
      %v5400 = vunpack.c.l.b16 %v5329
      %v5401 = vunpack.c.l.b16 %v5330
      %v5402 = vunpack.c.l.b16 %v5331
      %v5403 = vunpack.c.l.b16 %v5332
      %v5404 = vunpack.c.l.b16 %v5333
      %v5405 = vunpack.c.l.b16 %v5334
      %v5406 = vunpack.c.l.b16 %v5335
      %v5407 = vunpack.c.l.b16 %v5336
      %v5408 = vunpack.c.l.b16 %v5337
      %v5409 = vunpack.c.l.b16 %v5338
      %v5410 = vunpack.c.l.b16 %v5339
      %v5411 = vunpack.c.l.b16 %v5340
      %v5412 = vunpack.c.l.b16 %v5341
      %v5413 = vunpack.c.l.b16 %v5342
      %v5414 = vpack.c.b16 %v5383, %v5382
      %v5415 = vpack.c.b16 %v5385, %v5384
      %v5416 = vpack.c.b16 %v5387, %v5386
      %v5417 = vpack.c.b16 %v5389, %v5388
      %v5418 = vpack.c.b16 %v5391, %v5390
      %v5419 = vpack.c.b16 %v5393, %v5392
      %v5420 = vpack.c.b16 %v5395, %v5394
      %v5421 = vpack.c.b16 %v5397, %v5396
      %v5422 = vpack.c.b16 %v5399, %v5398
      %v5423 = vpack.c.b16 %v5401, %v5400
      %v5424 = vpack.c.b16 %v5403, %v5402
      %v5425 = vpack.c.b16 %v5405, %v5404
      %v5426 = vpack.c.b16 %v5407, %v5406
      %v5427 = vpack.c.b16 %v5409, %v5408
      %v5428 = vpack.c.b16 %v5411, %v5410
      %v5429 = vpack.c.b16 %v5413, %v5412
      %5446 = vmatprep.subr.bf16.mxu0 0
      %5447 = vmatpush1.bf16.msra.mxu0 %v5414
      %5448 = vmatprep.subr.bf16.mxu0 0
      %5449 = vmatpush1.bf16.msra.mxu0 %v5415
      %5450 = vmatprep.subr.bf16.mxu0 0
      %5451 = vmatpush1.bf16.msra.mxu0 %v5416
      %5452 = vmatprep.subr.bf16.mxu0 0
      %5453 = vmatpush1.bf16.msra.mxu0 %v5417
      %5454 = vmatprep.subr.bf16.mxu0 0
      %5455 = vmatpush1.bf16.msra.mxu0 %v5418
      %5456 = vmatprep.subr.bf16.mxu0 0
      %5457 = vmatpush1.bf16.msra.mxu0 %v5419
      %5458 = vmatprep.subr.bf16.mxu0 0
      %5459 = vmatpush1.bf16.msra.mxu0 %v5420
      %5460 = vmatprep.subr.bf16.mxu0 0
      %5461 = vmatpush1.bf16.msra.mxu0 %v5421
      %5462 = vmatprep.subr.bf16.mxu0 0
      %5463 = vmatpush1.bf16.msra.mxu0 %v5422
      %5464 = vmatprep.subr.bf16.mxu0 0
      %5465 = vmatpush1.bf16.msra.mxu0 %v5423
      %5466 = vmatprep.subr.bf16.mxu0 0
      %5467 = vmatpush1.bf16.msra.mxu0 %v5424
      %5468 = vmatprep.subr.bf16.mxu0 0
      %5469 = vmatpush1.bf16.msra.mxu0 %v5425
      %5470 = vmatprep.subr.bf16.mxu0 0
      %5471 = vmatpush1.bf16.msra.mxu0 %v5426
      %5472 = vmatprep.subr.bf16.mxu0 0
      %5473 = vmatpush1.bf16.msra.mxu0 %v5427
      %5474 = vmatprep.subr.bf16.mxu0 0
      %5475 = vmatpush1.bf16.msra.mxu0 %v5428
      %5476 = vmatprep.subr.bf16.mxu0 0
      %5477 = vmatpush1.bf16.msra.mxu0 %v5429
      %5478 = vmatprep.mubr.bf16.mxu0 %v5296
      %5479 = vmatmul.mubr.bf16.gmra.mrb[0].mxu0 %v5295
      %v5480 = vpop.f32.mrb[0].mxu0
      %v5481 = vadd.f32 %v5348, %v5480
      %v5482 = vpop.f32.mrb[0].mxu0
      %v5483 = vpop.f32.mrb[0].mxu0
      %v5484 = vadd.f32 %v5348, %v5483
      %v5485 = vpop.f32.mrb[0].mxu0
      %5486 = vmatprep.mubr.bf16.mxu0 %v5298
      %5487 = vmatmul.mubr.bf16.gmra.mrb[0].mxu0 %v5297
      %v5488 = vpop.f32.mrb[0].mxu0
      %v5489 = vadd.f32 %v5348, %v5488
      %v5490 = vpop.f32.mrb[0].mxu0
      %v5491 = vpop.f32.mrb[0].mxu0
      %v5492 = vadd.f32 %v5348, %v5491
      %v5493 = vpop.f32.mrb[0].mxu0
      %5494 = vmatprep.mubr.bf16.mxu0 %v5300
      %5495 = vmatmul.mubr.bf16.gmra.mrb[0].mxu0 %v5299
      %v5496 = vpop.f32.mrb[0].mxu0
      %v5497 = vadd.f32 %v5348, %v5496
      %v5498 = vpop.f32.mrb[0].mxu0
      %v5499 = vpop.f32.mrb[0].mxu0
      %v5500 = vadd.f32 %v5348, %v5499
      %v5501 = vpop.f32.mrb[0].mxu0
      %5502 = vmatprep.mubr.bf16.mxu0 %v5302
      %5503 = vmatmul.mubr.bf16.gmra.mrb[0].mxu0 %v5301
      %v5504 = vpop.f32.mrb[0].mxu0
      %v5505 = vadd.f32 %v5348, %v5504
      %v5506 = vpop.f32.mrb[0].mxu0
      %v5507 = vpop.f32.mrb[0].mxu0
      %v5508 = vadd.f32 %v5348, %v5507
      %v5509 = vpop.f32.mrb[0].mxu0
      %5510 = vmatprep.mubr.bf16.mxu0 %v5304
      %5511 = vmatmul.mubr.bf16.gmra.mrb[0].mxu0 %v5303
      %v5512 = vpop.f32.mrb[0].mxu0
      %v5513 = vadd.f32 %v5348, %v5512
      %v5514 = vpop.f32.mrb[0].mxu0
      %v5515 = vpop.f32.mrb[0].mxu0
      %v5516 = vadd.f32 %v5348, %v5515
      %v5517 = vpop.f32.mrb[0].mxu0
      %5518 = vmatprep.mubr.bf16.mxu0 %v5306
      %5519 = vmatmul.mubr.bf16.gmra.mrb[0].mxu0 %v5305
      %v5520 = vpop.f32.mrb[0].mxu0
      %v5521 = vadd.f32 %v5348, %v5520
      %v5522 = vpop.f32.mrb[0].mxu0
      %v5523 = vpop.f32.mrb[0].mxu0
      %v5524 = vadd.f32 %v5348, %v5523
      %v5525 = vpop.f32.mrb[0].mxu0
      %5526 = vmatprep.mubr.bf16.mxu0 %v5308
      %5527 = vmatmul.mubr.bf16.gmra.mrb[0].mxu0 %v5307
      %v5528 = vpop.f32.mrb[0].mxu0
      %v5529 = vadd.f32 %v5348, %v5528
      %v5530 = vpop.f32.mrb[0].mxu0
      %v5531 = vpop.f32.mrb[0].mxu0
      %v5532 = vadd.f32 %v5348, %v5531
      %v5533 = vpop.f32.mrb[0].mxu0
      %5534 = vmatprep.mubr.bf16.mxu0 %v5310
      %5535 = vmatmul.mubr.bf16.gmra.mrb[0].mxu0 %v5309
      %v5536 = vpop.f32.mrb[0].mxu0
      %v5537 = vadd.f32 %v5348, %v5536
      %v5538 = vpop.f32.mrb[0].mxu0
      %v5539 = vpop.f32.mrb[0].mxu0
      %v5540 = vadd.f32 %v5348, %v5539
      %v5541 = vpop.f32.mrb[0].mxu0
      %5542 = vdwg.mxu0
      %s5543 = sadd.s32 %s305, 1
      %s5544 = smul.u32 %s5543, 3
      %s5545 = smul.addr %s5544, 4
      %s5546 = scalar_lea.vmem %s292, %s5545
      %v5547 = vld [vmem:[%s5546] sm:$0xf]
      %v5548 = vld [vmem:[%s5546 + $0x4] sm:$0xf]
      %v5549 = vld [vmem:[%s5546 + $0x8] sm:$0x1]
      %v5550 = vld [vmem:[%s5546 + $0xc] sm:$0xf]
      %v5551 = vld [vmem:[%s5546 + $0x10] sm:$0xf]
      %v5552 = vld [vmem:[%s5546 + $0x14] sm:$0x1]
      %v5553 = vld [vmem:[%s5546 + $0x18] sm:$0xf]
      %v5554 = vld [vmem:[%s5546 + $0x1c] sm:$0xf]
      %v5555 = vld [vmem:[%s5546 + $0x20] sm:$0x1]
      %v5556 = vld [vmem:[%s5546 + $0x24] sm:$0xf]
      %v5557 = vld [vmem:[%s5546 + $0x28] sm:$0xf]
      %v5558 = vld [vmem:[%s5546 + $0x2c] sm:$0x1]
      %v5559 = vld [vmem:[%s5546 + $0x30] sm:$0xf]
      %v5560 = vld [vmem:[%s5546 + $0x34] sm:$0xf]
      %v5561 = vld [vmem:[%s5546 + $0x38] sm:$0x1]
      %v5562 = vld [vmem:[%s5546 + $0x3c] sm:$0xf]
      %v5563 = vld [vmem:[%s5546 + $0x40] sm:$0xf]
      %v5564 = vld [vmem:[%s5546 + $0x44] sm:$0x1]
      %v5565 = vld [vmem:[%s5546 + $0x48] sm:$0xf]
      %v5566 = vld [vmem:[%s5546 + $0x4c] sm:$0xf]
      %v5567 = vld [vmem:[%s5546 + $0x50] sm:$0x1]
      %v5568 = vld [vmem:[%s5546 + $0x54] sm:$0xf]
      %v5569 = vld [vmem:[%s5546 + $0x58] sm:$0xf]
      %v5570 = vld [vmem:[%s5546 + $0x5c] sm:$0x1]
      %vm5571 = vsmask.f32 3328
      %vm5572 = vsmask.f32 7440
      %vm5573 = vmor %vm5571, %vm5572
      %v5575 = vshrl.u32 %v5547, 16
      %v5577 = vrot.slane %v5575, 4
      %v5578 = vshll.u32 %v5547, 16
      %v5580 = vrot.slane %v5578, 5
      %v5581 = vor.u32 %v5577, %v5580
      %v5582 = vrot.slane %v5581, 4
      %v5584 = vshll.u32 %v5548, 16
      %v5586 = vrot.slane %v5584, 5
      %v5587 = vsel %vm5573, %v5582, %v5586
      %v5588 = vshrl.u32 %v5548, 16
      %v5590 = vrot.slane %v5588, 4
      %v5591 = vor.u32 %v5590, %v5586
      %v5592 = vrot.slane %v5591, 4
      %v5594 = vshll.u32 %v5549, 16
      %v5596 = vrot.slane %v5594, 5
      %v5597 = vsel %vm5573, %v5592, %v5596
      %v5599 = vshrl.u32 %v5550, 16
      %v5601 = vrot.slane %v5599, 4
      %v5602 = vshll.u32 %v5550, 16
      %v5604 = vrot.slane %v5602, 5
      %v5605 = vor.u32 %v5601, %v5604
      %v5606 = vrot.slane %v5605, 4
      %v5608 = vshll.u32 %v5551, 16
      %v5610 = vrot.slane %v5608, 5
      %v5611 = vsel %vm5573, %v5606, %v5610
      %v5612 = vshrl.u32 %v5551, 16
      %v5614 = vrot.slane %v5612, 4
      %v5615 = vor.u32 %v5614, %v5610
      %v5616 = vrot.slane %v5615, 4
      %v5618 = vshll.u32 %v5552, 16
      %v5620 = vrot.slane %v5618, 5
      %v5621 = vsel %vm5573, %v5616, %v5620
      %v5623 = vshrl.u32 %v5553, 16
      %v5625 = vrot.slane %v5623, 4
      %v5626 = vshll.u32 %v5553, 16
      %v5628 = vrot.slane %v5626, 5
      %v5629 = vor.u32 %v5625, %v5628
      %v5630 = vrot.slane %v5629, 4
      %v5632 = vshll.u32 %v5554, 16
      %v5634 = vrot.slane %v5632, 5
      %v5635 = vsel %vm5573, %v5630, %v5634
      %v5636 = vshrl.u32 %v5554, 16
      %v5638 = vrot.slane %v5636, 4
      %v5639 = vor.u32 %v5638, %v5634
      %v5640 = vrot.slane %v5639, 4
      %v5642 = vshll.u32 %v5555, 16
      %v5644 = vrot.slane %v5642, 5
      %v5645 = vsel %vm5573, %v5640, %v5644
      %v5647 = vshrl.u32 %v5556, 16
      %v5649 = vrot.slane %v5647, 4
      %v5650 = vshll.u32 %v5556, 16
      %v5652 = vrot.slane %v5650, 5
      %v5653 = vor.u32 %v5649, %v5652
      %v5654 = vrot.slane %v5653, 4
      %v5656 = vshll.u32 %v5557, 16
      %v5658 = vrot.slane %v5656, 5
      %v5659 = vsel %vm5573, %v5654, %v5658
      %v5660 = vshrl.u32 %v5557, 16
      %v5662 = vrot.slane %v5660, 4
      %v5663 = vor.u32 %v5662, %v5658
      %v5664 = vrot.slane %v5663, 4
      %v5666 = vshll.u32 %v5558, 16
      %v5668 = vrot.slane %v5666, 5
      %v5669 = vsel %vm5573, %v5664, %v5668
      %v5671 = vshrl.u32 %v5559, 16
      %v5673 = vrot.slane %v5671, 4
      %v5674 = vshll.u32 %v5559, 16
      %v5676 = vrot.slane %v5674, 5
      %v5677 = vor.u32 %v5673, %v5676
      %v5678 = vrot.slane %v5677, 4
      %v5680 = vshll.u32 %v5560, 16
      %v5682 = vrot.slane %v5680, 5
      %v5683 = vsel %vm5573, %v5678, %v5682
      %v5684 = vshrl.u32 %v5560, 16
      %v5686 = vrot.slane %v5684, 4
      %v5687 = vor.u32 %v5686, %v5682
      %v5688 = vrot.slane %v5687, 4
      %v5690 = vshll.u32 %v5561, 16
      %v5692 = vrot.slane %v5690, 5
      %v5693 = vsel %vm5573, %v5688, %v5692
      %v5695 = vshrl.u32 %v5562, 16
      %v5697 = vrot.slane %v5695, 4
      %v5698 = vshll.u32 %v5562, 16
      %v5700 = vrot.slane %v5698, 5
      %v5701 = vor.u32 %v5697, %v5700
      %v5702 = vrot.slane %v5701, 4
      %v5704 = vshll.u32 %v5563, 16
      %v5706 = vrot.slane %v5704, 5
      %v5707 = vsel %vm5573, %v5702, %v5706
      %v5708 = vshrl.u32 %v5563, 16
      %v5710 = vrot.slane %v5708, 4
      %v5711 = vor.u32 %v5710, %v5706
      %v5712 = vrot.slane %v5711, 4
      %v5714 = vshll.u32 %v5564, 16
      %v5716 = vrot.slane %v5714, 5
      %v5717 = vsel %vm5573, %v5712, %v5716
      %v5719 = vshrl.u32 %v5565, 16
      %v5721 = vrot.slane %v5719, 4
      %v5722 = vshll.u32 %v5565, 16
      %v5724 = vrot.slane %v5722, 5
      %v5725 = vor.u32 %v5721, %v5724
      %v5726 = vrot.slane %v5725, 4
      %v5728 = vshll.u32 %v5566, 16
      %v5730 = vrot.slane %v5728, 5
      %v5731 = vsel %vm5573, %v5726, %v5730
      %v5732 = vshrl.u32 %v5566, 16
      %v5734 = vrot.slane %v5732, 4
      %v5735 = vor.u32 %v5734, %v5730
      %v5736 = vrot.slane %v5735, 4
      %v5738 = vshll.u32 %v5567, 16
      %v5740 = vrot.slane %v5738, 5
      %v5741 = vsel %vm5573, %v5736, %v5740
      %v5743 = vshrl.u32 %v5568, 16
      %v5745 = vrot.slane %v5743, 4
      %v5746 = vshll.u32 %v5568, 16
      %v5748 = vrot.slane %v5746, 5
      %v5749 = vor.u32 %v5745, %v5748
      %v5750 = vrot.slane %v5749, 4
      %v5752 = vshll.u32 %v5569, 16
      %v5754 = vrot.slane %v5752, 5
      %v5755 = vsel %vm5573, %v5750, %v5754
      %v5756 = vshrl.u32 %v5569, 16
      %v5758 = vrot.slane %v5756, 4
      %v5759 = vor.u32 %v5758, %v5754
      %v5760 = vrot.slane %v5759, 4
      %v5762 = vshll.u32 %v5570, 16
      %v5764 = vrot.slane %v5762, 5
      %v5765 = vsel %vm5573, %v5760, %v5764
      %v5782 = vunpack.c.l.bf16 %v5587
      %v5783 = vunpack.c.l.bf16 %v5597
      %v5784 = vunpack.c.l.bf16 %v5611
      %v5785 = vunpack.c.l.bf16 %v5621
      %v5786 = vunpack.c.l.bf16 %v5635
      %v5787 = vunpack.c.l.bf16 %v5645
      %v5788 = vunpack.c.l.bf16 %v5659
      %v5789 = vunpack.c.l.bf16 %v5669
      %v5790 = vunpack.c.l.bf16 %v5683
      %v5791 = vunpack.c.l.bf16 %v5693
      %v5792 = vunpack.c.l.bf16 %v5707
      %v5793 = vunpack.c.l.bf16 %v5717
      %v5794 = vunpack.c.l.bf16 %v5731
      %v5795 = vunpack.c.l.bf16 %v5741
      %v5796 = vunpack.c.l.bf16 %v5755
      %v5797 = vunpack.c.l.bf16 %v5765
      %v5798 = vadd.f32 %v5481, %v5782
      %v5799 = vadd.f32 %v5484, %v5783
      %v5800 = vadd.f32 %v5489, %v5784
      %v5801 = vadd.f32 %v5492, %v5785
      %v5802 = vadd.f32 %v5497, %v5786
      %v5803 = vadd.f32 %v5500, %v5787
      %v5804 = vadd.f32 %v5505, %v5788
      %v5805 = vadd.f32 %v5508, %v5789
      %v5806 = vadd.f32 %v5513, %v5790
      %v5807 = vadd.f32 %v5516, %v5791
      %v5808 = vadd.f32 %v5521, %v5792
      %v5809 = vadd.f32 %v5524, %v5793
      %v5810 = vadd.f32 %v5529, %v5794
      %v5811 = vadd.f32 %v5532, %v5795
      %v5812 = vadd.f32 %v5537, %v5796
      %v5813 = vadd.f32 %v5540, %v5797
      %5814 = vst [vmem:[%s302] sm:$0xff] %v5798
      %5815 = vst [vmem:[%s302 + $0x8] sm:$0xff] %v5799
      %5816 = vst [vmem:[%s302 + $0x10] sm:$0xff] %v5800
      %5817 = vst [vmem:[%s302 + $0x18] sm:$0xff] %v5801
      %5818 = vst [vmem:[%s302 + $0x20] sm:$0xff] %v5802
      %5819 = vst [vmem:[%s302 + $0x28] sm:$0xff] %v5803
      %5820 = vst [vmem:[%s302 + $0x30] sm:$0xff] %v5804
      %5821 = vst [vmem:[%s302 + $0x38] sm:$0xff] %v5805
      %5822 = vst [vmem:[%s302 + $0x40] sm:$0xff] %v5806
      %5823 = vst [vmem:[%s302 + $0x48] sm:$0xff] %v5807
      %5824 = vst [vmem:[%s302 + $0x50] sm:$0xff] %v5808
      %5825 = vst [vmem:[%s302 + $0x58] sm:$0xff] %v5809
      %5826 = vst [vmem:[%s302 + $0x60] sm:$0xff] %v5810
      %5827 = vst [vmem:[%s302 + $0x68] sm:$0xff] %v5811
      %5828 = vst [vmem:[%s302 + $0x70] sm:$0xff] %v5812
      %5829 = vst [vmem:[%s302 + $0x78] sm:$0xff] %v5813
      %s5830 = smul.u32 8, %s23
      %p5831 = scmp.lt.s32.totalorder %s22, 1
      %s5832 = scalar_select %p5831, %s22, 1
      %p5833 = scmp.lt.s32.totalorder %s5830, 15
      %s5834 = scalar_select %p5833, %s5830, 15
      %s5835 = smul.addr %s5834, 2
      %s5836 = smul.addr %s5832, 32
      %s5837 = sadd.s32 %s5835, %s5836
      %s5838 = smul.addr %s5837, 8
      %s5839 = scalar_lea.vmem %s7, %s5838
      // Predicated region
      $region49: #{inverted_residual_forward.1} parent=47 // pred_check
        %p5840 = pneg %p202
      $region50: #{inverted_residual_forward.1} parent=47 // pred_check_branch
        %5842 = sbr.rel (%p5840) target = $region52
      $region51: #{inverted_residual_forward.1} parent=47 // pred_region
        %s5843 = smul.u32 8, %s23
      $region52: #{inverted_residual_forward.1} parent=47 // pred_fallthru
        _
    $region48: #{inverted_residual_forward.1} parent=5 // pred_fallthru
      _
    %p5844 = scmp.le.s32.totalorder 2, %s13
    // Predicated region
    $region53: #{inverted_residual_forward.1} parent=5 // pred_check
      %p5845 = pneg %p5844
    $region54: #{inverted_residual_forward.1} parent=5 // pred_check_branch
      %5847 = sbr.rel (%p5845) target = $region56
    $region55: #{inverted_residual_forward.1} parent=5 // pred_region
      %s5848 = ssub.s32 %s13, 2
      // Predicated region
      $region57: #{inverted_residual_forward.1} parent=55 // pred_check
        %p5849 = pneg %p208
      $region58: #{inverted_residual_forward.1} parent=55 // pred_check_branch
        %5851 = sbr.rel (%p5849) target = $region60
      $region59: #{inverted_residual_forward.1} parent=55 // pred_region
        %s5852 = smul.u32 8, %s25
        %p5853 = scmp.lt.s32.totalorder %s24, 1
        %s5854 = scalar_select %p5853, %s24, 1
        %p5855 = scmp.lt.s32.totalorder %s5852, 15
        %s5856 = scalar_select %p5855, %s5852, 15
        %s5857 = smul.addr %s5856, 2
        %s5858 = smul.addr %s5854, 32
        %s5859 = sadd.s32 %s5857, %s5858
        %s5860 = smul.addr %s5859, 8
        %s5861 = scalar_lea.vmem %s7, %s5860
      $region60: #{inverted_residual_forward.1} parent=55 // pred_fallthru
        _
    $region56: #{inverted_residual_forward.1} parent=5 // pred_fallthru
      _
  $region6: #{inverted_residual_forward.1} parent=0 // loop_footer
    %s17 = sadd.s32 1, %s13
  $region7: #{inverted_residual_forward.1} parent=0 // loop_footer_branch
    %12 = sbr.rel target = $region3
  $region8: #{inverted_residual_forward.1} parent=0 // loop_exit
    _

</llo_original>
